<compile_context>
chip_gen: v7x
topology: tpu7x:2x2x1
jax: 0.10.0
libtpu: 0.0.40
codegen_flags: <defaults>
</compile_context>

<pallas_src>
import functools

import jax
import jax.numpy as jnp
from jax.experimental import pallas as pl
from jax.experimental.pallas import tpu as pltpu


# Set to jnp.bfloat16 to trade ~1e-3 relative error for 2-4x MXU rate and half
# the weight DMA bytes (accumulation stays f32 via preferred_element_type).
_MXU_INPUT_DTYPE = jnp.float32

_VMEM_LIMIT = 32 * 1024 * 1024   # explicit (v5e default is 16 MiB; v7x phys is 64 MiB)


def _mm(a, b):
    return jnp.dot(a.astype(_MXU_INPUT_DTYPE), b.astype(_MXU_INPUT_DTYPE),
                   preferred_element_type=jnp.float32)


def _gelu(x):
    # tanh-approximate GELU: the transcendental goes to the EUP slot instead of
    # ~12 VALU ops (review item).  Max abs diff vs exact-erf GELU ~1e-3.
    c = 0.7978845608028654  # sqrt(2/pi)
    return 0.5 * x * (1.0 + jnp.tanh(c * (x + 0.044715 * x * x * x)))


def _layernorm(x, g, b, eps):
    mu = jnp.mean(x, axis=-1, keepdims=True)
    cen = x - mu
    var = jnp.mean(cen * cen, axis=-1, keepdims=True)
    return cen * jax.lax.rsqrt(var + eps) * g + b


# --------------------------- block-size helpers ---------------------------

def _row_tile(m, cap=256):
    """Largest divisor of m that is a multiple of 8, <= cap and leaves >=2 grid
    steps when possible (v7x: 2 TensorCores; also enables DMA/compute overlap)."""
    target = min(cap, max(8, -(-m // 2)))
    best = None
    for d in range(8, m + 1, 8):
        if m % d == 0 and d <= target:
            best = d
    return best if best is not None else m


def _images_per_block(b, hw):
    """Whole images per block (the in-kernel flatten/unflatten needs it).
    Prefer >=2 grid steps, keep bb*hw a multiple of 8 and the per-block mask
    (bb*hw x hw*C) small."""
    target = max(1, b // 2)
    best = None
    for d in range(1, b + 1):
        if b % d == 0 and d <= target and (d * hw) % 8 == 0 and d * hw <= 512:
            best = d
    return best if best is not None else b


def _head_batch_tile(b):
    """Head batch tile: keep the out-block sublane count either == b or 8k."""
    if b > 8 and b % 8 == 0:
        return 8
    return b


# ------------------------------ kernels ------------------------------

def _linear_kernel(x_ref, w_ref, b_ref, o_ref):
    # Patch embedding: per-patch matmul + bias (Conv2d with kernel == stride).
    o_ref[...] = (_mm(x_ref[...].astype(jnp.float32), w_ref[...]) +
                  b_ref[...]).astype(o_ref.dtype)


def _layer_kernel(x_ref, ln1g_ref, ln1b_ref, mask_ref, kp_ref, kpt_ref,
                  gt_ref, g_ref, wtm_ref, btm_ref, ln2g_ref, ln2b_ref,
                  w1_ref, b1_ref, w2_ref, b2_ref, o_ref, *, eps):
    """One whole Permutator layer for a block of `bb` images (rb = bb*hw rows).

    x_ref:    (rb, C)  tokens of bb images (row r = image*hw + token)
    mask_ref: (rb, N)  mask[r, n] = 1 iff n // C == r % hw          (N = hw*C)
    kp_ref:   (bb, rb) kpool[j, r] = 1 iff r // hw == j
    kpt_ref:  (rb, bb) kpool^T (precomputed -> no in-kernel transpose)
    gt_ref:   (C, N)   gt[c, n] = 1 iff n % C == c   (spread channels over N)
    g_ref:    (N, C)   gt^T                           (fold N back to channels)
    wtm_ref:  (N, N)   ParallelSum(branches) + outer projection, folded at init
    """
    x = x_ref[...].astype(jnp.float32)

    # ---- token-mix PreNormResidual: x + proj(ParallelSum(LN1(x))) ----
    xn = _layernorm(x, ln1g_ref[...], ln1b_ref[...], eps)                # (rb, C)
    # flatten each image to a single lane-dense row of length N (matmul + mask
    # instead of an in-kernel reshape/transpose):
    spread = _mm(xn, gt_ref[...]) * mask_ref[...]                        # (rb, N)
    v = _mm(kp_ref[...], spread)                                         # (bb, N)
    # ParallelSum of the 3 branches + Linear(dim, dim), all folded into wtm:
    u = _mm(v, wtm_ref[...]) + btm_ref[...]                              # (bb, N)
    # unflatten back to per-token rows and add the residual:
    ub = _mm(kpt_ref[...], u) * mask_ref[...]                            # (rb, N)
    y = x + _mm(ub, g_ref[...])                                          # (rb, C)

    # ---- channel-MLP PreNormResidual ----
    yn = _layernorm(y, ln2g_ref[...], ln2b_ref[...], eps)
    hid = _gelu(_mm(yn, w1_ref[...]) + b1_ref[...])                      # (rb, eC)
    out = y + _mm(hid, w2_ref[...]) + b2_ref[...]
    # NOTE: out last dim is C (=32 here) < 128 -> masked stores; acceptable
    # since real ViP has C >= 192 and the inter-layer activation is tiny after
    # fusion (all 512-lane intermediates above never leave VMEM).
    o_ref[...] = out.astype(o_ref.dtype)


def _head_kernel(x_ref, g_ref, b_ref, pool_ref, w_ref, bias_ref, o_ref, *, eps):
    xn = _layernorm(x_ref[...].astype(jnp.float32), g_ref[...], b_ref[...], eps)
    pooled = _mm(pool_ref[...], xn)                    # mean over hw tokens/img
    o_ref[...] = (_mm(pooled, w_ref[...]) + bias_ref[...]).astype(o_ref.dtype)


# ------------------------------ wrappers ------------------------------

def patch_embed(xp, w, b):
    m, k = xp.shape
    _, n = w.shape
    bm = _row_tile(m)
    return pl.pallas_call(
        _linear_kernel,
        out_shape=jax.ShapeDtypeStruct((m, n), xp.dtype),
        grid=(m // bm,),
        in_specs=[pl.BlockSpec((bm, k), lambda i: (i, 0)),
                  pl.BlockSpec((k, n), lambda i: (0, 0)),
                  pl.BlockSpec((1, n), lambda i: (0, 0))],
        out_specs=pl.BlockSpec((bm, n), lambda i: (i, 0)),
        compiler_params=pltpu.CompilerParams(
            dimension_semantics=("parallel",), vmem_limit_bytes=_VMEM_LIMIT),
    )(xp, w, b)


def permutator_layer(x_tok, geo, lw, *, eps=1e-5):
    """x_tok: (b*hw, C) tokens.  One fused kernel for the whole layer."""
    r_total, c = x_tok.shape
    rb, n = geo["mask"].shape
    bb = geo["kpool"].shape[0]
    e_hidden = lw["w1"].shape[1]
    const = lambda i: (0, 0)
    return pl.pallas_call(
        functools.partial(_layer_kernel, eps=eps),
        out_shape=jax.ShapeDtypeStruct((r_total, c), x_tok.dtype),
        grid=(r_total // rb,),
        in_specs=[
            pl.BlockSpec((rb, c), lambda i: (i, 0)),        # x
            pl.BlockSpec((1, c), const),                    # ln1 gamma
            pl.BlockSpec((1, c), const),                    # ln1 beta
            pl.BlockSpec((rb, n), const),                   # mask
            pl.BlockSpec((bb, rb), const),                  # kpool
            pl.BlockSpec((rb, bb), const),                  # kpool^T
            pl.BlockSpec((c, n), const),                    # gt (spread)
            pl.BlockSpec((n, c), const),                    # g  (fold)
            pl.BlockSpec((n, n), const),                    # w_tm (folded ParallelSum+proj)
            pl.BlockSpec((1, n), const),                    # b_tm
            pl.BlockSpec((1, c), const),                    # ln2 gamma
            pl.BlockSpec((1, c), const),                    # ln2 beta
            pl.BlockSpec((c, e_hidden), const),             # w1
            pl.BlockSpec((1, e_hidden), const),             # b1
            pl.BlockSpec((e_hidden, c), const),             # w2
            pl.BlockSpec((1, c), const),                    # b2
        ],
        out_specs=pl.BlockSpec((rb, c), lambda i: (i, 0)),
        compiler_params=pltpu.CompilerParams(
            dimension_semantics=("parallel",), vmem_limit_bytes=_VMEM_LIMIT),
    )(x_tok, lw["ln1_g"], lw["ln1_b"], geo["mask"], geo["kpool"], geo["kpoolT"],
      geo["gt"], geo["g"], lw["w_tm"], lw["b_tm"], lw["ln2_g"], lw["ln2_b"],
      lw["w1"], lw["b1"], lw["w2"], lw["b2"])


def head_forward(x_tok, geo, g, b, w, bias, *, eps=1e-5):
    r_total, c = x_tok.shape
    bbh, rbh = geo["pool"].shape          # rbh = bbh * hw
    nclass = w.shape[1]
    batch = r_total // (rbh // bbh)
    const = lambda i: (0, 0)
    return pl.pallas_call(
        functools.partial(_head_kernel, eps=eps),
        out_shape=jax.ShapeDtypeStruct((batch, nclass), x_tok.dtype),
        grid=(r_total // rbh,),
        in_specs=[pl.BlockSpec((rbh, c), lambda i: (i, 0)),
                  pl.BlockSpec((1, c), const),
                  pl.BlockSpec((1, c), const),
                  pl.BlockSpec((bbh, rbh), const),
                  pl.BlockSpec((c, nclass), const),
                  pl.BlockSpec((1, nclass), const)],
        out_specs=pl.BlockSpec((bbh, nclass), lambda i: (i, 0)),
        compiler_params=pltpu.CompilerParams(
            dimension_semantics=("parallel",), vmem_limit_bytes=_VMEM_LIMIT),
    )(x_tok, g, b, geo["pool"], w, bias)


def vip_forward(x_img, run, geo, *, cfg):
    b, cin, H, W = x_img.shape
    p = cfg["patch_size"]
    h, w = H // p, W // p
    hw = h * w
    # Patch extraction (the only non-Pallas op in the forward): matches the
    # reference rearrange 'b c (h p1) (w p2) -> b h w (p1 p2 c)'.
    xp = x_img.reshape(b, cin, h, p, w, p).transpose(0, 2, 4, 3, 5, 1)
    xp = xp.reshape(b * hw, p * p * cin)

    x = patch_embed(xp, run["patch_w"], run["patch_b"])        # (b*hw, C)
    for lw in run["layers"]:
        x = permutator_layer(x, geo, lw)
    return head_forward(x, geo, run["head_ln_g"], run["head_ln_b"],
                        run["head_w"], run["head_b"])


# ------------------------- init / hoisted weight folding -------------------------

def init_raw_params(key, cfg):
    cin, p = cfg["in_channels"], cfg["patch_size"]
    C, s, e = cfg["d_model"], cfg["segments"], cfg["expansion_factor"]
    hp = cfg["image_size"] // p
    nclass = cfg["num_classes"]
    dt = jnp.float32

    def rnd(k, shape):
        return (0.02 * jax.random.normal(k, shape)).astype(dt)

    keys = iter(jax.random.split(key, 4 + 12 * cfg["depth"]))
    params = dict(
        patch_w=rnd(next(keys), (cin * p * p, C)), patch_b=rnd(next(keys), (C,)),
        head_ln_g=jnp.ones((C,), dt), head_ln_b=jnp.zeros((C,), dt),
        head_w=rnd(next(keys), (C, nclass)), head_b=rnd(next(keys), (nclass,)),
        layers=[])
    for _ in range(cfg["depth"]):
        params["layers"].append(dict(
            ln1_g=jnp.ones((C,), dt), ln1_b=jnp.zeros((C,), dt),
            wh=rnd(next(keys), (hp * s, hp * s)), bh=rnd(next(keys), (hp * s,)),
            ww=rnd(next(keys), (hp * s, hp * s)), bw=rnd(next(keys), (hp * s,)),
            wc=rnd(next(keys), (C, C)), bc=rnd(next(keys), (C,)),
            wp=rnd(next(keys), (C, C)), bp=rnd(next(keys), (C,)),
            ln2_g=jnp.ones((C,), dt), ln2_b=jnp.zeros((C,), dt),
            w1=rnd(next(keys), (C, e * C)), b1=rnd(next(keys), (e * C,)),
            w2=rnd(next(keys), (e * C, C)), b2=rnd(next(keys), (C,))))
    return params


def fold_params(raw, cfg):
    """Hoist ALL weight rearrangement out of the forward pass (review item):
    fold the three ParallelSum branches and the outer projection into one
    (hw*C x hw*C) matrix per layer.  Exact up to fp reassociation."""
    C, s = cfg["d_model"], cfg["segments"]
    cdim = C // s
    h = w = cfg["image_size"] // cfg["patch_size"]
    hw, N = h * w, h * w * C
    f32 = jnp.float32
    eh, ew, ec = jnp.eye(h, dtype=f32), jnp.eye(w, dtype=f32), jnp.eye(cdim, dtype=f32)

    layers = []
    for lp in raw["layers"]:
        wh4 = lp["wh"].reshape(h, s, h, s)          # [h_in, s_in, h_out, s_out]
        ww4 = lp["ww"].reshape(w, s, w, s)
        wc4 = lp["wc"].reshape(cdim, s, cdim, s)
        # M[n_in, n_out] with n = ((h*w_dim + w)*C + c*s + s_i)
        m1 = jnp.einsum('abef,uv,pq->aupbevqf', wh4, ew, ec).reshape(N, N)
        m2 = jnp.einsum('ae,ubvf,pq->aupbevqf', eh, ww4, ec).reshape(N, N)
        m3 = jnp.einsum('ae,uv,pbqf->aupbevqf', eh, ew, wc4).reshape(N, N)
        msum = m1 + m2 + m3                         # ParallelSum = plain sum of branches
        # fold the outer per-token Linear(dim, dim) (== right-mult by kron(I_hw, wp))
        w_tm = jnp.einsum('mtc,cd->mtd', msum.reshape(N, hw, C), lp["wp"]).reshape(N, N)
        bh_tok = jnp.broadcast_to(lp["bh"].reshape(h, 1, 1, s), (h, w, cdim, s)).reshape(hw, C)
        bw_tok = jnp.broadcast_to(lp["bw"].reshape(1, w, 1, s), (h, w, cdim, s)).reshape(hw, C)
        bc_tok = jnp.broadcast_to(lp["bc"].reshape(1, 1, cdim, s), (h, w, cdim, s)).reshape(hw, C)
        b_tm = ((bh_tok + bw_tok + bc_tok) @ lp["wp"] + lp["bp"]).reshape(1, N)
        layers.append(dict(
            ln1_g=lp["ln1_g"].reshape(1, C), ln1_b=lp["ln1_b"].reshape(1, C),
            w_tm=w_tm, b_tm=b_tm,
            ln2_g=lp["ln2_g"].reshape(1, C), ln2_b=lp["ln2_b"].reshape(1, C),
            w1=lp["w1"], b1=lp["b1"].reshape(1, -1),
            w2=lp["w2"], b2=lp["b2"].reshape(1, C)))
    return dict(
        patch_w=raw["patch_w"], patch_b=raw["patch_b"].reshape(1, C),
        head_ln_g=raw["head_ln_g"].reshape(1, C), head_ln_b=raw["head_ln_b"].reshape(1, C),
        head_w=raw["head_w"], head_b=raw["head_b"].reshape(1, -1),
        layers=layers)


def make_geometry(b, hw, C):
    """Block-geometry constants (computed once, shared by all layers)."""
    N = hw * C
    f32 = jnp.float32
    bb = _images_per_block(b, hw)
    rb = bb * hw
    rows = jnp.arange(rb) % hw
    tok_of_lane = jnp.arange(N) // C
    mask = (rows[:, None] == tok_of_lane[None, :]).astype(f32)              # (rb, N)
    img_of_row = jnp.arange(rb) // hw
    kpool = (img_of_row[None, :] == jnp.arange(bb)[:, None]).astype(f32)    # (bb, rb)
    lane_c = jnp.arange(N) % C
    g = (lane_c[:, None] == jnp.arange(C)[None, :]).astype(f32)             # (N, C)
    bbh = _head_batch_tile(b)
    pool = jnp.kron(jnp.eye(bbh, dtype=f32),
                    jnp.full((1, hw), 1.0 / hw, dtype=f32))                 # (bbh, bbh*hw)
    return dict(mask=mask, kpool=kpool, kpoolT=kpool.T, g=g, gt=g.T, pool=pool)


# --------------------- pure-JAX (unfused) reference ---------------------

def _ln_ref(x, g, b, eps=1e-5):
    mu = x.mean(-1, keepdims=True)
    var = ((x - mu) ** 2).mean(-1, keepdims=True)
    return (x - mu) * jax.lax.rsqrt(var + eps) * g + b


def reference_forward(x_img, raw, cfg):
    b, cin, H, W = x_img.shape
    p, C, s = cfg["patch_size"], cfg["d_model"], cfg["segments"]
    cdim = C // s
    h, w = H // p, W // p
    xp = x_img.reshape(b, cin, h, p, w, p).transpose(0, 2, 4, 3, 5, 1)
    xp = xp.reshape(b, h, w, cin * p * p)
    x = xp @ raw["patch_w"] + raw["patch_b"]
    for lp in raw["layers"]:
        xn = _ln_ref(x, lp["ln1_g"], lp["ln1_b"])
        x5 = xn.reshape(b, h, w, cdim, s)
        t = x5.transpose(0, 2, 3, 1, 4).reshape(b, w, cdim, h * s)
        t = t @ lp["wh"] + lp["bh"]
        x1 = t.reshape(b, w, cdim, h, s).transpose(0, 3, 1, 2, 4).reshape(b, h, w, C)
        t = x5.transpose(0, 1, 3, 2, 4).reshape(b, h, cdim, w * s)
        t = t @ lp["ww"] + lp["bw"]
        x2 = t.reshape(b, h, cdim, w, s).transpose(0, 1, 3, 2, 4).reshape(b, h, w, C)
        x3 = xn @ lp["wc"] + lp["bc"]
        x = x + ((x1 + x2 + x3) @ lp["wp"] + lp["bp"])       # ParallelSum -> proj -> residual
        yn = _ln_ref(x, lp["ln2_g"], lp["ln2_b"])
        x = x + (_gelu(yn @ lp["w1"] + lp["b1"]) @ lp["w2"] + lp["b2"])
    xn = _ln_ref(x, raw["head_ln_g"], raw["head_ln_b"])
    return xn.mean(axis=(1, 2)) @ raw["head_w"] + raw["head_b"]


# --------------------------------- main ---------------------------------

if __name__ == "__main__":
    cfg = dict(
        image_size=16,
        patch_size=4,
        in_channels=3,
        num_classes=8,
        d_model=32,
        depth=2,
        segments=4,
        expansion_factor=4,
    )
    assert cfg["image_size"] % cfg["patch_size"] == 0
    assert cfg["d_model"] % cfg["segments"] == 0

    key = jax.random.PRNGKey(0)
    kx, kp = jax.random.split(key)
    x = jax.random.normal(
        kx, (2, cfg["in_channels"], cfg["image_size"], cfg["image_size"]),
        dtype=jnp.float32)                                   # NCHW, like PyTorch

    raw = init_raw_params(kp, cfg)
    run = fold_params(raw, cfg)                              # hoisted once
    hpatch = cfg["image_size"] // cfg["patch_size"]
    geo = make_geometry(x.shape[0], hpatch * hpatch, cfg["d_model"])

    fwd = jax.jit(functools.partial(vip_forward, cfg=cfg))
    out = jax.block_until_ready(fwd(x, run, geo))

    assert out.shape == (2, cfg["num_classes"]), out.shape
    assert bool(jnp.all(jnp.isfinite(out)))
    ref = reference_forward(x, raw, cfg)
    assert float(jnp.max(jnp.abs(out - ref))) < 1e-3
    print("KERNEL_OK")
</pallas_src>

<mosaic_0001>
module attributes {stable_mosaic.version = 11 : i64} {
  func.func @_linear_kernel(%arg0: i32, %arg1: memref<16x48xf32, #tpu.memory_space<vmem>>, %arg2: memref<48x32xf32, #tpu.memory_space<vmem>>, %arg3: memref<1x32xf32, #tpu.memory_space<vmem>>, %arg4: memref<16x32xf32, #tpu.memory_space<vmem>>) attributes {dimension_semantics = [#tpu.dimension_semantics<parallel>], iteration_bounds = array<i64: 2>, scalar_prefetch = 0 : i64, scratch_operands = 0 : i64, tpu.core_type = #tpu.core_type<tc>, window_params = [{transform_indices = @transform_0, window_bounds = array<i64: 16, 48>}, {pipeline_mode = #tpu.pipeline_mode<synchronous>, transform_indices = @transform_1, window_bounds = array<i64: 48, 32>}, {pipeline_mode = #tpu.pipeline_mode<synchronous>, transform_indices = @transform_2, window_bounds = array<i64: 1, 32>}, {transform_indices = @transform_3, window_bounds = array<i64: 16, 32>}]} {
    %c0 = arith.constant 0 : index
    %c0_0 = arith.constant 0 : index
    %0 = vector.load %arg1[%c0, %c0_0] : memref<16x48xf32, #tpu.memory_space<vmem>>, vector<16x48xf32>
    %c0_1 = arith.constant 0 : index
    %c0_2 = arith.constant 0 : index
    %1 = vector.load %arg2[%c0_1, %c0_2] : memref<48x32xf32, #tpu.memory_space<vmem>>, vector<48x32xf32>
    %cst = arith.constant dense<0.000000e+00> : vector<16x32xf32>
    %2 = tpu.matmul %0, %1, %cst {dimension_numbers = #tpu.dot_dimension_numbers<[1], [0], [0], [1], [0, 0, 1, 1], [], []>} : vector<16x48xf32>, vector<48x32xf32>, vector<16x32xf32> -> vector<16x32xf32>
    %c0_3 = arith.constant 0 : index
    %c0_4 = arith.constant 0 : index
    %3 = vector.load %arg3[%c0_3, %c0_4] : memref<1x32xf32, #tpu.memory_space<vmem>>, vector<1x32xf32>
    %4 = vector.broadcast %3 : vector<1x32xf32> to vector<16x32xf32>
    %5 = arith.addf %2, %4 : vector<16x32xf32>
    %c0_5 = arith.constant 0 : index
    %c0_6 = arith.constant 0 : index
    %6 = vector.load %arg4[%c0_5, %c0_6] : memref<16x32xf32, #tpu.memory_space<vmem>>, vector<16x32xf32>
    tpu.vector_store %arg4[%c0_5, %c0_6], %5 {strides = array<i32>} : memref<16x32xf32, #tpu.memory_space<vmem>>, vector<16x32xf32>,
    return
  }
  func.func @transform_0(%arg0: i32) -> (i32, i32) {
    %c0_i32 = arith.constant 0 : i32
    %c0_i32_0 = arith.constant 0 : i32
    return %arg0, %c0_i32 : i32, i32
  }
  func.func @transform_1(%arg0: i32) -> (i32, i32) {
    %c0_i32 = arith.constant 0 : i32
    %c0_i32_0 = arith.constant 0 : i32
    %c0_i32_1 = arith.constant 0 : i32
    return %c0_i32, %c0_i32_0 : i32, i32
  }
  func.func @transform_2(%arg0: i32) -> (i32, i32) {
    %c0_i32 = arith.constant 0 : i32
    %c0_i32_0 = arith.constant 0 : i32
    %c0_i32_1 = arith.constant 0 : i32
    return %c0_i32, %c0_i32_0 : i32, i32
  }
  func.func @transform_3(%arg0: i32) -> (i32, i32) {
    %c0_i32 = arith.constant 0 : i32
    %c0_i32_0 = arith.constant 0 : i32
    return %arg0, %c0_i32 : i32, i32
  }
}

module attributes {stable_mosaic.version = 11 : i64} {
  func.func @_layer_kernel(%arg0: i32, %arg1: memref<16x32xf32, #tpu.memory_space<vmem>>, %arg2: memref<1x32xf32, #tpu.memory_space<vmem>>, %arg3: memref<1x32xf32, #tpu.memory_space<vmem>>, %arg4: memref<16x512xf32, #tpu.memory_space<vmem>>, %arg5: memref<1x16xf32, #tpu.memory_space<vmem>>, %arg6: memref<16x1xf32, #tpu.memory_space<vmem>>, %arg7: memref<32x512xf32, #tpu.memory_space<vmem>>, %arg8: memref<512x32xf32, #tpu.memory_space<vmem>>, %arg9: memref<512x512xf32, #tpu.memory_space<vmem>>, %arg10: memref<1x512xf32, #tpu.memory_space<vmem>>, %arg11: memref<1x32xf32, #tpu.memory_space<vmem>>, %arg12: memref<1x32xf32, #tpu.memory_space<vmem>>, %arg13: memref<32x128xf32, #tpu.memory_space<vmem>>, %arg14: memref<1x128xf32, #tpu.memory_space<vmem>>, %arg15: memref<128x32xf32, #tpu.memory_space<vmem>>, %arg16: memref<1x32xf32, #tpu.memory_space<vmem>>, %arg17: memref<16x32xf32, #tpu.memory_space<vmem>>) attributes {dimension_semantics = [#tpu.dimension_semantics<parallel>], iteration_bounds = array<i64: 2>, scalar_prefetch = 0 : i64, scratch_operands = 0 : i64, tpu.core_type = #tpu.core_type<tc>, window_params = [{transform_indices = @transform_0, window_bounds = array<i64: 16, 32>}, {pipeline_mode = #tpu.pipeline_mode<synchronous>, transform_indices = @transform_1, window_bounds = array<i64: 1, 32>}, {pipeline_mode = #tpu.pipeline_mode<synchronous>, transform_indices = @transform_2, window_bounds = array<i64: 1, 32>}, {pipeline_mode = #tpu.pipeline_mode<synchronous>, transform_indices = @transform_3, window_bounds = array<i64: 16, 512>}, {pipeline_mode = #tpu.pipeline_mode<synchronous>, transform_indices = @transform_4, window_bounds = array<i64: 1, 16>}, {pipeline_mode = #tpu.pipeline_mode<synchronous>, transform_indices = @transform_5, window_bounds = array<i64: 16, 1>}, {pipeline_mode = #tpu.pipeline_mode<synchronous>, transform_indices = @transform_6, window_bounds = array<i64: 32, 512>}, {pipeline_mode = #tpu.pipeline_mode<synchronous>, transform_indices = @transform_7, window_bounds = array<i64: 512, 32>}, {pipeline_mode = #tpu.pipeline_mode<synchronous>, transform_indices = @transform_8, window_bounds = array<i64: 512, 512>}, {pipeline_mode = #tpu.pipeline_mode<synchronous>, transform_indices = @transform_9, window_bounds = array<i64: 1, 512>}, {pipeline_mode = #tpu.pipeline_mode<synchronous>, transform_indices = @transform_10, window_bounds = array<i64: 1, 32>}, {pipeline_mode = #tpu.pipeline_mode<synchronous>, transform_indices = @transform_11, window_bounds = array<i64: 1, 32>}, {pipeline_mode = #tpu.pipeline_mode<synchronous>, transform_indices = @transform_12, window_bounds = array<i64: 32, 128>}, {pipeline_mode = #tpu.pipeline_mode<synchronous>, transform_indices = @transform_13, window_bounds = array<i64: 1, 128>}, {pipeline_mode = #tpu.pipeline_mode<synchronous>, transform_indices = @transform_14, window_bounds = array<i64: 128, 32>}, {pipeline_mode = #tpu.pipeline_mode<synchronous>, transform_indices = @transform_15, window_bounds = array<i64: 1, 32>}, {transform_indices = @transform_16, window_bounds = array<i64: 16, 32>}]} {
    %c0 = arith.constant 0 : index
    %c0_0 = arith.constant 0 : index
    %0 = vector.load %arg1[%c0, %c0_0] : memref<16x32xf32, #tpu.memory_space<vmem>>, vector<16x32xf32>
    %c0_1 = arith.constant 0 : index
    %c0_2 = arith.constant 0 : index
    %1 = vector.load %arg2[%c0_1, %c0_2] : memref<1x32xf32, #tpu.memory_space<vmem>>, vector<1x32xf32>
    %c0_3 = arith.constant 0 : index
    %c0_4 = arith.constant 0 : index
    %2 = vector.load %arg3[%c0_3, %c0_4] : memref<1x32xf32, #tpu.memory_space<vmem>>, vector<1x32xf32>
    %cst = arith.constant dense<0.000000e+00> : vector<16xf32>
    %3 = vector.multi_reduction <add>, %0, %cst [1] : vector<16x32xf32> to vector<16xf32>
    %4 = vector.shape_cast %3 : vector<16xf32> to vector<16x1xf32>
    %cst_5 = arith.constant 3.200000e+01 : f32
    %5 = vector.broadcast %cst_5 : f32 to vector<16x1xf32>
    %6 = arith.divf %4, %5 : vector<16x1xf32>
    %7 = vector.broadcast %6 : vector<16x1xf32> to vector<16x32xf32>
    %8 = arith.subf %0, %7 : vector<16x32xf32>
    %9 = arith.mulf %8, %8 : vector<16x32xf32>
    %cst_6 = arith.constant dense<0.000000e+00> : vector<16xf32>
    %10 = vector.multi_reduction <add>, %9, %cst_6 [1] : vector<16x32xf32> to vector<16xf32>
    %11 = vector.shape_cast %10 : vector<16xf32> to vector<16x1xf32>
    %cst_7 = arith.constant 3.200000e+01 : f32
    %12 = vector.broadcast %cst_7 : f32 to vector<16x1xf32>
    %13 = arith.divf %11, %12 : vector<16x1xf32>
    %cst_8 = arith.constant 9.99999974E-6 : f32
    %14 = vector.broadcast %cst_8 : f32 to vector<16x1xf32>
    %15 = arith.addf %13, %14 : vector<16x1xf32>
    %16 = math.rsqrt %15 : vector<16x1xf32>
    %17 = vector.broadcast %16 : vector<16x1xf32> to vector<16x32xf32>
    %18 = arith.mulf %8, %17 : vector<16x32xf32>
    %19 = vector.broadcast %1 : vector<1x32xf32> to vector<16x32xf32>
    %20 = arith.mulf %18, %19 : vector<16x32xf32>
    %21 = vector.broadcast %2 : vector<1x32xf32> to vector<16x32xf32>
    %22 = arith.addf %20, %21 : vector<16x32xf32>
    %c0_9 = arith.constant 0 : index
    %c0_10 = arith.constant 0 : index
    %23 = vector.load %arg7[%c0_9, %c0_10] : memref<32x512xf32, #tpu.memory_space<vmem>>, vector<32x512xf32>
    %cst_11 = arith.constant dense<0.000000e+00> : vector<16x512xf32>
    %24 = tpu.matmul %22, %23, %cst_11 {dimension_numbers = #tpu.dot_dimension_numbers<[1], [0], [0], [1], [0, 0, 1, 1], [], []>} : vector<16x32xf32>, vector<32x512xf32>, vector<16x512xf32> -> vector<16x512xf32>
    %c0_12 = arith.constant 0 : index
    %c0_13 = arith.constant 0 : index
    %25 = vector.load %arg4[%c0_12, %c0_13] : memref<16x512xf32, #tpu.memory_space<vmem>>, vector<16x512xf32>
    %26 = arith.mulf %24, %25 : vector<16x512xf32>
    %c0_14 = arith.constant 0 : index
    %c0_15 = arith.constant 0 : index
    %27 = vector.load %arg5[%c0_14, %c0_15] : memref<1x16xf32, #tpu.memory_space<vmem>>, vector<1x16xf32>
    %cst_16 = arith.constant dense<0.000000e+00> : vector<1x512xf32>
    %28 = tpu.matmul %27, %26, %cst_16 {dimension_numbers = #tpu.dot_dimension_numbers<[1], [0], [0], [1], [0, 0, 1, 1], [], []>} : vector<1x16xf32>, vector<16x512xf32>, vector<1x512xf32> -> vector<1x512xf32>
    %c0_17 = arith.constant 0 : index
    %c0_18 = arith.constant 0 : index
    %29 = vector.load %arg9[%c0_17, %c0_18] : memref<512x512xf32, #tpu.memory_space<vmem>>, vector<512x512xf32>
    %cst_19 = arith.constant dense<0.000000e+00> : vector<1x512xf32>
    %30 = tpu.matmul %28, %29, %cst_19 {dimension_numbers = #tpu.dot_dimension_numbers<[1], [0], [0], [1], [0, 0, 1, 1], [], []>} : vector<1x512xf32>, vector<512x512xf32>, vector<1x512xf32> -> vector<1x512xf32>
    %c0_20 = arith.constant 0 : index
    %c0_21 = arith.constant 0 : index
    %31 = vector.load %arg10[%c0_20, %c0_21] : memref<1x512xf32, #tpu.memory_space<vmem>>, vector<1x512xf32>
    %32 = arith.addf %30, %31 : vector<1x512xf32>
    %c0_22 = arith.constant 0 : index
    %c0_23 = arith.constant 0 : index
    %33 = vector.load %arg6[%c0_22, %c0_23] : memref<16x1xf32, #tpu.memory_space<vmem>>, vector<16x1xf32>
    %cst_24 = arith.constant dense<0.000000e+00> : vector<16x512xf32>
    %34 = tpu.matmul %33, %32, %cst_24 {dimension_numbers = #tpu.dot_dimension_numbers<[1], [0], [0], [1], [0, 0, 1, 1], [], []>} : vector<16x1xf32>, vector<1x512xf32>, vector<16x512xf32> -> vector<16x512xf32>
    %c0_25 = arith.constant 0 : index
    %c0_26 = arith.constant 0 : index
    %35 = vector.load %arg4[%c0_25, %c0_26] : memref<16x512xf32, #tpu.memory_space<vmem>>, vector<16x512xf32>
    %36 = arith.mulf %34, %35 : vector<16x512xf32>
    %c0_27 = arith.constant 0 : index
    %c0_28 = arith.constant 0 : index
    %37 = vector.load %arg8[%c0_27, %c0_28] : memref<512x32xf32, #tpu.memory_space<vmem>>, vector<512x32xf32>
    %cst_29 = arith.constant dense<0.000000e+00> : vector<16x32xf32>
    %38 = tpu.matmul %36, %37, %cst_29 {dimension_numbers = #tpu.dot_dimension_numbers<[1], [0], [0], [1], [0, 0, 1, 1], [], []>} : vector<16x512xf32>, vector<512x32xf32>, vector<16x32xf32> -> vector<16x32xf32>
    %39 = arith.addf %0, %38 : vector<16x32xf32>
    %c0_30 = arith.constant 0 : index
    %c0_31 = arith.constant 0 : index
    %40 = vector.load %arg11[%c0_30, %c0_31] : memref<1x32xf32, #tpu.memory_space<vmem>>, vector<1x32xf32>
    %c0_32 = arith.constant 0 : index
    %c0_33 = arith.constant 0 : index
    %41 = vector.load %arg12[%c0_32, %c0_33] : memref<1x32xf32, #tpu.memory_space<vmem>>, vector<1x32xf32>
    %cst_34 = arith.constant dense<0.000000e+00> : vector<16xf32>
    %42 = vector.multi_reduction <add>, %39, %cst_34 [1] : vector<16x32xf32> to vector<16xf32>
    %43 = vector.shape_cast %42 : vector<16xf32> to vector<16x1xf32>
    %cst_35 = arith.constant 3.200000e+01 : f32
    %44 = vector.broadcast %cst_35 : f32 to vector<16x1xf32>
    %45 = arith.divf %43, %44 : vector<16x1xf32>
    %46 = vector.broadcast %45 : vector<16x1xf32> to vector<16x32xf32>
    %47 = arith.subf %39, %46 : vector<16x32xf32>
    %48 = arith.mulf %47, %47 : vector<16x32xf32>
    %cst_36 = arith.constant dense<0.000000e+00> : vector<16xf32>
    %49 = vector.multi_reduction <add>, %48, %cst_36 [1] : vector<16x32xf32> to vector<16xf32>
    %50 = vector.shape_cast %49 : vector<16xf32> to vector<16x1xf32>
    %cst_37 = arith.constant 3.200000e+01 : f32
    %51 = vector.broadcast %cst_37 : f32 to vector<16x1xf32>
    %52 = arith.divf %50, %51 : vector<16x1xf32>
    %cst_38 = arith.constant 9.99999974E-6 : f32
    %53 = vector.broadcast %cst_38 : f32 to vector<16x1xf32>
    %54 = arith.addf %52, %53 : vector<16x1xf32>
    %55 = math.rsqrt %54 : vector<16x1xf32>
    %56 = vector.broadcast %55 : vector<16x1xf32> to vector<16x32xf32>
    %57 = arith.mulf %47, %56 : vector<16x32xf32>
    %58 = vector.broadcast %40 : vector<1x32xf32> to vector<16x32xf32>
    %59 = arith.mulf %57, %58 : vector<16x32xf32>
    %60 = vector.broadcast %41 : vector<1x32xf32> to vector<16x32xf32>
    %61 = arith.addf %59, %60 : vector<16x32xf32>
    %c0_39 = arith.constant 0 : index
    %c0_40 = arith.constant 0 : index
    %62 = vector.load %arg13[%c0_39, %c0_40] : memref<32x128xf32, #tpu.memory_space<vmem>>, vector<32x128xf32>
    %cst_41 = arith.constant dense<0.000000e+00> : vector<16x128xf32>
    %63 = tpu.matmul %61, %62, %cst_41 {dimension_numbers = #tpu.dot_dimension_numbers<[1], [0], [0], [1], [0, 0, 1, 1], [], []>} : vector<16x32xf32>, vector<32x128xf32>, vector<16x128xf32> -> vector<16x128xf32>
    %c0_42 = arith.constant 0 : index
    %c0_43 = arith.constant 0 : index
    %64 = vector.load %arg14[%c0_42, %c0_43] : memref<1x128xf32, #tpu.memory_space<vmem>>, vector<1x128xf32>
    %65 = vector.broadcast %64 : vector<1x128xf32> to vector<16x128xf32>
    %66 = arith.addf %63, %65 : vector<16x128xf32>
    %cst_44 = arith.constant 5.000000e-01 : f32
    %67 = vector.broadcast %cst_44 : f32 to vector<16x128xf32>
    %68 = arith.mulf %67, %66 : vector<16x128xf32>
    %cst_45 = arith.constant 4.471500e-02 : f32
    %69 = vector.broadcast %cst_45 : f32 to vector<16x128xf32>
    %70 = arith.mulf %69, %66 : vector<16x128xf32>
    %71 = arith.mulf %70, %66 : vector<16x128xf32>
    %72 = arith.mulf %71, %66 : vector<16x128xf32>
    %73 = arith.addf %66, %72 : vector<16x128xf32>
    %cst_46 = arith.constant 0.797884583 : f32
    %74 = vector.broadcast %cst_46 : f32 to vector<16x128xf32>
    %75 = arith.mulf %74, %73 : vector<16x128xf32>
    %76 = math.tanh %75 : vector<16x128xf32>
    %cst_47 = arith.constant 1.000000e+00 : f32
    %77 = vector.broadcast %cst_47 : f32 to vector<16x128xf32>
    %78 = arith.addf %77, %76 : vector<16x128xf32>
    %79 = arith.mulf %68, %78 : vector<16x128xf32>
    %c0_48 = arith.constant 0 : index
    %c0_49 = arith.constant 0 : index
    %80 = vector.load %arg15[%c0_48, %c0_49] : memref<128x32xf32, #tpu.memory_space<vmem>>, vector<128x32xf32>
    %cst_50 = arith.constant dense<0.000000e+00> : vector<16x32xf32>
    %81 = tpu.matmul %79, %80, %cst_50 {dimension_numbers = #tpu.dot_dimension_numbers<[1], [0], [0], [1], [0, 0, 1, 1], [], []>} : vector<16x128xf32>, vector<128x32xf32>, vector<16x32xf32> -> vector<16x32xf32>
    %82 = arith.addf %39, %81 : vector<16x32xf32>
    %c0_51 = arith.constant 0 : index
    %c0_52 = arith.constant 0 : index
    %83 = vector.load %arg16[%c0_51, %c0_52] : memref<1x32xf32, #tpu.memory_space<vmem>>, vector<1x32xf32>
    %84 = vector.broadcast %83 : vector<1x32xf32> to vector<16x32xf32>
    %85 = arith.addf %82, %84 : vector<16x32xf32>
    %c0_53 = arith.constant 0 : index
    %c0_54 = arith.constant 0 : index
    %86 = vector.load %arg17[%c0_53, %c0_54] : memref<16x32xf32, #tpu.memory_space<vmem>>, vector<16x32xf32>
    tpu.vector_store %arg17[%c0_53, %c0_54], %85 {strides = array<i32>} : memref<16x32xf32, #tpu.memory_space<vmem>>, vector<16x32xf32>,
    return
  }
  func.func @transform_0(%arg0: i32) -> (i32, i32) {
    %c0_i32 = arith.constant 0 : i32
    %c0_i32_0 = arith.constant 0 : i32
    return %arg0, %c0_i32 : i32, i32
  }
  func.func @transform_1(%arg0: i32) -> (i32, i32) {
    %c0_i32 = arith.constant 0 : i32
    %c0_i32_0 = arith.constant 0 : i32
    %c0_i32_1 = arith.constant 0 : i32
    return %c0_i32, %c0_i32_0 : i32, i32
  }
  func.func @transform_2(%arg0: i32) -> (i32, i32) {
    %c0_i32 = arith.constant 0 : i32
    %c0_i32_0 = arith.constant 0 : i32
    %c0_i32_1 = arith.constant 0 : i32
    return %c0_i32, %c0_i32_0 : i32, i32
  }
  func.func @transform_3(%arg0: i32) -> (i32, i32) {
    %c0_i32 = arith.constant 0 : i32
    %c0_i32_0 = arith.constant 0 : i32
    %c0_i32_1 = arith.constant 0 : i32
    return %c0_i32, %c0_i32_0 : i32, i32
  }
  func.func @transform_4(%arg0: i32) -> (i32, i32) {
    %c0_i32 = arith.constant 0 : i32
    %c0_i32_0 = arith.constant 0 : i32
    %c0_i32_1 = arith.constant 0 : i32
    return %c0_i32, %c0_i32_0 : i32, i32
  }
  func.func @transform_5(%arg0: i32) -> (i32, i32) {
    %c0_i32 = arith.constant 0 : i32
    %c0_i32_0 = arith.constant 0 : i32
    %c0_i32_1 = arith.constant 0 : i32
    return %c0_i32, %c0_i32_0 : i32, i32
  }
  func.func @transform_6(%arg0: i32) -> (i32, i32) {
    %c0_i32 = arith.constant 0 : i32
    %c0_i32_0 = arith.constant 0 : i32
    %c0_i32_1 = arith.constant 0 : i32
    return %c0_i32, %c0_i32_0 : i32, i32
  }
  func.func @transform_7(%arg0: i32) -> (i32, i32) {
    %c0_i32 = arith.constant 0 : i32
    %c0_i32_0 = arith.constant 0 : i32
    %c0_i32_1 = arith.constant 0 : i32
    return %c0_i32, %c0_i32_0 : i32, i32
  }
  func.func @transform_8(%arg0: i32) -> (i32, i32) {
    %c0_i32 = arith.constant 0 : i32
    %c0_i32_0 = arith.constant 0 : i32
    %c0_i32_1 = arith.constant 0 : i32
    return %c0_i32, %c0_i32_0 : i32, i32
  }
  func.func @transform_9(%arg0: i32) -> (i32, i32) {
    %c0_i32 = arith.constant 0 : i32
    %c0_i32_0 = arith.constant 0 : i32
    %c0_i32_1 = arith.constant 0 : i32
    return %c0_i32, %c0_i32_0 : i32, i32
  }
  func.func @transform_10(%arg0: i32) -> (i32, i32) {
    %c0_i32 = arith.constant 0 : i32
    %c0_i32_0 = arith.constant 0 : i32
    %c0_i32_1 = arith.constant 0 : i32
    return %c0_i32, %c0_i32_0 : i32, i32
  }
  func.func @transform_11(%arg0: i32) -> (i32, i32) {
    %c0_i32 = arith.constant 0 : i32
    %c0_i32_0 = arith.constant 0 : i32
    %c0_i32_1 = arith.constant 0 : i32
    return %c0_i32, %c0_i32_0 : i32, i32
  }
  func.func @transform_12(%arg0: i32) -> (i32, i32) {
    %c0_i32 = arith.constant 0 : i32
    %c0_i32_0 = arith.constant 0 : i32
    %c0_i32_1 = arith.constant 0 : i32
    return %c0_i32, %c0_i32_0 : i32, i32
  }
  func.func @transform_13(%arg0: i32) -> (i32, i32) {
    %c0_i32 = arith.constant 0 : i32
    %c0_i32_0 = arith.constant 0 : i32
    %c0_i32_1 = arith.constant 0 : i32
    return %c0_i32, %c0_i32_0 : i32, i32
  }
  func.func @transform_14(%arg0: i32) -> (i32, i32) {
    %c0_i32 = arith.constant 0 : i32
    %c0_i32_0 = arith.constant 0 : i32
    %c0_i32_1 = arith.constant 0 : i32
    return %c0_i32, %c0_i32_0 : i32, i32
  }
  func.func @transform_15(%arg0: i32) -> (i32, i32) {
    %c0_i32 = arith.constant 0 : i32
    %c0_i32_0 = arith.constant 0 : i32
    %c0_i32_1 = arith.constant 0 : i32
    return %c0_i32, %c0_i32_0 : i32, i32
  }
  func.func @transform_16(%arg0: i32) -> (i32, i32) {
    %c0_i32 = arith.constant 0 : i32
    %c0_i32_0 = arith.constant 0 : i32
    return %arg0, %c0_i32 : i32, i32
  }
}

module attributes {stable_mosaic.version = 11 : i64} {
  func.func @_head_kernel(%arg0: i32, %arg1: memref<32x32xf32, #tpu.memory_space<vmem>>, %arg2: memref<1x32xf32, #tpu.memory_space<vmem>>, %arg3: memref<1x32xf32, #tpu.memory_space<vmem>>, %arg4: memref<2x32xf32, #tpu.memory_space<vmem>>, %arg5: memref<32x8xf32, #tpu.memory_space<vmem>>, %arg6: memref<1x8xf32, #tpu.memory_space<vmem>>, %arg7: memref<2x8xf32, #tpu.memory_space<vmem>>) attributes {dimension_semantics = [#tpu.dimension_semantics<parallel>], iteration_bounds = array<i64: 1>, scalar_prefetch = 0 : i64, scratch_operands = 0 : i64, tpu.core_type = #tpu.core_type<tc>, window_params = [{transform_indices = @transform_0, window_bounds = array<i64: 32, 32>}, {pipeline_mode = #tpu.pipeline_mode<synchronous>, transform_indices = @transform_1, window_bounds = array<i64: 1, 32>}, {pipeline_mode = #tpu.pipeline_mode<synchronous>, transform_indices = @transform_2, window_bounds = array<i64: 1, 32>}, {pipeline_mode = #tpu.pipeline_mode<synchronous>, transform_indices = @transform_3, window_bounds = array<i64: 2, 32>}, {pipeline_mode = #tpu.pipeline_mode<synchronous>, transform_indices = @transform_4, window_bounds = array<i64: 32, 8>}, {pipeline_mode = #tpu.pipeline_mode<synchronous>, transform_indices = @transform_5, window_bounds = array<i64: 1, 8>}, {transform_indices = @transform_6, window_bounds = array<i64: 2, 8>}]} {
    %c0 = arith.constant 0 : index
    %c0_0 = arith.constant 0 : index
    %0 = vector.load %arg1[%c0, %c0_0] : memref<32x32xf32, #tpu.memory_space<vmem>>, vector<32x32xf32>
    %c0_1 = arith.constant 0 : index
    %c0_2 = arith.constant 0 : index
    %1 = vector.load %arg2[%c0_1, %c0_2] : memref<1x32xf32, #tpu.memory_space<vmem>>, vector<1x32xf32>
    %c0_3 = arith.constant 0 : index
    %c0_4 = arith.constant 0 : index
    %2 = vector.load %arg3[%c0_3, %c0_4] : memref<1x32xf32, #tpu.memory_space<vmem>>, vector<1x32xf32>
    %cst = arith.constant dense<0.000000e+00> : vector<32xf32>
    %3 = vector.multi_reduction <add>, %0, %cst [1] : vector<32x32xf32> to vector<32xf32>
    %4 = vector.shape_cast %3 : vector<32xf32> to vector<32x1xf32>
    %cst_5 = arith.constant 3.200000e+01 : f32
    %5 = vector.broadcast %cst_5 : f32 to vector<32x1xf32>
    %6 = arith.divf %4, %5 : vector<32x1xf32>
    %7 = vector.broadcast %6 : vector<32x1xf32> to vector<32x32xf32>
    %8 = arith.subf %0, %7 : vector<32x32xf32>
    %9 = arith.mulf %8, %8 : vector<32x32xf32>
    %cst_6 = arith.constant dense<0.000000e+00> : vector<32xf32>
    %10 = vector.multi_reduction <add>, %9, %cst_6 [1] : vector<32x32xf32> to vector<32xf32>
    %11 = vector.shape_cast %10 : vector<32xf32> to vector<32x1xf32>
    %cst_7 = arith.constant 3.200000e+01 : f32
    %12 = vector.broadcast %cst_7 : f32 to vector<32x1xf32>
    %13 = arith.divf %11, %12 : vector<32x1xf32>
    %cst_8 = arith.constant 9.99999974E-6 : f32
    %14 = vector.broadcast %cst_8 : f32 to vector<32x1xf32>
    %15 = arith.addf %13, %14 : vector<32x1xf32>
    %16 = math.rsqrt %15 : vector<32x1xf32>
    %17 = vector.broadcast %16 : vector<32x1xf32> to vector<32x32xf32>
    %18 = arith.mulf %8, %17 : vector<32x32xf32>
    %19 = vector.broadcast %1 : vector<1x32xf32> to vector<32x32xf32>
    %20 = arith.mulf %18, %19 : vector<32x32xf32>
    %21 = vector.broadcast %2 : vector<1x32xf32> to vector<32x32xf32>
    %22 = arith.addf %20, %21 : vector<32x32xf32>
    %c0_9 = arith.constant 0 : index
    %c0_10 = arith.constant 0 : index
    %23 = vector.load %arg4[%c0_9, %c0_10] : memref<2x32xf32, #tpu.memory_space<vmem>>, vector<2x32xf32>
    %cst_11 = arith.constant dense<0.000000e+00> : vector<2x32xf32>
    %24 = tpu.matmul %23, %22, %cst_11 {dimension_numbers = #tpu.dot_dimension_numbers<[1], [0], [0], [1], [0, 0, 1, 1], [], []>} : vector<2x32xf32>, vector<32x32xf32>, vector<2x32xf32> -> vector<2x32xf32>
    %c0_12 = arith.constant 0 : index
    %c0_13 = arith.constant 0 : index
    %25 = vector.load %arg5[%c0_12, %c0_13] : memref<32x8xf32, #tpu.memory_space<vmem>>, vector<32x8xf32>
    %cst_14 = arith.constant dense<0.000000e+00> : vector<2x8xf32>
    %26 = tpu.matmul %24, %25, %cst_14 {dimension_numbers = #tpu.dot_dimension_numbers<[1], [0], [0], [1], [0, 0, 1, 1], [], []>} : vector<2x32xf32>, vector<32x8xf32>, vector<2x8xf32> -> vector<2x8xf32>
    %c0_15 = arith.constant 0 : index
    %c0_16 = arith.constant 0 : index
    %27 = vector.load %arg6[%c0_15, %c0_16] : memref<1x8xf32, #tpu.memory_space<vmem>>, vector<1x8xf32>
    %28 = vector.broadcast %27 : vector<1x8xf32> to vector<2x8xf32>
    %29 = arith.addf %26, %28 : vector<2x8xf32>
    %c0_17 = arith.constant 0 : index
    %c0_18 = arith.constant 0 : index
    %30 = vector.load %arg7[%c0_17, %c0_18] : memref<2x8xf32, #tpu.memory_space<vmem>>, vector<2x8xf32>
    tpu.vector_store %arg7[%c0_17, %c0_18], %29 {strides = array<i32>} : memref<2x8xf32, #tpu.memory_space<vmem>>, vector<2x8xf32>,
    return
  }
  func.func @transform_0(%arg0: i32) -> (i32, i32) {
    %c0_i32 = arith.constant 0 : i32
    %c0_i32_0 = arith.constant 0 : i32
    return %arg0, %c0_i32 : i32, i32
  }
  func.func @transform_1(%arg0: i32) -> (i32, i32) {
    %c0_i32 = arith.constant 0 : i32
    %c0_i32_0 = arith.constant 0 : i32
    %c0_i32_1 = arith.constant 0 : i32
    return %c0_i32, %c0_i32_0 : i32, i32
  }
  func.func @transform_2(%arg0: i32) -> (i32, i32) {
    %c0_i32 = arith.constant 0 : i32
    %c0_i32_0 = arith.constant 0 : i32
    %c0_i32_1 = arith.constant 0 : i32
    return %c0_i32, %c0_i32_0 : i32, i32
  }
  func.func @transform_3(%arg0: i32) -> (i32, i32) {
    %c0_i32 = arith.constant 0 : i32
    %c0_i32_0 = arith.constant 0 : i32
    %c0_i32_1 = arith.constant 0 : i32
    return %c0_i32, %c0_i32_0 : i32, i32
  }
  func.func @transform_4(%arg0: i32) -> (i32, i32) {
    %c0_i32 = arith.constant 0 : i32
    %c0_i32_0 = arith.constant 0 : i32
    %c0_i32_1 = arith.constant 0 : i32
    return %c0_i32, %c0_i32_0 : i32, i32
  }
  func.func @transform_5(%arg0: i32) -> (i32, i32) {
    %c0_i32 = arith.constant 0 : i32
    %c0_i32_0 = arith.constant 0 : i32
    %c0_i32_1 = arith.constant 0 : i32
    return %c0_i32, %c0_i32_0 : i32, i32
  }
  func.func @transform_6(%arg0: i32) -> (i32, i32) {
    %c0_i32 = arith.constant 0 : i32
    %c0_i32_0 = arith.constant 0 : i32
    return %arg0, %c0_i32 : i32, i32
  }
}

</mosaic_0001>

<llo_original>
// kernel: vip_forward.4
$region0: #{vip_forward.4}
  #allocation0 [shape = 'u32[]', space=smem, size = 0x4, offset = 0x4, fixed_abs, tag = 'smem constant byte address 0x4 - core index']
  #allocation1 [shape = 'u32[144,128]{1,0:T(1,128)}', space=vmem, size = 0x12000, scoped, tag = 'internal scratch']
  %s0 = inlined_call_operand.vmem [shape: f32[32,48], index: 0, kind: input, shape index: {}]
  %s1 = inlined_call_operand.vmem [shape: f32[48,32], index: 1, kind: input, shape index: {}]
  %s2 = inlined_call_operand.vmem [shape: f32[1,32], index: 2, kind: input, shape index: {}]
  %s3 = inlined_call_operand.vmem [shape: f32[32,32], index: 3, kind: output, shape index: {}]
  %s4 = sld [smem:[#allocation0]]
  $region45: #{vip_forward.4} parent=0
    _
  %s6 = ssub.s32 1, %s4
  %s7 = scalar_select 0, %s6, %s4
  loop: start=0, step=1, limit=4
  $region2: #{vip_forward.4} parent=0 // loop_pre_header
    _
  $region3: #{vip_forward.4} parent=0 // loop_header
    %s9 = sphi 0, %s13
    %p10 = scmp.ge.s32.totalorder %s9, 4
    %s19 = sphi 0, %s21
    %s22 = sphi 0, %s19
    %s23 = sphi 0, %s22
    %s39 = sphi 0, %s23
    %s43 = sphi 0, %s43
    %s45 = sphi 0, %s43
    %s46 = sphi 0, %s45
    %s60 = sphi 0, %s46
    %s64 = sphi 0, %s64
    %s66 = sphi 0, %s64
    %s67 = sphi 0, %s66
    %s81 = sphi 0, %s67
    %s87 = sphi 0, %s89
    %s90 = sphi 0, %s87
    %s91 = sphi 0, %s90
    %s107 = sphi 0, %s91
  $region4: #{vip_forward.4} parent=0 // loop_header_branch
    %12 = sbr.rel (%p10) target = $region8
  $region5: #{vip_forward.4} parent=0 // loop_body
    %s14 = ssub.s32 %s9, 1
    %s15 = ssub.s32 %s9, 2
    %s16 = sadd.s32 %s9, 1
    %s17 = ssub.s32 %s9, %s16
    %p18 = scmp.eq.s32.totalorder %s17, 0
    %s20 = sadd.s32 %s19, 1
    %s21 = scalar_select %p18, %s19, %s20
    %p24 = pneg %p18
    %p25 = scmp.eq.s32.totalorder %s9, 1
    %p26 = por %p24, %p25
    %p27 = scmp.ne.s32.totalorder %s19, %s22
    %p28 = scmp.eq.s32.totalorder %s9, 0
    %p29 = por %p27, %p28
    %p30 = scmp.ne.s32.totalorder %s19, %s22
    %p31 = scmp.eq.s32.totalorder %s14, 1
    %p32 = por %p30, %p31
    %p33 = scmp.ne.s32.totalorder %s22, %s23
    %p34 = scmp.eq.s32.totalorder %s14, 0
    %p35 = por %p33, %p34
    %p36 = scmp.ne.s32.totalorder %s22, %s23
    %p37 = scmp.eq.s32.totalorder %s15, 1
    %p38 = por %p36, %p37
    %p40 = scmp.ne.s32.totalorder %s23, %s39
    %p41 = scmp.eq.s32.totalorder %s15, 0
    %p42 = por %p40, %p41
    %s44 = sadd.s32 %s43, 1
    %p47 = scmp.eq.s32.totalorder %s9, 1
    %p48 = scmp.ne.s32.totalorder %s43, %s45
    %p49 = scmp.eq.s32.totalorder %s9, 0
    %p50 = por %p48, %p49
    %p51 = scmp.ne.s32.totalorder %s43, %s45
    %p52 = scmp.eq.s32.totalorder %s14, 1
    %p53 = por %p51, %p52
    %p54 = scmp.ne.s32.totalorder %s45, %s46
    %p55 = scmp.eq.s32.totalorder %s14, 0
    %p56 = por %p54, %p55
    %p57 = scmp.ne.s32.totalorder %s45, %s46
    %p58 = scmp.eq.s32.totalorder %s15, 1
    %p59 = por %p57, %p58
    %p61 = scmp.ne.s32.totalorder %s46, %s60
    %p62 = scmp.eq.s32.totalorder %s15, 0
    %p63 = por %p61, %p62
    %s65 = sadd.s32 %s64, 1
    %p68 = scmp.eq.s32.totalorder %s9, 1
    %p69 = scmp.ne.s32.totalorder %s64, %s66
    %p70 = scmp.eq.s32.totalorder %s9, 0
    %p71 = por %p69, %p70
    %p72 = scmp.ne.s32.totalorder %s64, %s66
    %p73 = scmp.eq.s32.totalorder %s14, 1
    %p74 = por %p72, %p73
    %p75 = scmp.ne.s32.totalorder %s66, %s67
    %p76 = scmp.eq.s32.totalorder %s14, 0
    %p77 = por %p75, %p76
    %p78 = scmp.ne.s32.totalorder %s66, %s67
    %p79 = scmp.eq.s32.totalorder %s15, 1
    %p80 = por %p78, %p79
    %p82 = scmp.ne.s32.totalorder %s67, %s81
    %p83 = scmp.eq.s32.totalorder %s15, 0
    %p84 = por %p82, %p83
    %s85 = ssub.s32 %s9, %s16
    %p86 = scmp.eq.s32.totalorder %s85, 0
    %s88 = sadd.s32 %s87, 1
    %s89 = scalar_select %p86, %s87, %s88
    %p92 = pneg %p86
    %p93 = scmp.eq.s32.totalorder %s9, 1
    %p94 = por %p92, %p93
    %p95 = scmp.ne.s32.totalorder %s87, %s90
    %p96 = scmp.eq.s32.totalorder %s9, 0
    %p97 = por %p95, %p96
    %p98 = scmp.ne.s32.totalorder %s87, %s90
    %p99 = scmp.eq.s32.totalorder %s14, 1
    %p100 = por %p98, %p99
    %p101 = scmp.ne.s32.totalorder %s90, %s91
    %p102 = scmp.eq.s32.totalorder %s14, 0
    %p103 = por %p101, %p102
    %p104 = scmp.ne.s32.totalorder %s90, %s91
    %p105 = scmp.eq.s32.totalorder %s15, 1
    %p106 = por %p104, %p105
    %p108 = scmp.ne.s32.totalorder %s91, %s107
    %p109 = scmp.eq.s32.totalorder %s15, 0
    %p110 = por %p108, %p109
    %p111 = scmp.le.s32.totalorder 1, %s9
    %p112 = scmp.lt.s32.totalorder %s9, 3
    %p113 = pnand %p111, %p112
    %p114 = pneg %p113
    // Predicated region
    $region9: #{vip_forward.4} parent=5 // pred_check
      _
    $region10: #{vip_forward.4} parent=5 // pred_check_branch
      %116 = sbr.rel (%p113) target = $region12
    $region11: #{vip_forward.4} parent=5 // pred_region
      %s117 = ssub.s32 %s9, 1
      // Predicated region
      $region13: #{vip_forward.4} parent=11 // pred_check
        %p118 = pneg %p56
      $region14: #{vip_forward.4} parent=11 // pred_check_branch
        %120 = sbr.rel (%p118) target = $region16
      $region15: #{vip_forward.4} parent=11 // pred_region
        _
      $region16: #{vip_forward.4} parent=11 // pred_fallthru
        _
      // Predicated region
      $region17: #{vip_forward.4} parent=11 // pred_check
        %p121 = pneg %p77
      $region18: #{vip_forward.4} parent=11 // pred_check_branch
        %123 = sbr.rel (%p121) target = $region20
      $region19: #{vip_forward.4} parent=11 // pred_region
        _
      $region20: #{vip_forward.4} parent=11 // pred_fallthru
        _
    $region12: #{vip_forward.4} parent=5 // pred_fallthru
      _
    %p124 = scmp.lt.s32.totalorder %s9, 2
    // Predicated region
    $region21: #{vip_forward.4} parent=5 // pred_check
      %p125 = pneg %p124
    $region22: #{vip_forward.4} parent=5 // pred_check_branch
      %127 = sbr.rel (%p125) target = $region24
    $region23: #{vip_forward.4} parent=5 // pred_region
      // Predicated region
      $region25: #{vip_forward.4} parent=23 // pred_check
        %p128 = pneg %p29
      $region26: #{vip_forward.4} parent=23 // pred_check_branch
        %130 = sbr.rel (%p128) target = $region28
      $region27: #{vip_forward.4} parent=23 // pred_region
        %s131 = smul.u32 2, %s9
        %p132 = scmp.lt.s32.totalorder %s131, 3
        %s133 = scalar_select %p132, %s131, 3
        %s134 = smul.addr %s133, 8
        %s135 = scalar_lea.vmem %s0, %s134
        %s136 = smul.u32 2, %s9
      $region28: #{vip_forward.4} parent=23 // pred_fallthru
        _
    $region24: #{vip_forward.4} parent=5 // pred_fallthru
      _
    %p137 = scmp.le.s32.totalorder 1, %s9
    %p138 = scmp.lt.s32.totalorder %s9, 3
    %p139 = pnand %p137, %p138
    %p140 = pneg %p139
    // Predicated region
    $region29: #{vip_forward.4} parent=5 // pred_check
      _
    $region30: #{vip_forward.4} parent=5 // pred_check_branch
      %142 = sbr.rel (%p139) target = $region32
    $region31: #{vip_forward.4} parent=5 // pred_region
      %s143 = ssub.s32 %s9, 1
      %s144 = smul.u32 2, %s14
      %p145 = scmp.lt.s32.totalorder %s144, 3
      %s146 = scalar_select %p145, %s144, 3
      %s147 = smul.addr %s146, 8
      %s148 = scalar_lea.vmem %s0, %s147
      %p149 = pneg %p35
      %p150 = pneg %p32
      %p151 = pneg %p56
      %p152 = pneg %p53
      %p153 = pneg %p77
      %p154 = pneg %p74
      %p155 = pneg %p103
      %p156 = pneg %p100
      %s157 = smul.u32 2, %s14
      %p158 = scmp.lt.s32.totalorder %s157, 3
      %s159 = scalar_select %p158, %s157, 3
      %s160 = smul.addr %s159, 8
      %s161 = scalar_lea.vmem %s3, %s160
      %s162 = smul.u32 2, %s14
      %p163 = scmp.lt.s32.totalorder %s162, 3
      %s164 = scalar_select %p163, %s162, 3
      %s165 = smul.addr %s164, 8
      %s166 = scalar_lea.vmem %s0, %s165
      %s167 = smul.u32 2, %s14
      %s168 = smul.u32 2, %s14
      %p169 = scmp.lt.s32.totalorder %s168, 3
      %s170 = scalar_select %p169, %s168, 3
      %s171 = smul.addr %s170, 8
      %s172 = scalar_lea.vmem %s3, %s171
      %s173 = smul.u32 2, %s14
      %v174 = vld [vmem:[%s166] sm:$0xff]
      %v175 = vld [vmem:[%s166 + $0x8] sm:$0xff]
      %v176 = vld [vmem:[%s1] sm:$0xff]
      %v177 = vld [vmem:[%s1 + $0x8] sm:$0xff]
      %v178 = vld [vmem:[%s1 + $0x10] sm:$0xff]
      %v179 = vld [vmem:[%s1 + $0x18] sm:$0xff]
      %v180 = vld [vmem:[%s1 + $0x20] sm:$0xff]
      %v181 = vld [vmem:[%s1 + $0x28] sm:$0xff]
      %v182 = vld [vmem:[%s2] sm:$0x1]
      %v184 = vlaneseq
      %v185 = vshrl.u32 %v184, 7
      %v186 = vsub.s32 0, %v185
      %v187 = vrot.slane %v182, %v186
      %vm189 = vcmask 392192
      %v191 = vsel %vm189, %v174, 0
      %v194 = vsel %vm189, %v175, 0
      %196 = vmatprep.subr.mxu0 0.0
      %197 = vmatpush1.msra.mxu0 %v176
      %198 = vmatprep.subr.mxu0 0.0
      %199 = vmatpush1.msra.mxu0 %v177
      %200 = vmatprep.subr.mxu0 0.0
      %201 = vmatpush1.msra.mxu0 %v178
      %202 = vmatprep.subr.mxu0 0.0
      %203 = vmatpush1.msra.mxu0 %v179
      %204 = vmatprep.subr.mxu0 0.0
      %205 = vmatpush1.msra.mxu0 %v180
      %206 = vmatprep.subr.mxu0 0.0
      %207 = vmatpush1.msra.mxu0 %v181
      %208 = vmatprep.subr.mxu0 0.0
      %209 = vmatpush1.msra.mxu0 0.0
      %210 = vmatprep.subr.mxu0 0.0
      %211 = vmatpush1.msra.mxu0 0.0
      %212 = vmatprep.subr.mxu0 0.0
      %213 = vmatpush1.msra.mxu0 0.0
      %214 = vmatprep.subr.mxu0 0.0
      %215 = vmatpush1.msra.mxu0 0.0
      %216 = vmatprep.subr.mxu0 0.0
      %217 = vmatpush1.msra.mxu0 0.0
      %218 = vmatprep.subr.mxu0 0.0
      %219 = vmatpush1.msra.mxu0 0.0
      %220 = vmatprep.subr.mxu0 0.0
      %221 = vmatpush1.msra.mxu0 0.0
      %222 = vmatprep.subr.mxu0 0.0
      %223 = vmatpush1.msra.mxu0 0.0
      %224 = vmatprep.subr.mxu0 0.0
      %225 = vmatpush1.msra.mxu0 0.0
      %226 = vmatprep.subr.mxu0 0.0
      %227 = vmatpush1.msra.mxu0 0.0
      %228 = vmatprep.subr.mxu0 0.0
      %229 = vmatpush1.msra.mxu0 0.0
      %230 = vmatprep.subr.mxu0 0.0
      %231 = vmatpush1.msra.mxu0 0.0
      %232 = vmatprep.subr.mxu0 0.0
      %233 = vmatpush1.msra.mxu0 0.0
      %234 = vmatprep.subr.mxu0 0.0
      %235 = vmatpush1.msra.mxu0 0.0
      %236 = vmatprep.subr.mxu0 0.0
      %237 = vmatpush1.msra.mxu0 0.0
      %238 = vmatprep.subr.mxu0 0.0
      %239 = vmatpush1.msra.mxu0 0.0
      %240 = vmatprep.subr.mxu0 0.0
      %241 = vmatpush1.msra.mxu0 0.0
      %242 = vmatprep.subr.mxu0 0.0
      %243 = vmatpush1.msra.mxu0 0.0
      %244 = vmatprep.subr.mxu0 0.0
      %245 = vmatpush1.msra.mxu0 0.0
      %246 = vmatprep.subr.mxu0 0.0
      %247 = vmatpush1.msra.mxu0 0.0
      %248 = vmatprep.subr.mxu0 0.0
      %249 = vmatpush1.msra.mxu0 0.0
      %250 = vmatprep.subr.mxu0 0.0
      %251 = vmatpush1.msra.mxu0 0.0
      %252 = vmatprep.subr.mxu0 0.0
      %253 = vmatpush1.msra.mxu0 0.0
      %254 = vmatprep.subr.mxu0 0.0
      %255 = vmatpush1.msra.mxu0 0.0
      %256 = vmatprep.subr.mxu0 0.0
      %257 = vmatpush1.msra.mxu0 0.0
      %258 = vmatprep.subr.mxu0 0.0
      %259 = vmatpush1.msra.mxu0 0.0
      %260 = vmatprep.mubr.f32.mxu0 0.0
      %261 = vmatmul.mubr.f32.gmra.mrb[0].mxu0 %v191
      %v262 = vpop.f32.mrb[0].mxu0
      %v263 = vadd.f32 %v187, %v262
      %v264 = vpop.f32.mrb[0].mxu0
      %265 = vmatprep.mubr.f32.mxu0 0.0
      %266 = vmatmul.mubr.f32.gmra.mrb[0].mxu0 %v194
      %v267 = vpop.f32.mrb[0].mxu0
      %v268 = vadd.f32 %v187, %v267
      %v269 = vpop.f32.mrb[0].mxu0
      %270 = vdwg.mxu0
      %vm271 = vcmask 261120
      %272 = vst.msk [vmem:[%s172] sm:$0xff] %vm271, %v263
      %273 = vst.msk [vmem:[%s172 + $0x8] sm:$0xff] %vm271, %v268
      %s274 = smul.u32 2, %s14
      %p275 = scmp.lt.s32.totalorder %s274, 3
      %s276 = scalar_select %p275, %s274, 3
      %s277 = smul.addr %s276, 8
      %s278 = scalar_lea.vmem %s3, %s277
      // Predicated region
      $region33: #{vip_forward.4} parent=31 // pred_check
        %p279 = pneg %p100
      $region34: #{vip_forward.4} parent=31 // pred_check_branch
        %281 = sbr.rel (%p279) target = $region36
      $region35: #{vip_forward.4} parent=31 // pred_region
        %s282 = smul.u32 2, %s14
      $region36: #{vip_forward.4} parent=31 // pred_fallthru
        _
    $region32: #{vip_forward.4} parent=5 // pred_fallthru
      _
    %p283 = scmp.le.s32.totalorder 2, %s9
    // Predicated region
    $region37: #{vip_forward.4} parent=5 // pred_check
      %p284 = pneg %p283
    $region38: #{vip_forward.4} parent=5 // pred_check_branch
      %286 = sbr.rel (%p284) target = $region40
    $region39: #{vip_forward.4} parent=5 // pred_region
      %s287 = ssub.s32 %s9, 2
      // Predicated region
      $region41: #{vip_forward.4} parent=39 // pred_check
        %p288 = pneg %p106
      $region42: #{vip_forward.4} parent=39 // pred_check_branch
        %290 = sbr.rel (%p288) target = $region44
      $region43: #{vip_forward.4} parent=39 // pred_region
        %s291 = smul.u32 2, %s15
        %p292 = scmp.lt.s32.totalorder %s291, 3
        %s293 = scalar_select %p292, %s291, 3
        %s294 = smul.addr %s293, 8
        %s295 = scalar_lea.vmem %s3, %s294
      $region44: #{vip_forward.4} parent=39 // pred_fallthru
        _
    $region40: #{vip_forward.4} parent=5 // pred_fallthru
      _
  $region6: #{vip_forward.4} parent=0 // loop_footer
    %s13 = sadd.s32 1, %s9
  $region7: #{vip_forward.4} parent=0 // loop_footer_branch
    %8 = sbr.rel target = $region3
  $region8: #{vip_forward.4} parent=0 // loop_exit
    _

// kernel: vip_forward.7
$region0: #{vip_forward.7}
  #allocation0 [shape = 'u32[]', space=smem, size = 0x4, offset = 0x4, fixed_abs, tag = 'smem constant byte address 0x4 - core index']
  #allocation1 [shape = 'u32[144,128]{1,0:T(1,128)}', space=vmem, size = 0x12000, scoped, tag = 'internal scratch']
  %s0 = inlined_call_operand.vmem [shape: f32[32,32], index: 0, kind: input, shape index: {}]
  %s1 = inlined_call_operand.vmem [shape: f32[1,32], index: 1, kind: input, shape index: {}]
  %s2 = inlined_call_operand.vmem [shape: f32[1,32], index: 2, kind: input, shape index: {}]
  %s3 = inlined_call_operand.vmem [shape: f32[2,32], index: 3, kind: input, shape index: {}]
  %s4 = inlined_call_operand.vmem [shape: f32[32,8], index: 4, kind: input, shape index: {}]
  %s5 = inlined_call_operand.vmem [shape: f32[1,8], index: 5, kind: input, shape index: {}]
  %s6 = inlined_call_operand.hbm [shape: f32[2,8], index: 6, kind: output, shape index: {}]
  %s7 = sld [smem:[#allocation0]]
  $region34: #{vip_forward.7} parent=0
    _
  %s9 = ssub.s32 1, %s7
  %s10 = scalar_select 0, %s9, %s7
  $region1: #{vip_forward.7} parent=0
    #allocation2 [shape = 'u8[1024]{0}', space=vmem, size = 0x400, scoped, tag = 'output window, operand 0, single buffered']
    #allocation3 [shape = 's32[1]{0}', space=sflag, size = 0x4, scoped, tag = 'scoped memory for vip_forward.7']
    %11 = vsyncpa [#allocation3], 0
    // Predicated region
    $region2: #{vip_forward.7} parent=1 // pred_check
      _
    $region3: #{vip_forward.7} parent=1 // pred_check_branch
      %13 = sbr.rel (0) target = $region5
    $region4: #{vip_forward.7} parent=1 // pred_region
      _
    $region5: #{vip_forward.7} parent=1 // pred_fallthru
      _
    // Predicated region
    $region6: #{vip_forward.7} parent=1 // pred_check
      _
    $region7: #{vip_forward.7} parent=1 // pred_check_branch
      %15 = sbr.rel (0) target = $region9
    $region8: #{vip_forward.7} parent=1 // pred_region
      _
    $region9: #{vip_forward.7} parent=1 // pred_fallthru
      _
    // Predicated region
    $region10: #{vip_forward.7} parent=1 // pred_check
      _
    $region11: #{vip_forward.7} parent=1 // pred_check_branch
      %17 = sbr.rel (0) target = $region13
    $region12: #{vip_forward.7} parent=1 // pred_region
      _
    $region13: #{vip_forward.7} parent=1 // pred_fallthru
      _
    // Predicated region
    $region14: #{vip_forward.7} parent=1 // pred_check
      _
    $region15: #{vip_forward.7} parent=1 // pred_check_branch
      %19 = sbr.rel (0) target = $region17
    $region16: #{vip_forward.7} parent=1 // pred_region
      _
    $region17: #{vip_forward.7} parent=1 // pred_fallthru
      _
    // Predicated region
    $region18: #{vip_forward.7} parent=1 // pred_check
      _
    $region19: #{vip_forward.7} parent=1 // pred_check_branch
      %21 = sbr.rel (0) target = $region21
    $region20: #{vip_forward.7} parent=1 // pred_region
      _
    $region21: #{vip_forward.7} parent=1 // pred_fallthru
      _
    // Predicated region
    $region22: #{vip_forward.7} parent=1 // pred_check
      _
    $region23: #{vip_forward.7} parent=1 // pred_check_branch
      %23 = sbr.rel (0) target = $region25
    $region24: #{vip_forward.7} parent=1 // pred_region
      _
    $region25: #{vip_forward.7} parent=1 // pred_fallthru
      _
    %v24 = vld [vmem:[%s0] sm:$0xff]
    %v25 = vld [vmem:[%s0 + $0x8] sm:$0xff]
    %v26 = vld [vmem:[%s0 + $0x10] sm:$0xff]
    %v27 = vld [vmem:[%s0 + $0x18] sm:$0xff]
    %v28 = vld [vmem:[%s1] sm:$0x1]
    %v29 = vld [vmem:[%s2] sm:$0x1]
    %vm30 = vcmask 261120
    %v31 = vsel %vm30, %v24, 0.0
    %32 = vadd.xlane.f32.xlu0 %v31
    %v33 = vpop.xlane.xlu0 %32
    %v34 = vsel %vm30, %v25, 0.0
    %35 = vadd.xlane.f32.xlu0 %v34
    %v36 = vpop.xlane.xlu0 %35
    %v37 = vsel %vm30, %v26, 0.0
    %38 = vadd.xlane.f32.xlu0 %v37
    %v39 = vpop.xlane.xlu0 %38
    %v40 = vsel %vm30, %v27, 0.0
    %41 = vadd.xlane.f32.xlu0 %v40
    %v42 = vpop.xlane.xlu0 %41
    %v43 = vrcp.pop 32.0
    %v44 = vmul.f32 %v33, %v43
    %v45 = vmul.f32 %v36, %v43
    %v46 = vmul.f32 %v39, %v43
    %v47 = vmul.f32 %v42, %v43
    %v48 = vsub.f32 %v24, %v44
    %v49 = vsub.f32 %v25, %v45
    %v50 = vsub.f32 %v26, %v46
    %v51 = vsub.f32 %v27, %v47
    %v52 = vmul.f32 %v48, %v48
    %v53 = vmul.f32 %v49, %v49
    %v54 = vmul.f32 %v50, %v50
    %v55 = vmul.f32 %v51, %v51
    %v56 = vsel %vm30, %v52, 0.0
    %57 = vadd.xlane.f32.xlu0 %v56
    %v58 = vpop.xlane.xlu0 %57
    %v59 = vsel %vm30, %v53, 0.0
    %60 = vadd.xlane.f32.xlu0 %v59
    %v61 = vpop.xlane.xlu0 %60
    %v62 = vsel %vm30, %v54, 0.0
    %63 = vadd.xlane.f32.xlu0 %v62
    %v64 = vpop.xlane.xlu0 %63
    %v65 = vsel %vm30, %v55, 0.0
    %66 = vadd.xlane.f32.xlu0 %v65
    %v67 = vpop.xlane.xlu0 %66
    %v68 = vmul.f32 %v58, %v43
    %v69 = vmul.f32 %v61, %v43
    %v70 = vmul.f32 %v64, %v43
    %v71 = vmul.f32 %v67, %v43
    %v72 = vadd.f32 %v68, 1e-05
    %v73 = vadd.f32 %v69, 1e-05
    %v74 = vadd.f32 %v70, 1e-05
    %v75 = vadd.f32 %v71, 1e-05
    %v76 = vrsqrt.pop %v72
    %v77 = vrsqrt.pop %v73
    %v78 = vrsqrt.pop %v74
    %v79 = vrsqrt.pop %v75
    %v80 = vmul.f32 %v48, %v76
    %v81 = vmul.f32 %v49, %v77
    %v82 = vmul.f32 %v50, %v78
    %v83 = vmul.f32 %v51, %v79
    %v85 = vlaneseq
    %v86 = vshrl.u32 %v85, 7
    %v87 = vsub.s32 0, %v86
    %v88 = vrot.slane %v28, %v87
    %v90 = vmul.f32 %v80, %v88
    %v91 = vmul.f32 %v81, %v88
    %v92 = vmul.f32 %v82, %v88
    %v93 = vmul.f32 %v83, %v88
    %v95 = vlaneseq
    %v96 = vshrl.u32 %v95, 7
    %v97 = vsub.s32 0, %v96
    %v98 = vrot.slane %v29, %v97
    %v100 = vadd.f32 %v90, %v98
    %v101 = vadd.f32 %v91, %v98
    %v102 = vadd.f32 %v92, %v98
    %v103 = vadd.f32 %v93, %v98
    %v104 = vld [vmem:[%s3] sm:$0x3]
    %v106 = vsel %vm30, %v104, 0
    %108 = vmatprep.subr.mxu0 0.0
    %109 = vmatpush1.msra.mxu0 %v100
    %110 = vmatprep.subr.mxu0 0.0
    %111 = vmatpush1.msra.mxu0 %v101
    %112 = vmatprep.subr.mxu0 0.0
    %113 = vmatpush1.msra.mxu0 %v102
    %114 = vmatprep.subr.mxu0 0.0
    %115 = vmatpush1.msra.mxu0 %v103
    %116 = vmatprep.subr.mxu0 0.0
    %117 = vmatpush1.msra.mxu0 0.0
    %118 = vmatprep.subr.mxu0 0.0
    %119 = vmatpush1.msra.mxu0 0.0
    %120 = vmatprep.subr.mxu0 0.0
    %121 = vmatpush1.msra.mxu0 0.0
    %122 = vmatprep.subr.mxu0 0.0
    %123 = vmatpush1.msra.mxu0 0.0
    %124 = vmatprep.subr.mxu0 0.0
    %125 = vmatpush1.msra.mxu0 0.0
    %126 = vmatprep.subr.mxu0 0.0
    %127 = vmatpush1.msra.mxu0 0.0
    %128 = vmatprep.subr.mxu0 0.0
    %129 = vmatpush1.msra.mxu0 0.0
    %130 = vmatprep.subr.mxu0 0.0
    %131 = vmatpush1.msra.mxu0 0.0
    %132 = vmatprep.subr.mxu0 0.0
    %133 = vmatpush1.msra.mxu0 0.0
    %134 = vmatprep.subr.mxu0 0.0
    %135 = vmatpush1.msra.mxu0 0.0
    %136 = vmatprep.subr.mxu0 0.0
    %137 = vmatpush1.msra.mxu0 0.0
    %138 = vmatprep.subr.mxu0 0.0
    %139 = vmatpush1.msra.mxu0 0.0
    %140 = vmatprep.subr.mxu0 0.0
    %141 = vmatpush1.msra.mxu0 0.0
    %142 = vmatprep.subr.mxu0 0.0
    %143 = vmatpush1.msra.mxu0 0.0
    %144 = vmatprep.subr.mxu0 0.0
    %145 = vmatpush1.msra.mxu0 0.0
    %146 = vmatprep.subr.mxu0 0.0
    %147 = vmatpush1.msra.mxu0 0.0
    %148 = vmatprep.subr.mxu0 0.0
    %149 = vmatpush1.msra.mxu0 0.0
    %150 = vmatprep.subr.mxu0 0.0
    %151 = vmatpush1.msra.mxu0 0.0
    %152 = vmatprep.subr.mxu0 0.0
    %153 = vmatpush1.msra.mxu0 0.0
    %154 = vmatprep.subr.mxu0 0.0
    %155 = vmatpush1.msra.mxu0 0.0
    %156 = vmatprep.subr.mxu0 0.0
    %157 = vmatpush1.msra.mxu0 0.0
    %158 = vmatprep.subr.mxu0 0.0
    %159 = vmatpush1.msra.mxu0 0.0
    %160 = vmatprep.subr.mxu0 0.0
    %161 = vmatpush1.msra.mxu0 0.0
    %162 = vmatprep.subr.mxu0 0.0
    %163 = vmatpush1.msra.mxu0 0.0
    %164 = vmatprep.subr.mxu0 0.0
    %165 = vmatpush1.msra.mxu0 0.0
    %166 = vmatprep.subr.mxu0 0.0
    %167 = vmatpush1.msra.mxu0 0.0
    %168 = vmatprep.subr.mxu0 0.0
    %169 = vmatpush1.msra.mxu0 0.0
    %170 = vmatprep.subr.mxu0 0.0
    %171 = vmatpush1.msra.mxu0 0.0
    %172 = vmatprep.mubr.f32.mxu0 0.0
    %173 = vmatmul.mubr.f32.gmra.mrb[0].mxu0 %v106
    %v174 = vpop.f32.mrb[0].mxu0
    %v175 = vadd.f32 0.0, %v174
    %v176 = vpop.f32.mrb[0].mxu0
    %177 = vdwg.mxu0
    %v178 = vld [vmem:[%s4] sm:$0xff]
    %v179 = vld [vmem:[%s4 + $0x8] sm:$0xff]
    %v180 = vld [vmem:[%s4 + $0x10] sm:$0xff]
    %v181 = vld [vmem:[%s4 + $0x18] sm:$0xff]
    %v182 = vld [vmem:[%s5] sm:$0x1]
    %v184 = vlaneseq
    %v185 = vshrl.u32 %v184, 7
    %v186 = vsub.s32 0, %v185
    %v187 = vrot.slane %v182, %v186
    %v190 = vsel %vm30, %v175, 0
    %192 = vmatprep.subr.mxu0 0.0
    %193 = vmatpush1.msra.mxu0 %v178
    %194 = vmatprep.subr.mxu0 0.0
    %195 = vmatpush1.msra.mxu0 %v179
    %196 = vmatprep.subr.mxu0 0.0
    %197 = vmatpush1.msra.mxu0 %v180
    %198 = vmatprep.subr.mxu0 0.0
    %199 = vmatpush1.msra.mxu0 %v181
    %200 = vmatprep.subr.mxu0 0.0
    %201 = vmatpush1.msra.mxu0 0.0
    %202 = vmatprep.subr.mxu0 0.0
    %203 = vmatpush1.msra.mxu0 0.0
    %204 = vmatprep.subr.mxu0 0.0
    %205 = vmatpush1.msra.mxu0 0.0
    %206 = vmatprep.subr.mxu0 0.0
    %207 = vmatpush1.msra.mxu0 0.0
    %208 = vmatprep.subr.mxu0 0.0
    %209 = vmatpush1.msra.mxu0 0.0
    %210 = vmatprep.subr.mxu0 0.0
    %211 = vmatpush1.msra.mxu0 0.0
    %212 = vmatprep.subr.mxu0 0.0
    %213 = vmatpush1.msra.mxu0 0.0
    %214 = vmatprep.subr.mxu0 0.0
    %215 = vmatpush1.msra.mxu0 0.0
    %216 = vmatprep.subr.mxu0 0.0
    %217 = vmatpush1.msra.mxu0 0.0
    %218 = vmatprep.subr.mxu0 0.0
    %219 = vmatpush1.msra.mxu0 0.0
    %220 = vmatprep.subr.mxu0 0.0
    %221 = vmatpush1.msra.mxu0 0.0
    %222 = vmatprep.subr.mxu0 0.0
    %223 = vmatpush1.msra.mxu0 0.0
    %224 = vmatprep.subr.mxu0 0.0
    %225 = vmatpush1.msra.mxu0 0.0
    %226 = vmatprep.subr.mxu0 0.0
    %227 = vmatpush1.msra.mxu0 0.0
    %228 = vmatprep.subr.mxu0 0.0
    %229 = vmatpush1.msra.mxu0 0.0
    %230 = vmatprep.subr.mxu0 0.0
    %231 = vmatpush1.msra.mxu0 0.0
    %232 = vmatprep.subr.mxu0 0.0
    %233 = vmatpush1.msra.mxu0 0.0
    %234 = vmatprep.subr.mxu0 0.0
    %235 = vmatpush1.msra.mxu0 0.0
    %236 = vmatprep.subr.mxu0 0.0
    %237 = vmatpush1.msra.mxu0 0.0
    %238 = vmatprep.subr.mxu0 0.0
    %239 = vmatpush1.msra.mxu0 0.0
    %240 = vmatprep.subr.mxu0 0.0
    %241 = vmatpush1.msra.mxu0 0.0
    %242 = vmatprep.subr.mxu0 0.0
    %243 = vmatpush1.msra.mxu0 0.0
    %244 = vmatprep.subr.mxu0 0.0
    %245 = vmatpush1.msra.mxu0 0.0
    %246 = vmatprep.subr.mxu0 0.0
    %247 = vmatpush1.msra.mxu0 0.0
    %248 = vmatprep.subr.mxu0 0.0
    %249 = vmatpush1.msra.mxu0 0.0
    %250 = vmatprep.subr.mxu0 0.0
    %251 = vmatpush1.msra.mxu0 0.0
    %252 = vmatprep.subr.mxu0 0.0
    %253 = vmatpush1.msra.mxu0 0.0
    %254 = vmatprep.subr.mxu0 0.0
    %255 = vmatpush1.msra.mxu0 0.0
    %256 = vmatprep.mubr.f32.mxu0 0.0
    %257 = vmatmul.mubr.f32.gmra.mrb[0].mxu0 %v190
    %v258 = vpop.f32.mrb[0].mxu0
    %v259 = vadd.f32 %v187, %v258
    %v260 = vpop.f32.mrb[0].mxu0
    %261 = vdwg.mxu0
    %vm262 = vcmask 58368
    %263 = vst.msk [vmem:[#allocation2] sm:$0x3] %vm262, %v259
    // Predicated region
    $region26: #{vip_forward.7} parent=1 // pred_check
      _
    $region27: #{vip_forward.7} parent=1 // pred_check_branch
      %265 = sbr.rel (0) target = $region29
    $region28: #{vip_forward.7} parent=1 // pred_region
      %s267 = ssub.s32 32, 32
      %268 = vsyncadd [#allocation3], %s267
      %s270 = sshll.u32 [#allocation2], 4
      %s271 = int_to_ptr.vmem [resolvable:$true] %s270
      %273 = dma.vmem_to_hbm [thread:$0]  %s271, 32, %s6, [#allocation3]
    $region29: #{vip_forward.7} parent=1 // pred_fallthru
      _
    // Predicated region
    $region30: #{vip_forward.7} parent=1 // pred_check
      _
    $region31: #{vip_forward.7} parent=1 // pred_check_branch
      %275 = sbr.rel (0) target = $region33
    $region32: #{vip_forward.7} parent=1 // pred_region
      %276 = dma.done [#allocation3], 32
    $region33: #{vip_forward.7} parent=1 // pred_fallthru
      _
    %277 = vsyncpa [#allocation3], 1

// kernel: vip_forward.5
$region0: #{vip_forward.5}
  #allocation0 [shape = 'u32[]', space=smem, size = 0x4, offset = 0x4, fixed_abs, tag = 'smem constant byte address 0x4 - core index']
  #allocation1 [shape = 'u32[144,128]{1,0:T(1,128)}', space=vmem, size = 0x12000, scoped, tag = 'internal scratch']
  %s0 = inlined_call_operand.vmem [shape: f32[32,32], index: 0, kind: input, shape index: {}]
  %s1 = inlined_call_operand.vmem [shape: f32[1,32], index: 1, kind: input, shape index: {}]
  %s2 = inlined_call_operand.vmem [shape: f32[1,32], index: 2, kind: input, shape index: {}]
  %s3 = inlined_call_operand.vmem [shape: f32[16,512], index: 3, kind: input, shape index: {}]
  %s4 = inlined_call_operand.vmem [shape: f32[1,16], index: 4, kind: input, shape index: {}]
  %s5 = inlined_call_operand.vmem [shape: f32[16,1], index: 5, kind: input, shape index: {}]
  %s6 = inlined_call_operand.vmem [shape: f32[32,512], index: 6, kind: input, shape index: {}]
  %s7 = inlined_call_operand.vmem [shape: f32[512,32], index: 7, kind: input, shape index: {}]
  %s8 = inlined_call_operand.vmem [shape: f32[512,512], index: 8, kind: input, shape index: {}]
  %s9 = inlined_call_operand.vmem [shape: f32[1,512], index: 9, kind: input, shape index: {}]
  %s10 = inlined_call_operand.vmem [shape: f32[1,32], index: 10, kind: input, shape index: {}]
  %s11 = inlined_call_operand.vmem [shape: f32[1,32], index: 11, kind: input, shape index: {}]
  %s12 = inlined_call_operand.vmem [shape: f32[32,128], index: 12, kind: input, shape index: {}]
  %s13 = inlined_call_operand.vmem [shape: f32[1,128], index: 13, kind: input, shape index: {}]
  %s14 = inlined_call_operand.vmem [shape: f32[128,32], index: 14, kind: input, shape index: {}]
  %s15 = inlined_call_operand.vmem [shape: f32[1,32], index: 15, kind: input, shape index: {}]
  %s16 = inlined_call_operand.vmem [shape: f32[32,32], index: 16, kind: output, shape index: {}]
  %s17 = sld [smem:[#allocation0]]
  $region97: #{vip_forward.5} parent=0
    _
  %s19 = ssub.s32 1, %s17
  %s20 = scalar_select 0, %s19, %s17
  loop: start=0, step=1, limit=4
  $region2: #{vip_forward.5} parent=0 // loop_pre_header
    _
  $region3: #{vip_forward.5} parent=0 // loop_header
    %s22 = sphi 0, %s26
    %p23 = scmp.ge.s32.totalorder %s22, 4
    %s32 = sphi 0, %s34
    %s35 = sphi 0, %s32
    %s36 = sphi 0, %s35
    %s52 = sphi 0, %s36
    %s56 = sphi 0, %s56
    %s58 = sphi 0, %s56
    %s59 = sphi 0, %s58
    %s73 = sphi 0, %s59
    %s77 = sphi 0, %s77
    %s79 = sphi 0, %s77
    %s80 = sphi 0, %s79
    %s94 = sphi 0, %s80
    %s98 = sphi 0, %s98
    %s100 = sphi 0, %s98
    %s101 = sphi 0, %s100
    %s115 = sphi 0, %s101
    %s119 = sphi 0, %s119
    %s121 = sphi 0, %s119
    %s122 = sphi 0, %s121
    %s136 = sphi 0, %s122
    %s140 = sphi 0, %s140
    %s142 = sphi 0, %s140
    %s143 = sphi 0, %s142
    %s157 = sphi 0, %s143
    %s161 = sphi 0, %s161
    %s163 = sphi 0, %s161
    %s164 = sphi 0, %s163
    %s178 = sphi 0, %s164
    %s182 = sphi 0, %s182
    %s184 = sphi 0, %s182
    %s185 = sphi 0, %s184
    %s199 = sphi 0, %s185
    %s203 = sphi 0, %s203
    %s205 = sphi 0, %s203
    %s206 = sphi 0, %s205
    %s220 = sphi 0, %s206
    %s224 = sphi 0, %s224
    %s226 = sphi 0, %s224
    %s227 = sphi 0, %s226
    %s241 = sphi 0, %s227
    %s245 = sphi 0, %s245
    %s247 = sphi 0, %s245
    %s248 = sphi 0, %s247
    %s262 = sphi 0, %s248
    %s266 = sphi 0, %s266
    %s268 = sphi 0, %s266
    %s269 = sphi 0, %s268
    %s283 = sphi 0, %s269
    %s287 = sphi 0, %s287
    %s289 = sphi 0, %s287
    %s290 = sphi 0, %s289
    %s304 = sphi 0, %s290
    %s308 = sphi 0, %s308
    %s310 = sphi 0, %s308
    %s311 = sphi 0, %s310
    %s325 = sphi 0, %s311
    %s329 = sphi 0, %s329
    %s331 = sphi 0, %s329
    %s332 = sphi 0, %s331
    %s346 = sphi 0, %s332
    %s350 = sphi 0, %s350
    %s352 = sphi 0, %s350
    %s353 = sphi 0, %s352
    %s367 = sphi 0, %s353
    %s373 = sphi 0, %s375
    %s376 = sphi 0, %s373
    %s377 = sphi 0, %s376
    %s393 = sphi 0, %s377
  $region4: #{vip_forward.5} parent=0 // loop_header_branch
    %25 = sbr.rel (%p23) target = $region8
  $region5: #{vip_forward.5} parent=0 // loop_body
    %s27 = ssub.s32 %s22, 1
    %s28 = ssub.s32 %s22, 2
    %s29 = sadd.s32 %s22, 1
    %s30 = ssub.s32 %s22, %s29
    %p31 = scmp.eq.s32.totalorder %s30, 0
    %s33 = sadd.s32 %s32, 1
    %s34 = scalar_select %p31, %s32, %s33
    %p37 = pneg %p31
    %p38 = scmp.eq.s32.totalorder %s22, 1
    %p39 = por %p37, %p38
    %p40 = scmp.ne.s32.totalorder %s32, %s35
    %p41 = scmp.eq.s32.totalorder %s22, 0
    %p42 = por %p40, %p41
    %p43 = scmp.ne.s32.totalorder %s32, %s35
    %p44 = scmp.eq.s32.totalorder %s27, 1
    %p45 = por %p43, %p44
    %p46 = scmp.ne.s32.totalorder %s35, %s36
    %p47 = scmp.eq.s32.totalorder %s27, 0
    %p48 = por %p46, %p47
    %p49 = scmp.ne.s32.totalorder %s35, %s36
    %p50 = scmp.eq.s32.totalorder %s28, 1
    %p51 = por %p49, %p50
    %p53 = scmp.ne.s32.totalorder %s36, %s52
    %p54 = scmp.eq.s32.totalorder %s28, 0
    %p55 = por %p53, %p54
    %s57 = sadd.s32 %s56, 1
    %p60 = scmp.eq.s32.totalorder %s22, 1
    %p61 = scmp.ne.s32.totalorder %s56, %s58
    %p62 = scmp.eq.s32.totalorder %s22, 0
    %p63 = por %p61, %p62
    %p64 = scmp.ne.s32.totalorder %s56, %s58
    %p65 = scmp.eq.s32.totalorder %s27, 1
    %p66 = por %p64, %p65
    %p67 = scmp.ne.s32.totalorder %s58, %s59
    %p68 = scmp.eq.s32.totalorder %s27, 0
    %p69 = por %p67, %p68
    %p70 = scmp.ne.s32.totalorder %s58, %s59
    %p71 = scmp.eq.s32.totalorder %s28, 1
    %p72 = por %p70, %p71
    %p74 = scmp.ne.s32.totalorder %s59, %s73
    %p75 = scmp.eq.s32.totalorder %s28, 0
    %p76 = por %p74, %p75
    %s78 = sadd.s32 %s77, 1
    %p81 = scmp.eq.s32.totalorder %s22, 1
    %p82 = scmp.ne.s32.totalorder %s77, %s79
    %p83 = scmp.eq.s32.totalorder %s22, 0
    %p84 = por %p82, %p83
    %p85 = scmp.ne.s32.totalorder %s77, %s79
    %p86 = scmp.eq.s32.totalorder %s27, 1
    %p87 = por %p85, %p86
    %p88 = scmp.ne.s32.totalorder %s79, %s80
    %p89 = scmp.eq.s32.totalorder %s27, 0
    %p90 = por %p88, %p89
    %p91 = scmp.ne.s32.totalorder %s79, %s80
    %p92 = scmp.eq.s32.totalorder %s28, 1
    %p93 = por %p91, %p92
    %p95 = scmp.ne.s32.totalorder %s80, %s94
    %p96 = scmp.eq.s32.totalorder %s28, 0
    %p97 = por %p95, %p96
    %s99 = sadd.s32 %s98, 1
    %p102 = scmp.eq.s32.totalorder %s22, 1
    %p103 = scmp.ne.s32.totalorder %s98, %s100
    %p104 = scmp.eq.s32.totalorder %s22, 0
    %p105 = por %p103, %p104
    %p106 = scmp.ne.s32.totalorder %s98, %s100
    %p107 = scmp.eq.s32.totalorder %s27, 1
    %p108 = por %p106, %p107
    %p109 = scmp.ne.s32.totalorder %s100, %s101
    %p110 = scmp.eq.s32.totalorder %s27, 0
    %p111 = por %p109, %p110
    %p112 = scmp.ne.s32.totalorder %s100, %s101
    %p113 = scmp.eq.s32.totalorder %s28, 1
    %p114 = por %p112, %p113
    %p116 = scmp.ne.s32.totalorder %s101, %s115
    %p117 = scmp.eq.s32.totalorder %s28, 0
    %p118 = por %p116, %p117
    %s120 = sadd.s32 %s119, 1
    %p123 = scmp.eq.s32.totalorder %s22, 1
    %p124 = scmp.ne.s32.totalorder %s119, %s121
    %p125 = scmp.eq.s32.totalorder %s22, 0
    %p126 = por %p124, %p125
    %p127 = scmp.ne.s32.totalorder %s119, %s121
    %p128 = scmp.eq.s32.totalorder %s27, 1
    %p129 = por %p127, %p128
    %p130 = scmp.ne.s32.totalorder %s121, %s122
    %p131 = scmp.eq.s32.totalorder %s27, 0
    %p132 = por %p130, %p131
    %p133 = scmp.ne.s32.totalorder %s121, %s122
    %p134 = scmp.eq.s32.totalorder %s28, 1
    %p135 = por %p133, %p134
    %p137 = scmp.ne.s32.totalorder %s122, %s136
    %p138 = scmp.eq.s32.totalorder %s28, 0
    %p139 = por %p137, %p138
    %s141 = sadd.s32 %s140, 1
    %p144 = scmp.eq.s32.totalorder %s22, 1
    %p145 = scmp.ne.s32.totalorder %s140, %s142
    %p146 = scmp.eq.s32.totalorder %s22, 0
    %p147 = por %p145, %p146
    %p148 = scmp.ne.s32.totalorder %s140, %s142
    %p149 = scmp.eq.s32.totalorder %s27, 1
    %p150 = por %p148, %p149
    %p151 = scmp.ne.s32.totalorder %s142, %s143
    %p152 = scmp.eq.s32.totalorder %s27, 0
    %p153 = por %p151, %p152
    %p154 = scmp.ne.s32.totalorder %s142, %s143
    %p155 = scmp.eq.s32.totalorder %s28, 1
    %p156 = por %p154, %p155
    %p158 = scmp.ne.s32.totalorder %s143, %s157
    %p159 = scmp.eq.s32.totalorder %s28, 0
    %p160 = por %p158, %p159
    %s162 = sadd.s32 %s161, 1
    %p165 = scmp.eq.s32.totalorder %s22, 1
    %p166 = scmp.ne.s32.totalorder %s161, %s163
    %p167 = scmp.eq.s32.totalorder %s22, 0
    %p168 = por %p166, %p167
    %p169 = scmp.ne.s32.totalorder %s161, %s163
    %p170 = scmp.eq.s32.totalorder %s27, 1
    %p171 = por %p169, %p170
    %p172 = scmp.ne.s32.totalorder %s163, %s164
    %p173 = scmp.eq.s32.totalorder %s27, 0
    %p174 = por %p172, %p173
    %p175 = scmp.ne.s32.totalorder %s163, %s164
    %p176 = scmp.eq.s32.totalorder %s28, 1
    %p177 = por %p175, %p176
    %p179 = scmp.ne.s32.totalorder %s164, %s178
    %p180 = scmp.eq.s32.totalorder %s28, 0
    %p181 = por %p179, %p180
    %s183 = sadd.s32 %s182, 1
    %p186 = scmp.eq.s32.totalorder %s22, 1
    %p187 = scmp.ne.s32.totalorder %s182, %s184
    %p188 = scmp.eq.s32.totalorder %s22, 0
    %p189 = por %p187, %p188
    %p190 = scmp.ne.s32.totalorder %s182, %s184
    %p191 = scmp.eq.s32.totalorder %s27, 1
    %p192 = por %p190, %p191
    %p193 = scmp.ne.s32.totalorder %s184, %s185
    %p194 = scmp.eq.s32.totalorder %s27, 0
    %p195 = por %p193, %p194
    %p196 = scmp.ne.s32.totalorder %s184, %s185
    %p197 = scmp.eq.s32.totalorder %s28, 1
    %p198 = por %p196, %p197
    %p200 = scmp.ne.s32.totalorder %s185, %s199
    %p201 = scmp.eq.s32.totalorder %s28, 0
    %p202 = por %p200, %p201
    %s204 = sadd.s32 %s203, 1
    %p207 = scmp.eq.s32.totalorder %s22, 1
    %p208 = scmp.ne.s32.totalorder %s203, %s205
    %p209 = scmp.eq.s32.totalorder %s22, 0
    %p210 = por %p208, %p209
    %p211 = scmp.ne.s32.totalorder %s203, %s205
    %p212 = scmp.eq.s32.totalorder %s27, 1
    %p213 = por %p211, %p212
    %p214 = scmp.ne.s32.totalorder %s205, %s206
    %p215 = scmp.eq.s32.totalorder %s27, 0
    %p216 = por %p214, %p215
    %p217 = scmp.ne.s32.totalorder %s205, %s206
    %p218 = scmp.eq.s32.totalorder %s28, 1
    %p219 = por %p217, %p218
    %p221 = scmp.ne.s32.totalorder %s206, %s220
    %p222 = scmp.eq.s32.totalorder %s28, 0
    %p223 = por %p221, %p222
    %s225 = sadd.s32 %s224, 1
    %p228 = scmp.eq.s32.totalorder %s22, 1
    %p229 = scmp.ne.s32.totalorder %s224, %s226
    %p230 = scmp.eq.s32.totalorder %s22, 0
    %p231 = por %p229, %p230
    %p232 = scmp.ne.s32.totalorder %s224, %s226
    %p233 = scmp.eq.s32.totalorder %s27, 1
    %p234 = por %p232, %p233
    %p235 = scmp.ne.s32.totalorder %s226, %s227
    %p236 = scmp.eq.s32.totalorder %s27, 0
    %p237 = por %p235, %p236
    %p238 = scmp.ne.s32.totalorder %s226, %s227
    %p239 = scmp.eq.s32.totalorder %s28, 1
    %p240 = por %p238, %p239
    %p242 = scmp.ne.s32.totalorder %s227, %s241
    %p243 = scmp.eq.s32.totalorder %s28, 0
    %p244 = por %p242, %p243
    %s246 = sadd.s32 %s245, 1
    %p249 = scmp.eq.s32.totalorder %s22, 1
    %p250 = scmp.ne.s32.totalorder %s245, %s247
    %p251 = scmp.eq.s32.totalorder %s22, 0
    %p252 = por %p250, %p251
    %p253 = scmp.ne.s32.totalorder %s245, %s247
    %p254 = scmp.eq.s32.totalorder %s27, 1
    %p255 = por %p253, %p254
    %p256 = scmp.ne.s32.totalorder %s247, %s248
    %p257 = scmp.eq.s32.totalorder %s27, 0
    %p258 = por %p256, %p257
    %p259 = scmp.ne.s32.totalorder %s247, %s248
    %p260 = scmp.eq.s32.totalorder %s28, 1
    %p261 = por %p259, %p260
    %p263 = scmp.ne.s32.totalorder %s248, %s262
    %p264 = scmp.eq.s32.totalorder %s28, 0
    %p265 = por %p263, %p264
    %s267 = sadd.s32 %s266, 1
    %p270 = scmp.eq.s32.totalorder %s22, 1
    %p271 = scmp.ne.s32.totalorder %s266, %s268
    %p272 = scmp.eq.s32.totalorder %s22, 0
    %p273 = por %p271, %p272
    %p274 = scmp.ne.s32.totalorder %s266, %s268
    %p275 = scmp.eq.s32.totalorder %s27, 1
    %p276 = por %p274, %p275
    %p277 = scmp.ne.s32.totalorder %s268, %s269
    %p278 = scmp.eq.s32.totalorder %s27, 0
    %p279 = por %p277, %p278
    %p280 = scmp.ne.s32.totalorder %s268, %s269
    %p281 = scmp.eq.s32.totalorder %s28, 1
    %p282 = por %p280, %p281
    %p284 = scmp.ne.s32.totalorder %s269, %s283
    %p285 = scmp.eq.s32.totalorder %s28, 0
    %p286 = por %p284, %p285
    %s288 = sadd.s32 %s287, 1
    %p291 = scmp.eq.s32.totalorder %s22, 1
    %p292 = scmp.ne.s32.totalorder %s287, %s289
    %p293 = scmp.eq.s32.totalorder %s22, 0
    %p294 = por %p292, %p293
    %p295 = scmp.ne.s32.totalorder %s287, %s289
    %p296 = scmp.eq.s32.totalorder %s27, 1
    %p297 = por %p295, %p296
    %p298 = scmp.ne.s32.totalorder %s289, %s290
    %p299 = scmp.eq.s32.totalorder %s27, 0
    %p300 = por %p298, %p299
    %p301 = scmp.ne.s32.totalorder %s289, %s290
    %p302 = scmp.eq.s32.totalorder %s28, 1
    %p303 = por %p301, %p302
    %p305 = scmp.ne.s32.totalorder %s290, %s304
    %p306 = scmp.eq.s32.totalorder %s28, 0
    %p307 = por %p305, %p306
    %s309 = sadd.s32 %s308, 1
    %p312 = scmp.eq.s32.totalorder %s22, 1
    %p313 = scmp.ne.s32.totalorder %s308, %s310
    %p314 = scmp.eq.s32.totalorder %s22, 0
    %p315 = por %p313, %p314
    %p316 = scmp.ne.s32.totalorder %s308, %s310
    %p317 = scmp.eq.s32.totalorder %s27, 1
    %p318 = por %p316, %p317
    %p319 = scmp.ne.s32.totalorder %s310, %s311
    %p320 = scmp.eq.s32.totalorder %s27, 0
    %p321 = por %p319, %p320
    %p322 = scmp.ne.s32.totalorder %s310, %s311
    %p323 = scmp.eq.s32.totalorder %s28, 1
    %p324 = por %p322, %p323
    %p326 = scmp.ne.s32.totalorder %s311, %s325
    %p327 = scmp.eq.s32.totalorder %s28, 0
    %p328 = por %p326, %p327
    %s330 = sadd.s32 %s329, 1
    %p333 = scmp.eq.s32.totalorder %s22, 1
    %p334 = scmp.ne.s32.totalorder %s329, %s331
    %p335 = scmp.eq.s32.totalorder %s22, 0
    %p336 = por %p334, %p335
    %p337 = scmp.ne.s32.totalorder %s329, %s331
    %p338 = scmp.eq.s32.totalorder %s27, 1
    %p339 = por %p337, %p338
    %p340 = scmp.ne.s32.totalorder %s331, %s332
    %p341 = scmp.eq.s32.totalorder %s27, 0
    %p342 = por %p340, %p341
    %p343 = scmp.ne.s32.totalorder %s331, %s332
    %p344 = scmp.eq.s32.totalorder %s28, 1
    %p345 = por %p343, %p344
    %p347 = scmp.ne.s32.totalorder %s332, %s346
    %p348 = scmp.eq.s32.totalorder %s28, 0
    %p349 = por %p347, %p348
    %s351 = sadd.s32 %s350, 1
    %p354 = scmp.eq.s32.totalorder %s22, 1
    %p355 = scmp.ne.s32.totalorder %s350, %s352
    %p356 = scmp.eq.s32.totalorder %s22, 0
    %p357 = por %p355, %p356
    %p358 = scmp.ne.s32.totalorder %s350, %s352
    %p359 = scmp.eq.s32.totalorder %s27, 1
    %p360 = por %p358, %p359
    %p361 = scmp.ne.s32.totalorder %s352, %s353
    %p362 = scmp.eq.s32.totalorder %s27, 0
    %p363 = por %p361, %p362
    %p364 = scmp.ne.s32.totalorder %s352, %s353
    %p365 = scmp.eq.s32.totalorder %s28, 1
    %p366 = por %p364, %p365
    %p368 = scmp.ne.s32.totalorder %s353, %s367
    %p369 = scmp.eq.s32.totalorder %s28, 0
    %p370 = por %p368, %p369
    %s371 = ssub.s32 %s22, %s29
    %p372 = scmp.eq.s32.totalorder %s371, 0
    %s374 = sadd.s32 %s373, 1
    %s375 = scalar_select %p372, %s373, %s374
    %p378 = pneg %p372
    %p379 = scmp.eq.s32.totalorder %s22, 1
    %p380 = por %p378, %p379
    %p381 = scmp.ne.s32.totalorder %s373, %s376
    %p382 = scmp.eq.s32.totalorder %s22, 0
    %p383 = por %p381, %p382
    %p384 = scmp.ne.s32.totalorder %s373, %s376
    %p385 = scmp.eq.s32.totalorder %s27, 1
    %p386 = por %p384, %p385
    %p387 = scmp.ne.s32.totalorder %s376, %s377
    %p388 = scmp.eq.s32.totalorder %s27, 0
    %p389 = por %p387, %p388
    %p390 = scmp.ne.s32.totalorder %s376, %s377
    %p391 = scmp.eq.s32.totalorder %s28, 1
    %p392 = por %p390, %p391
    %p394 = scmp.ne.s32.totalorder %s377, %s393
    %p395 = scmp.eq.s32.totalorder %s28, 0
    %p396 = por %p394, %p395
    %p397 = scmp.le.s32.totalorder 1, %s22
    %p398 = scmp.lt.s32.totalorder %s22, 3
    %p399 = pnand %p397, %p398
    %p400 = pneg %p399
    // Predicated region
    $region9: #{vip_forward.5} parent=5 // pred_check
      _
    $region10: #{vip_forward.5} parent=5 // pred_check_branch
      %402 = sbr.rel (%p399) target = $region12
    $region11: #{vip_forward.5} parent=5 // pred_region
      %s403 = ssub.s32 %s22, 1
      // Predicated region
      $region13: #{vip_forward.5} parent=11 // pred_check
        %p404 = pneg %p69
      $region14: #{vip_forward.5} parent=11 // pred_check_branch
        %406 = sbr.rel (%p404) target = $region16
      $region15: #{vip_forward.5} parent=11 // pred_region
        _
      $region16: #{vip_forward.5} parent=11 // pred_fallthru
        _
      // Predicated region
      $region17: #{vip_forward.5} parent=11 // pred_check
        %p407 = pneg %p90
      $region18: #{vip_forward.5} parent=11 // pred_check_branch
        %409 = sbr.rel (%p407) target = $region20
      $region19: #{vip_forward.5} parent=11 // pred_region
        _
      $region20: #{vip_forward.5} parent=11 // pred_fallthru
        _
      // Predicated region
      $region21: #{vip_forward.5} parent=11 // pred_check
        %p410 = pneg %p111
      $region22: #{vip_forward.5} parent=11 // pred_check_branch
        %412 = sbr.rel (%p410) target = $region24
      $region23: #{vip_forward.5} parent=11 // pred_region
        _
      $region24: #{vip_forward.5} parent=11 // pred_fallthru
        _
      // Predicated region
      $region25: #{vip_forward.5} parent=11 // pred_check
        %p413 = pneg %p132
      $region26: #{vip_forward.5} parent=11 // pred_check_branch
        %415 = sbr.rel (%p413) target = $region28
      $region27: #{vip_forward.5} parent=11 // pred_region
        _
      $region28: #{vip_forward.5} parent=11 // pred_fallthru
        _
      // Predicated region
      $region29: #{vip_forward.5} parent=11 // pred_check
        %p416 = pneg %p153
      $region30: #{vip_forward.5} parent=11 // pred_check_branch
        %418 = sbr.rel (%p416) target = $region32
      $region31: #{vip_forward.5} parent=11 // pred_region
        _
      $region32: #{vip_forward.5} parent=11 // pred_fallthru
        _
      // Predicated region
      $region33: #{vip_forward.5} parent=11 // pred_check
        %p419 = pneg %p174
      $region34: #{vip_forward.5} parent=11 // pred_check_branch
        %421 = sbr.rel (%p419) target = $region36
      $region35: #{vip_forward.5} parent=11 // pred_region
        _
      $region36: #{vip_forward.5} parent=11 // pred_fallthru
        _
      // Predicated region
      $region37: #{vip_forward.5} parent=11 // pred_check
        %p422 = pneg %p195
      $region38: #{vip_forward.5} parent=11 // pred_check_branch
        %424 = sbr.rel (%p422) target = $region40
      $region39: #{vip_forward.5} parent=11 // pred_region
        _
      $region40: #{vip_forward.5} parent=11 // pred_fallthru
        _
      // Predicated region
      $region41: #{vip_forward.5} parent=11 // pred_check
        %p425 = pneg %p216
      $region42: #{vip_forward.5} parent=11 // pred_check_branch
        %427 = sbr.rel (%p425) target = $region44
      $region43: #{vip_forward.5} parent=11 // pred_region
        _
      $region44: #{vip_forward.5} parent=11 // pred_fallthru
        _
      // Predicated region
      $region45: #{vip_forward.5} parent=11 // pred_check
        %p428 = pneg %p237
      $region46: #{vip_forward.5} parent=11 // pred_check_branch
        %430 = sbr.rel (%p428) target = $region48
      $region47: #{vip_forward.5} parent=11 // pred_region
        _
      $region48: #{vip_forward.5} parent=11 // pred_fallthru
        _
      // Predicated region
      $region49: #{vip_forward.5} parent=11 // pred_check
        %p431 = pneg %p258
      $region50: #{vip_forward.5} parent=11 // pred_check_branch
        %433 = sbr.rel (%p431) target = $region52
      $region51: #{vip_forward.5} parent=11 // pred_region
        _
      $region52: #{vip_forward.5} parent=11 // pred_fallthru
        _
      // Predicated region
      $region53: #{vip_forward.5} parent=11 // pred_check
        %p434 = pneg %p279
      $region54: #{vip_forward.5} parent=11 // pred_check_branch
        %436 = sbr.rel (%p434) target = $region56
      $region55: #{vip_forward.5} parent=11 // pred_region
        _
      $region56: #{vip_forward.5} parent=11 // pred_fallthru
        _
      // Predicated region
      $region57: #{vip_forward.5} parent=11 // pred_check
        %p437 = pneg %p300
      $region58: #{vip_forward.5} parent=11 // pred_check_branch
        %439 = sbr.rel (%p437) target = $region60
      $region59: #{vip_forward.5} parent=11 // pred_region
        _
      $region60: #{vip_forward.5} parent=11 // pred_fallthru
        _
      // Predicated region
      $region61: #{vip_forward.5} parent=11 // pred_check
        %p440 = pneg %p321
      $region62: #{vip_forward.5} parent=11 // pred_check_branch
        %442 = sbr.rel (%p440) target = $region64
      $region63: #{vip_forward.5} parent=11 // pred_region
        _
      $region64: #{vip_forward.5} parent=11 // pred_fallthru
        _
      // Predicated region
      $region65: #{vip_forward.5} parent=11 // pred_check
        %p443 = pneg %p342
      $region66: #{vip_forward.5} parent=11 // pred_check_branch
        %445 = sbr.rel (%p443) target = $region68
      $region67: #{vip_forward.5} parent=11 // pred_region
        _
      $region68: #{vip_forward.5} parent=11 // pred_fallthru
        _
      // Predicated region
      $region69: #{vip_forward.5} parent=11 // pred_check
        %p446 = pneg %p363
      $region70: #{vip_forward.5} parent=11 // pred_check_branch
        %448 = sbr.rel (%p446) target = $region72
      $region71: #{vip_forward.5} parent=11 // pred_region
        _
      $region72: #{vip_forward.5} parent=11 // pred_fallthru
        _
    $region12: #{vip_forward.5} parent=5 // pred_fallthru
      _
    %p449 = scmp.lt.s32.totalorder %s22, 2
    // Predicated region
    $region73: #{vip_forward.5} parent=5 // pred_check
      %p450 = pneg %p449
    $region74: #{vip_forward.5} parent=5 // pred_check_branch
      %452 = sbr.rel (%p450) target = $region76
    $region75: #{vip_forward.5} parent=5 // pred_region
      // Predicated region
      $region77: #{vip_forward.5} parent=75 // pred_check
        %p453 = pneg %p42
      $region78: #{vip_forward.5} parent=75 // pred_check_branch
        %455 = sbr.rel (%p453) target = $region80
      $region79: #{vip_forward.5} parent=75 // pred_region
        %s456 = smul.u32 2, %s22
        %p457 = scmp.lt.s32.totalorder %s456, 3
        %s458 = scalar_select %p457, %s456, 3
        %s459 = smul.addr %s458, 8
        %s460 = scalar_lea.vmem %s0, %s459
        %s461 = smul.u32 2, %s22
      $region80: #{vip_forward.5} parent=75 // pred_fallthru
        _
    $region76: #{vip_forward.5} parent=5 // pred_fallthru
      _
    %p462 = scmp.le.s32.totalorder 1, %s22
    %p463 = scmp.lt.s32.totalorder %s22, 3
    %p464 = pnand %p462, %p463
    %p465 = pneg %p464
    // Predicated region
    $region81: #{vip_forward.5} parent=5 // pred_check
      _
    $region82: #{vip_forward.5} parent=5 // pred_check_branch
      %467 = sbr.rel (%p464) target = $region84
    $region83: #{vip_forward.5} parent=5 // pred_region
      %s468 = ssub.s32 %s22, 1
      %s469 = smul.u32 2, %s27
      %p470 = scmp.lt.s32.totalorder %s469, 3
      %s471 = scalar_select %p470, %s469, 3
      %s472 = smul.addr %s471, 8
      %s473 = scalar_lea.vmem %s0, %s472
      %p474 = pneg %p48
      %p475 = pneg %p45
      %p476 = pneg %p69
      %p477 = pneg %p66
      %p478 = pneg %p90
      %p479 = pneg %p87
      %p480 = pneg %p111
      %p481 = pneg %p108
      %p482 = pneg %p132
      %p483 = pneg %p129
      %p484 = pneg %p153
      %p485 = pneg %p150
      %p486 = pneg %p174
      %p487 = pneg %p171
      %p488 = pneg %p195
      %p489 = pneg %p192
      %p490 = pneg %p216
      %p491 = pneg %p213
      %p492 = pneg %p237
      %p493 = pneg %p234
      %p494 = pneg %p258
      %p495 = pneg %p255
      %p496 = pneg %p279
      %p497 = pneg %p276
      %p498 = pneg %p300
      %p499 = pneg %p297
      %p500 = pneg %p321
      %p501 = pneg %p318
      %p502 = pneg %p342
      %p503 = pneg %p339
      %p504 = pneg %p363
      %p505 = pneg %p360
      %p506 = pneg %p389
      %p507 = pneg %p386
      %s508 = smul.u32 2, %s27
      %p509 = scmp.lt.s32.totalorder %s508, 3
      %s510 = scalar_select %p509, %s508, 3
      %s511 = smul.addr %s510, 8
      %s512 = scalar_lea.vmem %s16, %s511
      %s513 = smul.u32 2, %s27
      %p514 = scmp.lt.s32.totalorder %s513, 3
      %s515 = scalar_select %p514, %s513, 3
      %s516 = smul.addr %s515, 8
      %s517 = scalar_lea.vmem %s0, %s516
      %s518 = smul.u32 2, %s27
      %s519 = smul.u32 2, %s27
      %p520 = scmp.lt.s32.totalorder %s519, 3
      %s521 = scalar_select %p520, %s519, 3
      %s522 = smul.addr %s521, 8
      %s523 = scalar_lea.vmem %s16, %s522
      %s524 = smul.u32 2, %s27
      %v525 = vld [vmem:[%s517] sm:$0xff]
      %v526 = vld [vmem:[%s517 + $0x8] sm:$0xff]
      %v527 = vld [vmem:[%s1] sm:$0x1]
      %v528 = vld [vmem:[%s2] sm:$0x1]
      %vm529 = vcmask 261120
      %v530 = vsel %vm529, %v525, 0.0
      %531 = vadd.xlane.f32.xlu0 %v530
      %v532 = vpop.xlane.xlu0 %531
      %v533 = vsel %vm529, %v526, 0.0
      %534 = vadd.xlane.f32.xlu0 %v533
      %v535 = vpop.xlane.xlu0 %534
      %v536 = vrcp.pop 32.0
      %v537 = vmul.f32 %v532, %v536
      %v538 = vmul.f32 %v535, %v536
      %v539 = vsub.f32 %v525, %v537
      %v540 = vsub.f32 %v526, %v538
      %v541 = vmul.f32 %v539, %v539
      %v542 = vmul.f32 %v540, %v540
      %v543 = vsel %vm529, %v541, 0.0
      %544 = vadd.xlane.f32.xlu0 %v543
      %v545 = vpop.xlane.xlu0 %544
      %v546 = vsel %vm529, %v542, 0.0
      %547 = vadd.xlane.f32.xlu0 %v546
      %v548 = vpop.xlane.xlu0 %547
      %v549 = vmul.f32 %v545, %v536
      %v550 = vmul.f32 %v548, %v536
      %v551 = vadd.f32 %v549, 1e-05
      %v552 = vadd.f32 %v550, 1e-05
      %v553 = vrsqrt.pop %v551
      %v554 = vrsqrt.pop %v552
      %v555 = vmul.f32 %v539, %v553
      %v556 = vmul.f32 %v540, %v554
      %v558 = vlaneseq
      %v559 = vshrl.u32 %v558, 7
      %v560 = vsub.s32 0, %v559
      %v561 = vrot.slane %v527, %v560
      %v563 = vmul.f32 %v555, %v561
      %v564 = vmul.f32 %v556, %v561
      %v566 = vlaneseq
      %v567 = vshrl.u32 %v566, 7
      %v568 = vsub.s32 0, %v567
      %v569 = vrot.slane %v528, %v568
      %v571 = vadd.f32 %v563, %v569
      %v572 = vadd.f32 %v564, %v569
      %v573 = vld [vmem:[%s6] sm:$0xff]
      %v574 = vld [vmem:[%s6 + $0x8] sm:$0xff]
      %v575 = vld [vmem:[%s6 + $0x10] sm:$0xff]
      %v576 = vld [vmem:[%s6 + $0x18] sm:$0xff]
      %v577 = vld [vmem:[%s6 + $0x20] sm:$0xff]
      %v578 = vld [vmem:[%s6 + $0x28] sm:$0xff]
      %v579 = vld [vmem:[%s6 + $0x30] sm:$0xff]
      %v580 = vld [vmem:[%s6 + $0x38] sm:$0xff]
      %v581 = vld [vmem:[%s6 + $0x40] sm:$0xff]
      %v582 = vld [vmem:[%s6 + $0x48] sm:$0xff]
      %v583 = vld [vmem:[%s6 + $0x50] sm:$0xff]
      %v584 = vld [vmem:[%s6 + $0x58] sm:$0xff]
      %v585 = vld [vmem:[%s6 + $0x60] sm:$0xff]
      %v586 = vld [vmem:[%s6 + $0x68] sm:$0xff]
      %v587 = vld [vmem:[%s6 + $0x70] sm:$0xff]
      %v588 = vld [vmem:[%s6 + $0x78] sm:$0xff]
      %v590 = vsel %vm529, %v571, 0
      %v593 = vsel %vm529, %v572, 0
      %595 = vmatprep.subr.mxu0 %v574
      %596 = vmatpush1.msra.mxu0 %v573
      %597 = vmatprep.subr.mxu0 %v578
      %598 = vmatpush1.msra.mxu0 %v577
      %599 = vmatprep.subr.mxu0 %v582
      %600 = vmatpush1.msra.mxu0 %v581
      %601 = vmatprep.subr.mxu0 %v586
      %602 = vmatpush1.msra.mxu0 %v585
      %603 = vmatprep.subr.mxu0 0.0
      %604 = vmatpush1.msra.mxu0 0.0
      %605 = vmatprep.subr.mxu0 0.0
      %606 = vmatpush1.msra.mxu0 0.0
      %607 = vmatprep.subr.mxu0 0.0
      %608 = vmatpush1.msra.mxu0 0.0
      %609 = vmatprep.subr.mxu0 0.0
      %610 = vmatpush1.msra.mxu0 0.0
      %611 = vmatprep.subr.mxu0 0.0
      %612 = vmatpush1.msra.mxu0 0.0
      %613 = vmatprep.subr.mxu0 0.0
      %614 = vmatpush1.msra.mxu0 0.0
      %615 = vmatprep.subr.mxu0 0.0
      %616 = vmatpush1.msra.mxu0 0.0
      %617 = vmatprep.subr.mxu0 0.0
      %618 = vmatpush1.msra.mxu0 0.0
      %619 = vmatprep.subr.mxu0 0.0
      %620 = vmatpush1.msra.mxu0 0.0
      %621 = vmatprep.subr.mxu0 0.0
      %622 = vmatpush1.msra.mxu0 0.0
      %623 = vmatprep.subr.mxu0 0.0
      %624 = vmatpush1.msra.mxu0 0.0
      %625 = vmatprep.subr.mxu0 0.0
      %626 = vmatpush1.msra.mxu0 0.0
      %627 = vmatprep.subr.mxu0 0.0
      %628 = vmatpush1.msra.mxu0 0.0
      %629 = vmatprep.subr.mxu0 0.0
      %630 = vmatpush1.msra.mxu0 0.0
      %631 = vmatprep.subr.mxu0 0.0
      %632 = vmatpush1.msra.mxu0 0.0
      %633 = vmatprep.subr.mxu0 0.0
      %634 = vmatpush1.msra.mxu0 0.0
      %635 = vmatprep.subr.mxu0 0.0
      %636 = vmatpush1.msra.mxu0 0.0
      %637 = vmatprep.subr.mxu0 0.0
      %638 = vmatpush1.msra.mxu0 0.0
      %639 = vmatprep.subr.mxu0 0.0
      %640 = vmatpush1.msra.mxu0 0.0
      %641 = vmatprep.subr.mxu0 0.0
      %642 = vmatpush1.msra.mxu0 0.0
      %643 = vmatprep.subr.mxu0 0.0
      %644 = vmatpush1.msra.mxu0 0.0
      %645 = vmatprep.subr.mxu0 0.0
      %646 = vmatpush1.msra.mxu0 0.0
      %647 = vmatprep.subr.mxu0 0.0
      %648 = vmatpush1.msra.mxu0 0.0
      %649 = vmatprep.subr.mxu0 0.0
      %650 = vmatpush1.msra.mxu0 0.0
      %651 = vmatprep.subr.mxu0 0.0
      %652 = vmatpush1.msra.mxu0 0.0
      %653 = vmatprep.subr.mxu0 0.0
      %654 = vmatpush1.msra.mxu0 0.0
      %655 = vmatprep.subr.mxu0 0.0
      %656 = vmatpush1.msra.mxu0 0.0
      %657 = vmatprep.subr.mxu0 0.0
      %658 = vmatpush1.msra.mxu0 0.0
      %659 = vmatprep.mubr.f32.mxu0 0.0
      %660 = vmatmul.mubr.f32.gmra.mrb[0].mxu0 %v590
      %v661 = vpop.f32.mrb[0].mxu0
      %v662 = vadd.f32 0.0, %v661
      %v663 = vpop.f32.mrb[0].mxu0
      %v664 = vadd.f32 0.0, %v663
      %665 = vmatprep.mubr.f32.mxu0 0.0
      %666 = vmatmul.mubr.f32.gmra.mrb[0].mxu0 %v593
      %v667 = vpop.f32.mrb[0].mxu0
      %v668 = vadd.f32 0.0, %v667
      %v669 = vpop.f32.mrb[0].mxu0
      %v670 = vadd.f32 0.0, %v669
      %671 = vdwg.mxu0
      %672 = vmatprep.subr.mxu0 %v576
      %673 = vmatpush1.msra.mxu0 %v575
      %674 = vmatprep.subr.mxu0 %v580
      %675 = vmatpush1.msra.mxu0 %v579
      %676 = vmatprep.subr.mxu0 %v584
      %677 = vmatpush1.msra.mxu0 %v583
      %678 = vmatprep.subr.mxu0 %v588
      %679 = vmatpush1.msra.mxu0 %v587
      %680 = vmatprep.subr.mxu0 0.0
      %681 = vmatpush1.msra.mxu0 0.0
      %682 = vmatprep.subr.mxu0 0.0
      %683 = vmatpush1.msra.mxu0 0.0
      %684 = vmatprep.subr.mxu0 0.0
      %685 = vmatpush1.msra.mxu0 0.0
      %686 = vmatprep.subr.mxu0 0.0
      %687 = vmatpush1.msra.mxu0 0.0
      %688 = vmatprep.subr.mxu0 0.0
      %689 = vmatpush1.msra.mxu0 0.0
      %690 = vmatprep.subr.mxu0 0.0
      %691 = vmatpush1.msra.mxu0 0.0
      %692 = vmatprep.subr.mxu0 0.0
      %693 = vmatpush1.msra.mxu0 0.0
      %694 = vmatprep.subr.mxu0 0.0
      %695 = vmatpush1.msra.mxu0 0.0
      %696 = vmatprep.subr.mxu0 0.0
      %697 = vmatpush1.msra.mxu0 0.0
      %698 = vmatprep.subr.mxu0 0.0
      %699 = vmatpush1.msra.mxu0 0.0
      %700 = vmatprep.subr.mxu0 0.0
      %701 = vmatpush1.msra.mxu0 0.0
      %702 = vmatprep.subr.mxu0 0.0
      %703 = vmatpush1.msra.mxu0 0.0
      %704 = vmatprep.subr.mxu0 0.0
      %705 = vmatpush1.msra.mxu0 0.0
      %706 = vmatprep.subr.mxu0 0.0
      %707 = vmatpush1.msra.mxu0 0.0
      %708 = vmatprep.subr.mxu0 0.0
      %709 = vmatpush1.msra.mxu0 0.0
      %710 = vmatprep.subr.mxu0 0.0
      %711 = vmatpush1.msra.mxu0 0.0
      %712 = vmatprep.subr.mxu0 0.0
      %713 = vmatpush1.msra.mxu0 0.0
      %714 = vmatprep.subr.mxu0 0.0
      %715 = vmatpush1.msra.mxu0 0.0
      %716 = vmatprep.subr.mxu0 0.0
      %717 = vmatpush1.msra.mxu0 0.0
      %718 = vmatprep.subr.mxu0 0.0
      %719 = vmatpush1.msra.mxu0 0.0
      %720 = vmatprep.subr.mxu0 0.0
      %721 = vmatpush1.msra.mxu0 0.0
      %722 = vmatprep.subr.mxu0 0.0
      %723 = vmatpush1.msra.mxu0 0.0
      %724 = vmatprep.subr.mxu0 0.0
      %725 = vmatpush1.msra.mxu0 0.0
      %726 = vmatprep.subr.mxu0 0.0
      %727 = vmatpush1.msra.mxu0 0.0
      %728 = vmatprep.subr.mxu0 0.0
      %729 = vmatpush1.msra.mxu0 0.0
      %730 = vmatprep.subr.mxu0 0.0
      %731 = vmatpush1.msra.mxu0 0.0
      %732 = vmatprep.subr.mxu0 0.0
      %733 = vmatpush1.msra.mxu0 0.0
      %734 = vmatprep.subr.mxu0 0.0
      %735 = vmatpush1.msra.mxu0 0.0
      %736 = vmatprep.mubr.f32.mxu0 0.0
      %737 = vmatmul.mubr.f32.gmra.mrb[0].mxu0 %v590
      %v738 = vpop.f32.mrb[0].mxu0
      %v739 = vadd.f32 0.0, %v738
      %v740 = vpop.f32.mrb[0].mxu0
      %v741 = vadd.f32 0.0, %v740
      %742 = vmatprep.mubr.f32.mxu0 0.0
      %743 = vmatmul.mubr.f32.gmra.mrb[0].mxu0 %v593
      %v744 = vpop.f32.mrb[0].mxu0
      %v745 = vadd.f32 0.0, %v744
      %v746 = vpop.f32.mrb[0].mxu0
      %v747 = vadd.f32 0.0, %v746
      %748 = vdwg.mxu0
      %v749 = vld [vmem:[%s3] sm:$0xff]
      %v750 = vld [vmem:[%s3 + $0x8] sm:$0xff]
      %v751 = vld [vmem:[%s3 + $0x10] sm:$0xff]
      %v752 = vld [vmem:[%s3 + $0x18] sm:$0xff]
      %v753 = vld [vmem:[%s3 + $0x20] sm:$0xff]
      %v754 = vld [vmem:[%s3 + $0x28] sm:$0xff]
      %v755 = vld [vmem:[%s3 + $0x30] sm:$0xff]
      %v756 = vld [vmem:[%s3 + $0x38] sm:$0xff]
      %v757 = vmul.f32 %v662, %v749
      %v758 = vmul.f32 %v664, %v750
      %v759 = vmul.f32 %v739, %v751
      %v760 = vmul.f32 %v741, %v752
      %v761 = vmul.f32 %v668, %v753
      %v762 = vmul.f32 %v670, %v754
      %v763 = vmul.f32 %v745, %v755
      %v764 = vmul.f32 %v747, %v756
      %v765 = vld [vmem:[%s4] sm:$0x1]
      %vm766 = vcmask 130048
      %v768 = vsel %vm766, %v765, 0
      %770 = vmatprep.subr.mxu0 %v758
      %771 = vmatpush1.msra.mxu0 %v757
      %772 = vmatprep.subr.mxu0 %v762
      %773 = vmatpush1.msra.mxu0 %v761
      %774 = vmatprep.subr.mxu0 0.0
      %775 = vmatpush1.msra.mxu0 0.0
      %776 = vmatprep.subr.mxu0 0.0
      %777 = vmatpush1.msra.mxu0 0.0
      %778 = vmatprep.subr.mxu0 0.0
      %779 = vmatpush1.msra.mxu0 0.0
      %780 = vmatprep.subr.mxu0 0.0
      %781 = vmatpush1.msra.mxu0 0.0
      %782 = vmatprep.subr.mxu0 0.0
      %783 = vmatpush1.msra.mxu0 0.0
      %784 = vmatprep.subr.mxu0 0.0
      %785 = vmatpush1.msra.mxu0 0.0
      %786 = vmatprep.subr.mxu0 0.0
      %787 = vmatpush1.msra.mxu0 0.0
      %788 = vmatprep.subr.mxu0 0.0
      %789 = vmatpush1.msra.mxu0 0.0
      %790 = vmatprep.subr.mxu0 0.0
      %791 = vmatpush1.msra.mxu0 0.0
      %792 = vmatprep.subr.mxu0 0.0
      %793 = vmatpush1.msra.mxu0 0.0
      %794 = vmatprep.subr.mxu0 0.0
      %795 = vmatpush1.msra.mxu0 0.0
      %796 = vmatprep.subr.mxu0 0.0
      %797 = vmatpush1.msra.mxu0 0.0
      %798 = vmatprep.subr.mxu0 0.0
      %799 = vmatpush1.msra.mxu0 0.0
      %800 = vmatprep.subr.mxu0 0.0
      %801 = vmatpush1.msra.mxu0 0.0
      %802 = vmatprep.subr.mxu0 0.0
      %803 = vmatpush1.msra.mxu0 0.0
      %804 = vmatprep.subr.mxu0 0.0
      %805 = vmatpush1.msra.mxu0 0.0
      %806 = vmatprep.subr.mxu0 0.0
      %807 = vmatpush1.msra.mxu0 0.0
      %808 = vmatprep.subr.mxu0 0.0
      %809 = vmatpush1.msra.mxu0 0.0
      %810 = vmatprep.subr.mxu0 0.0
      %811 = vmatpush1.msra.mxu0 0.0
      %812 = vmatprep.subr.mxu0 0.0
      %813 = vmatpush1.msra.mxu0 0.0
      %814 = vmatprep.subr.mxu0 0.0
      %815 = vmatpush1.msra.mxu0 0.0
      %816 = vmatprep.subr.mxu0 0.0
      %817 = vmatpush1.msra.mxu0 0.0
      %818 = vmatprep.subr.mxu0 0.0
      %819 = vmatpush1.msra.mxu0 0.0
      %820 = vmatprep.subr.mxu0 0.0
      %821 = vmatpush1.msra.mxu0 0.0
      %822 = vmatprep.subr.mxu0 0.0
      %823 = vmatpush1.msra.mxu0 0.0
      %824 = vmatprep.subr.mxu0 0.0
      %825 = vmatpush1.msra.mxu0 0.0
      %826 = vmatprep.subr.mxu0 0.0
      %827 = vmatpush1.msra.mxu0 0.0
      %828 = vmatprep.subr.mxu0 0.0
      %829 = vmatpush1.msra.mxu0 0.0
      %830 = vmatprep.subr.mxu0 0.0
      %831 = vmatpush1.msra.mxu0 0.0
      %832 = vmatprep.subr.mxu0 0.0
      %833 = vmatpush1.msra.mxu0 0.0
      %834 = vmatprep.mubr.f32.mxu0 0.0
      %835 = vmatmul.mubr.f32.gmra.mrb[0].mxu0 %v768
      %v836 = vpop.f32.mrb[0].mxu0
      %v837 = vadd.f32 0.0, %v836
      %v838 = vpop.f32.mrb[0].mxu0
      %v839 = vadd.f32 0.0, %v838
      %840 = vdwg.mxu0
      %841 = vmatprep.subr.mxu0 %v760
      %842 = vmatpush1.msra.mxu0 %v759
      %843 = vmatprep.subr.mxu0 %v764
      %844 = vmatpush1.msra.mxu0 %v763
      %845 = vmatprep.subr.mxu0 0.0
      %846 = vmatpush1.msra.mxu0 0.0
      %847 = vmatprep.subr.mxu0 0.0
      %848 = vmatpush1.msra.mxu0 0.0
      %849 = vmatprep.subr.mxu0 0.0
      %850 = vmatpush1.msra.mxu0 0.0
      %851 = vmatprep.subr.mxu0 0.0
      %852 = vmatpush1.msra.mxu0 0.0
      %853 = vmatprep.subr.mxu0 0.0
      %854 = vmatpush1.msra.mxu0 0.0
      %855 = vmatprep.subr.mxu0 0.0
      %856 = vmatpush1.msra.mxu0 0.0
      %857 = vmatprep.subr.mxu0 0.0
      %858 = vmatpush1.msra.mxu0 0.0
      %859 = vmatprep.subr.mxu0 0.0
      %860 = vmatpush1.msra.mxu0 0.0
      %861 = vmatprep.subr.mxu0 0.0
      %862 = vmatpush1.msra.mxu0 0.0
      %863 = vmatprep.subr.mxu0 0.0
      %864 = vmatpush1.msra.mxu0 0.0
      %865 = vmatprep.subr.mxu0 0.0
      %866 = vmatpush1.msra.mxu0 0.0
      %867 = vmatprep.subr.mxu0 0.0
      %868 = vmatpush1.msra.mxu0 0.0
      %869 = vmatprep.subr.mxu0 0.0
      %870 = vmatpush1.msra.mxu0 0.0
      %871 = vmatprep.subr.mxu0 0.0
      %872 = vmatpush1.msra.mxu0 0.0
      %873 = vmatprep.subr.mxu0 0.0
      %874 = vmatpush1.msra.mxu0 0.0
      %875 = vmatprep.subr.mxu0 0.0
      %876 = vmatpush1.msra.mxu0 0.0
      %877 = vmatprep.subr.mxu0 0.0
      %878 = vmatpush1.msra.mxu0 0.0
      %879 = vmatprep.subr.mxu0 0.0
      %880 = vmatpush1.msra.mxu0 0.0
      %881 = vmatprep.subr.mxu0 0.0
      %882 = vmatpush1.msra.mxu0 0.0
      %883 = vmatprep.subr.mxu0 0.0
      %884 = vmatpush1.msra.mxu0 0.0
      %885 = vmatprep.subr.mxu0 0.0
      %886 = vmatpush1.msra.mxu0 0.0
      %887 = vmatprep.subr.mxu0 0.0
      %888 = vmatpush1.msra.mxu0 0.0
      %889 = vmatprep.subr.mxu0 0.0
      %890 = vmatpush1.msra.mxu0 0.0
      %891 = vmatprep.subr.mxu0 0.0
      %892 = vmatpush1.msra.mxu0 0.0
      %893 = vmatprep.subr.mxu0 0.0
      %894 = vmatpush1.msra.mxu0 0.0
      %895 = vmatprep.subr.mxu0 0.0
      %896 = vmatpush1.msra.mxu0 0.0
      %897 = vmatprep.subr.mxu0 0.0
      %898 = vmatpush1.msra.mxu0 0.0
      %899 = vmatprep.subr.mxu0 0.0
      %900 = vmatpush1.msra.mxu0 0.0
      %901 = vmatprep.subr.mxu0 0.0
      %902 = vmatpush1.msra.mxu0 0.0
      %903 = vmatprep.subr.mxu0 0.0
      %904 = vmatpush1.msra.mxu0 0.0
      %905 = vmatprep.mubr.f32.mxu0 0.0
      %906 = vmatmul.mubr.f32.gmra.mrb[0].mxu0 %v768
      %v907 = vpop.f32.mrb[0].mxu0
      %v908 = vadd.f32 0.0, %v907
      %v909 = vpop.f32.mrb[0].mxu0
      %v910 = vadd.f32 0.0, %v909
      %911 = vdwg.mxu0
      %v912 = vld [vmem:[%s8] sm:$0xff]
      %v913 = vld [vmem:[%s8 + $0x8] sm:$0xff]
      %v914 = vld [vmem:[%s8 + $0x10] sm:$0xff]
      %v915 = vld [vmem:[%s8 + $0x18] sm:$0xff]
      %v916 = vld [vmem:[%s8 + $0x20] sm:$0xff]
      %v917 = vld [vmem:[%s8 + $0x28] sm:$0xff]
      %v918 = vld [vmem:[%s8 + $0x30] sm:$0xff]
      %v919 = vld [vmem:[%s8 + $0x38] sm:$0xff]
      %v920 = vld [vmem:[%s8 + $0x40] sm:$0xff]
      %v921 = vld [vmem:[%s8 + $0x48] sm:$0xff]
      %v922 = vld [vmem:[%s8 + $0x50] sm:$0xff]
      %v923 = vld [vmem:[%s8 + $0x58] sm:$0xff]
      %v924 = vld [vmem:[%s8 + $0x60] sm:$0xff]
      %v925 = vld [vmem:[%s8 + $0x68] sm:$0xff]
      %v926 = vld [vmem:[%s8 + $0x70] sm:$0xff]
      %v927 = vld [vmem:[%s8 + $0x78] sm:$0xff]
      %v928 = vld [vmem:[%s8 + $0x80] sm:$0xff]
      %v929 = vld [vmem:[%s8 + $0x88] sm:$0xff]
      %v930 = vld [vmem:[%s8 + $0x90] sm:$0xff]
      %v931 = vld [vmem:[%s8 + $0x98] sm:$0xff]
      %v932 = vld [vmem:[%s8 + $0xa0] sm:$0xff]
      %v933 = vld [vmem:[%s8 + $0xa8] sm:$0xff]
      %v934 = vld [vmem:[%s8 + $0xb0] sm:$0xff]
      %v935 = vld [vmem:[%s8 + $0xb8] sm:$0xff]
      %v936 = vld [vmem:[%s8 + $0xc0] sm:$0xff]
      %v937 = vld [vmem:[%s8 + $0xc8] sm:$0xff]
      %v938 = vld [vmem:[%s8 + $0xd0] sm:$0xff]
      %v939 = vld [vmem:[%s8 + $0xd8] sm:$0xff]
      %v940 = vld [vmem:[%s8 + $0xe0] sm:$0xff]
      %v941 = vld [vmem:[%s8 + $0xe8] sm:$0xff]
      %v942 = vld [vmem:[%s8 + $0xf0] sm:$0xff]
      %v943 = vld [vmem:[%s8 + $0xf8] sm:$0xff]
      %v944 = vld [vmem:[%s8 + $0x100] sm:$0xff]
      %v945 = vld [vmem:[%s8 + $0x108] sm:$0xff]
      %v946 = vld [vmem:[%s8 + $0x110] sm:$0xff]
      %v947 = vld [vmem:[%s8 + $0x118] sm:$0xff]
      %v948 = vld [vmem:[%s8 + $0x120] sm:$0xff]
      %v949 = vld [vmem:[%s8 + $0x128] sm:$0xff]
      %v950 = vld [vmem:[%s8 + $0x130] sm:$0xff]
      %v951 = vld [vmem:[%s8 + $0x138] sm:$0xff]
      %v952 = vld [vmem:[%s8 + $0x140] sm:$0xff]
      %v953 = vld [vmem:[%s8 + $0x148] sm:$0xff]
      %v954 = vld [vmem:[%s8 + $0x150] sm:$0xff]
      %v955 = vld [vmem:[%s8 + $0x158] sm:$0xff]
      %v956 = vld [vmem:[%s8 + $0x160] sm:$0xff]
      %v957 = vld [vmem:[%s8 + $0x168] sm:$0xff]
      %v958 = vld [vmem:[%s8 + $0x170] sm:$0xff]
      %v959 = vld [vmem:[%s8 + $0x178] sm:$0xff]
      %v960 = vld [vmem:[%s8 + $0x180] sm:$0xff]
      %v961 = vld [vmem:[%s8 + $0x188] sm:$0xff]
      %v962 = vld [vmem:[%s8 + $0x190] sm:$0xff]
      %v963 = vld [vmem:[%s8 + $0x198] sm:$0xff]
      %v964 = vld [vmem:[%s8 + $0x1a0] sm:$0xff]
      %v965 = vld [vmem:[%s8 + $0x1a8] sm:$0xff]
      %v966 = vld [vmem:[%s8 + $0x1b0] sm:$0xff]
      %v967 = vld [vmem:[%s8 + $0x1b8] sm:$0xff]
      %v968 = vld [vmem:[%s8 + $0x1c0] sm:$0xff]
      %v969 = vld [vmem:[%s8 + $0x1c8] sm:$0xff]
      %v970 = vld [vmem:[%s8 + $0x1d0] sm:$0xff]
      %v971 = vld [vmem:[%s8 + $0x1d8] sm:$0xff]
      %v972 = vld [vmem:[%s8 + $0x1e0] sm:$0xff]
      %v973 = vld [vmem:[%s8 + $0x1e8] sm:$0xff]
      %v974 = vld [vmem:[%s8 + $0x1f0] sm:$0xff]
      %v975 = vld [vmem:[%s8 + $0x1f8] sm:$0xff]
      %v976 = vld [vmem:[%s8 + $0x200] sm:$0xff]
      %v977 = vld [vmem:[%s8 + $0x208] sm:$0xff]
      %v978 = vld [vmem:[%s8 + $0x210] sm:$0xff]
      %v979 = vld [vmem:[%s8 + $0x218] sm:$0xff]
      %v980 = vld [vmem:[%s8 + $0x220] sm:$0xff]
      %v981 = vld [vmem:[%s8 + $0x228] sm:$0xff]
      %v982 = vld [vmem:[%s8 + $0x230] sm:$0xff]
      %v983 = vld [vmem:[%s8 + $0x238] sm:$0xff]
      %v984 = vld [vmem:[%s8 + $0x240] sm:$0xff]
      %v985 = vld [vmem:[%s8 + $0x248] sm:$0xff]
      %v986 = vld [vmem:[%s8 + $0x250] sm:$0xff]
      %v987 = vld [vmem:[%s8 + $0x258] sm:$0xff]
      %v988 = vld [vmem:[%s8 + $0x260] sm:$0xff]
      %v989 = vld [vmem:[%s8 + $0x268] sm:$0xff]
      %v990 = vld [vmem:[%s8 + $0x270] sm:$0xff]
      %v991 = vld [vmem:[%s8 + $0x278] sm:$0xff]
      %v992 = vld [vmem:[%s8 + $0x280] sm:$0xff]
      %v993 = vld [vmem:[%s8 + $0x288] sm:$0xff]
      %v994 = vld [vmem:[%s8 + $0x290] sm:$0xff]
      %v995 = vld [vmem:[%s8 + $0x298] sm:$0xff]
      %v996 = vld [vmem:[%s8 + $0x2a0] sm:$0xff]
      %v997 = vld [vmem:[%s8 + $0x2a8] sm:$0xff]
      %v998 = vld [vmem:[%s8 + $0x2b0] sm:$0xff]
      %v999 = vld [vmem:[%s8 + $0x2b8] sm:$0xff]
      %v1000 = vld [vmem:[%s8 + $0x2c0] sm:$0xff]
      %v1001 = vld [vmem:[%s8 + $0x2c8] sm:$0xff]
      %v1002 = vld [vmem:[%s8 + $0x2d0] sm:$0xff]
      %v1003 = vld [vmem:[%s8 + $0x2d8] sm:$0xff]
      %v1004 = vld [vmem:[%s8 + $0x2e0] sm:$0xff]
      %v1005 = vld [vmem:[%s8 + $0x2e8] sm:$0xff]
      %v1006 = vld [vmem:[%s8 + $0x2f0] sm:$0xff]
      %v1007 = vld [vmem:[%s8 + $0x2f8] sm:$0xff]
      %v1008 = vld [vmem:[%s8 + $0x300] sm:$0xff]
      %v1009 = vld [vmem:[%s8 + $0x308] sm:$0xff]
      %v1010 = vld [vmem:[%s8 + $0x310] sm:$0xff]
      %v1011 = vld [vmem:[%s8 + $0x318] sm:$0xff]
      %v1012 = vld [vmem:[%s8 + $0x320] sm:$0xff]
      %v1013 = vld [vmem:[%s8 + $0x328] sm:$0xff]
      %v1014 = vld [vmem:[%s8 + $0x330] sm:$0xff]
      %v1015 = vld [vmem:[%s8 + $0x338] sm:$0xff]
      %v1016 = vld [vmem:[%s8 + $0x340] sm:$0xff]
      %v1017 = vld [vmem:[%s8 + $0x348] sm:$0xff]
      %v1018 = vld [vmem:[%s8 + $0x350] sm:$0xff]
      %v1019 = vld [vmem:[%s8 + $0x358] sm:$0xff]
      %v1020 = vld [vmem:[%s8 + $0x360] sm:$0xff]
      %v1021 = vld [vmem:[%s8 + $0x368] sm:$0xff]
      %v1022 = vld [vmem:[%s8 + $0x370] sm:$0xff]
      %v1023 = vld [vmem:[%s8 + $0x378] sm:$0xff]
      %v1024 = vld [vmem:[%s8 + $0x380] sm:$0xff]
      %v1025 = vld [vmem:[%s8 + $0x388] sm:$0xff]
      %v1026 = vld [vmem:[%s8 + $0x390] sm:$0xff]
      %v1027 = vld [vmem:[%s8 + $0x398] sm:$0xff]
      %v1028 = vld [vmem:[%s8 + $0x3a0] sm:$0xff]
      %v1029 = vld [vmem:[%s8 + $0x3a8] sm:$0xff]
      %v1030 = vld [vmem:[%s8 + $0x3b0] sm:$0xff]
      %v1031 = vld [vmem:[%s8 + $0x3b8] sm:$0xff]
      %v1032 = vld [vmem:[%s8 + $0x3c0] sm:$0xff]
      %v1033 = vld [vmem:[%s8 + $0x3c8] sm:$0xff]
      %v1034 = vld [vmem:[%s8 + $0x3d0] sm:$0xff]
      %v1035 = vld [vmem:[%s8 + $0x3d8] sm:$0xff]
      %v1036 = vld [vmem:[%s8 + $0x3e0] sm:$0xff]
      %v1037 = vld [vmem:[%s8 + $0x3e8] sm:$0xff]
      %v1038 = vld [vmem:[%s8 + $0x3f0] sm:$0xff]
      %v1039 = vld [vmem:[%s8 + $0x3f8] sm:$0xff]
      %v1040 = vld [vmem:[%s8 + $0x400] sm:$0xff]
      %v1041 = vld [vmem:[%s8 + $0x408] sm:$0xff]
      %v1042 = vld [vmem:[%s8 + $0x410] sm:$0xff]
      %v1043 = vld [vmem:[%s8 + $0x418] sm:$0xff]
      %v1044 = vld [vmem:[%s8 + $0x420] sm:$0xff]
      %v1045 = vld [vmem:[%s8 + $0x428] sm:$0xff]
      %v1046 = vld [vmem:[%s8 + $0x430] sm:$0xff]
      %v1047 = vld [vmem:[%s8 + $0x438] sm:$0xff]
      %v1048 = vld [vmem:[%s8 + $0x440] sm:$0xff]
      %v1049 = vld [vmem:[%s8 + $0x448] sm:$0xff]
      %v1050 = vld [vmem:[%s8 + $0x450] sm:$0xff]
      %v1051 = vld [vmem:[%s8 + $0x458] sm:$0xff]
      %v1052 = vld [vmem:[%s8 + $0x460] sm:$0xff]
      %v1053 = vld [vmem:[%s8 + $0x468] sm:$0xff]
      %v1054 = vld [vmem:[%s8 + $0x470] sm:$0xff]
      %v1055 = vld [vmem:[%s8 + $0x478] sm:$0xff]
      %v1056 = vld [vmem:[%s8 + $0x480] sm:$0xff]
      %v1057 = vld [vmem:[%s8 + $0x488] sm:$0xff]
      %v1058 = vld [vmem:[%s8 + $0x490] sm:$0xff]
      %v1059 = vld [vmem:[%s8 + $0x498] sm:$0xff]
      %v1060 = vld [vmem:[%s8 + $0x4a0] sm:$0xff]
      %v1061 = vld [vmem:[%s8 + $0x4a8] sm:$0xff]
      %v1062 = vld [vmem:[%s8 + $0x4b0] sm:$0xff]
      %v1063 = vld [vmem:[%s8 + $0x4b8] sm:$0xff]
      %v1064 = vld [vmem:[%s8 + $0x4c0] sm:$0xff]
      %v1065 = vld [vmem:[%s8 + $0x4c8] sm:$0xff]
      %v1066 = vld [vmem:[%s8 + $0x4d0] sm:$0xff]
      %v1067 = vld [vmem:[%s8 + $0x4d8] sm:$0xff]
      %v1068 = vld [vmem:[%s8 + $0x4e0] sm:$0xff]
      %v1069 = vld [vmem:[%s8 + $0x4e8] sm:$0xff]
      %v1070 = vld [vmem:[%s8 + $0x4f0] sm:$0xff]
      %v1071 = vld [vmem:[%s8 + $0x4f8] sm:$0xff]
      %v1072 = vld [vmem:[%s8 + $0x500] sm:$0xff]
      %v1073 = vld [vmem:[%s8 + $0x508] sm:$0xff]
      %v1074 = vld [vmem:[%s8 + $0x510] sm:$0xff]
      %v1075 = vld [vmem:[%s8 + $0x518] sm:$0xff]
      %v1076 = vld [vmem:[%s8 + $0x520] sm:$0xff]
      %v1077 = vld [vmem:[%s8 + $0x528] sm:$0xff]
      %v1078 = vld [vmem:[%s8 + $0x530] sm:$0xff]
      %v1079 = vld [vmem:[%s8 + $0x538] sm:$0xff]
      %v1080 = vld [vmem:[%s8 + $0x540] sm:$0xff]
      %v1081 = vld [vmem:[%s8 + $0x548] sm:$0xff]
      %v1082 = vld [vmem:[%s8 + $0x550] sm:$0xff]
      %v1083 = vld [vmem:[%s8 + $0x558] sm:$0xff]
      %v1084 = vld [vmem:[%s8 + $0x560] sm:$0xff]
      %v1085 = vld [vmem:[%s8 + $0x568] sm:$0xff]
      %v1086 = vld [vmem:[%s8 + $0x570] sm:$0xff]
      %v1087 = vld [vmem:[%s8 + $0x578] sm:$0xff]
      %v1088 = vld [vmem:[%s8 + $0x580] sm:$0xff]
      %v1089 = vld [vmem:[%s8 + $0x588] sm:$0xff]
      %v1090 = vld [vmem:[%s8 + $0x590] sm:$0xff]
      %v1091 = vld [vmem:[%s8 + $0x598] sm:$0xff]
      %v1092 = vld [vmem:[%s8 + $0x5a0] sm:$0xff]
      %v1093 = vld [vmem:[%s8 + $0x5a8] sm:$0xff]
      %v1094 = vld [vmem:[%s8 + $0x5b0] sm:$0xff]
      %v1095 = vld [vmem:[%s8 + $0x5b8] sm:$0xff]
      %v1096 = vld [vmem:[%s8 + $0x5c0] sm:$0xff]
      %v1097 = vld [vmem:[%s8 + $0x5c8] sm:$0xff]
      %v1098 = vld [vmem:[%s8 + $0x5d0] sm:$0xff]
      %v1099 = vld [vmem:[%s8 + $0x5d8] sm:$0xff]
      %v1100 = vld [vmem:[%s8 + $0x5e0] sm:$0xff]
      %v1101 = vld [vmem:[%s8 + $0x5e8] sm:$0xff]
      %v1102 = vld [vmem:[%s8 + $0x5f0] sm:$0xff]
      %v1103 = vld [vmem:[%s8 + $0x5f8] sm:$0xff]
      %v1104 = vld [vmem:[%s8 + $0x600] sm:$0xff]
      %v1105 = vld [vmem:[%s8 + $0x608] sm:$0xff]
      %v1106 = vld [vmem:[%s8 + $0x610] sm:$0xff]
      %v1107 = vld [vmem:[%s8 + $0x618] sm:$0xff]
      %v1108 = vld [vmem:[%s8 + $0x620] sm:$0xff]
      %v1109 = vld [vmem:[%s8 + $0x628] sm:$0xff]
      %v1110 = vld [vmem:[%s8 + $0x630] sm:$0xff]
      %v1111 = vld [vmem:[%s8 + $0x638] sm:$0xff]
      %v1112 = vld [vmem:[%s8 + $0x640] sm:$0xff]
      %v1113 = vld [vmem:[%s8 + $0x648] sm:$0xff]
      %v1114 = vld [vmem:[%s8 + $0x650] sm:$0xff]
      %v1115 = vld [vmem:[%s8 + $0x658] sm:$0xff]
      %v1116 = vld [vmem:[%s8 + $0x660] sm:$0xff]
      %v1117 = vld [vmem:[%s8 + $0x668] sm:$0xff]
      %v1118 = vld [vmem:[%s8 + $0x670] sm:$0xff]
      %v1119 = vld [vmem:[%s8 + $0x678] sm:$0xff]
      %v1120 = vld [vmem:[%s8 + $0x680] sm:$0xff]
      %v1121 = vld [vmem:[%s8 + $0x688] sm:$0xff]
      %v1122 = vld [vmem:[%s8 + $0x690] sm:$0xff]
      %v1123 = vld [vmem:[%s8 + $0x698] sm:$0xff]
      %v1124 = vld [vmem:[%s8 + $0x6a0] sm:$0xff]
      %v1125 = vld [vmem:[%s8 + $0x6a8] sm:$0xff]
      %v1126 = vld [vmem:[%s8 + $0x6b0] sm:$0xff]
      %v1127 = vld [vmem:[%s8 + $0x6b8] sm:$0xff]
      %v1128 = vld [vmem:[%s8 + $0x6c0] sm:$0xff]
      %v1129 = vld [vmem:[%s8 + $0x6c8] sm:$0xff]
      %v1130 = vld [vmem:[%s8 + $0x6d0] sm:$0xff]
      %v1131 = vld [vmem:[%s8 + $0x6d8] sm:$0xff]
      %v1132 = vld [vmem:[%s8 + $0x6e0] sm:$0xff]
      %v1133 = vld [vmem:[%s8 + $0x6e8] sm:$0xff]
      %v1134 = vld [vmem:[%s8 + $0x6f0] sm:$0xff]
      %v1135 = vld [vmem:[%s8 + $0x6f8] sm:$0xff]
      %v1136 = vld [vmem:[%s8 + $0x700] sm:$0xff]
      %v1137 = vld [vmem:[%s8 + $0x708] sm:$0xff]
      %v1138 = vld [vmem:[%s8 + $0x710] sm:$0xff]
      %v1139 = vld [vmem:[%s8 + $0x718] sm:$0xff]
      %v1140 = vld [vmem:[%s8 + $0x720] sm:$0xff]
      %v1141 = vld [vmem:[%s8 + $0x728] sm:$0xff]
      %v1142 = vld [vmem:[%s8 + $0x730] sm:$0xff]
      %v1143 = vld [vmem:[%s8 + $0x738] sm:$0xff]
      %v1144 = vld [vmem:[%s8 + $0x740] sm:$0xff]
      %v1145 = vld [vmem:[%s8 + $0x748] sm:$0xff]
      %v1146 = vld [vmem:[%s8 + $0x750] sm:$0xff]
      %v1147 = vld [vmem:[%s8 + $0x758] sm:$0xff]
      %v1148 = vld [vmem:[%s8 + $0x760] sm:$0xff]
      %v1149 = vld [vmem:[%s8 + $0x768] sm:$0xff]
      %v1150 = vld [vmem:[%s8 + $0x770] sm:$0xff]
      %v1151 = vld [vmem:[%s8 + $0x778] sm:$0xff]
      %v1152 = vld [vmem:[%s8 + $0x780] sm:$0xff]
      %v1153 = vld [vmem:[%s8 + $0x788] sm:$0xff]
      %v1154 = vld [vmem:[%s8 + $0x790] sm:$0xff]
      %v1155 = vld [vmem:[%s8 + $0x798] sm:$0xff]
      %v1156 = vld [vmem:[%s8 + $0x7a0] sm:$0xff]
      %v1157 = vld [vmem:[%s8 + $0x7a8] sm:$0xff]
      %v1158 = vld [vmem:[%s8 + $0x7b0] sm:$0xff]
      %v1159 = vld [vmem:[%s8 + $0x7b8] sm:$0xff]
      %v1160 = vld [vmem:[%s8 + $0x7c0] sm:$0xff]
      %v1161 = vld [vmem:[%s8 + $0x7c8] sm:$0xff]
      %v1162 = vld [vmem:[%s8 + $0x7d0] sm:$0xff]
      %v1163 = vld [vmem:[%s8 + $0x7d8] sm:$0xff]
      %v1164 = vld [vmem:[%s8 + $0x7e0] sm:$0xff]
      %v1165 = vld [vmem:[%s8 + $0x7e8] sm:$0xff]
      %v1166 = vld [vmem:[%s8 + $0x7f0] sm:$0xff]
      %v1167 = vld [vmem:[%s8 + $0x7f8] sm:$0xff]
      %v1168 = vld [vmem:[%s9] sm:$0xf]
      %v1170 = vlaneseq
      %v1171 = vshrl.u32 %v1170, 7
      %v1172 = vsub.s32 0, %v1171
      %v1173 = vrot.slane %v1168, %v1172
      %v1174 = vlaneseq
      %v1175 = vshrl.u32 %v1174, 7
      %v1176 = vsub.s32 1, %v1175
      %v1177 = vrot.slane %v1168, %v1176
      %v1178 = vlaneseq
      %v1179 = vshrl.u32 %v1178, 7
      %v1180 = vsub.s32 2, %v1179
      %v1181 = vrot.slane %v1168, %v1180
      %v1182 = vlaneseq
      %v1183 = vshrl.u32 %v1182, 7
      %v1184 = vsub.s32 3, %v1183
      %v1185 = vrot.slane %v1168, %v1184
      %1190 = vmatprep.subr.mxu0 %v913
      %1191 = vmatpush1.msra.mxu0 %v912
      %1192 = vmatprep.subr.mxu0 %v917
      %1193 = vmatpush1.msra.mxu0 %v916
      %1194 = vmatprep.subr.mxu0 %v921
      %1195 = vmatpush1.msra.mxu0 %v920
      %1196 = vmatprep.subr.mxu0 %v925
      %1197 = vmatpush1.msra.mxu0 %v924
      %1198 = vmatprep.subr.mxu0 %v929
      %1199 = vmatpush1.msra.mxu0 %v928
      %1200 = vmatprep.subr.mxu0 %v933
      %1201 = vmatpush1.msra.mxu0 %v932
      %1202 = vmatprep.subr.mxu0 %v937
      %1203 = vmatpush1.msra.mxu0 %v936
      %1204 = vmatprep.subr.mxu0 %v941
      %1205 = vmatpush1.msra.mxu0 %v940
      %1206 = vmatprep.subr.mxu0 %v945
      %1207 = vmatpush1.msra.mxu0 %v944
      %1208 = vmatprep.subr.mxu0 %v949
      %1209 = vmatpush1.msra.mxu0 %v948
      %1210 = vmatprep.subr.mxu0 %v953
      %1211 = vmatpush1.msra.mxu0 %v952
      %1212 = vmatprep.subr.mxu0 %v957
      %1213 = vmatpush1.msra.mxu0 %v956
      %1214 = vmatprep.subr.mxu0 %v961
      %1215 = vmatpush1.msra.mxu0 %v960
      %1216 = vmatprep.subr.mxu0 %v965
      %1217 = vmatpush1.msra.mxu0 %v964
      %1218 = vmatprep.subr.mxu0 %v969
      %1219 = vmatpush1.msra.mxu0 %v968
      %1220 = vmatprep.subr.mxu0 %v973
      %1221 = vmatpush1.msra.mxu0 %v972
      %1222 = vmatprep.subr.mxu0 %v977
      %1223 = vmatpush1.msra.mxu0 %v976
      %1224 = vmatprep.subr.mxu0 %v981
      %1225 = vmatpush1.msra.mxu0 %v980
      %1226 = vmatprep.subr.mxu0 %v985
      %1227 = vmatpush1.msra.mxu0 %v984
      %1228 = vmatprep.subr.mxu0 %v989
      %1229 = vmatpush1.msra.mxu0 %v988
      %1230 = vmatprep.subr.mxu0 %v993
      %1231 = vmatpush1.msra.mxu0 %v992
      %1232 = vmatprep.subr.mxu0 %v997
      %1233 = vmatpush1.msra.mxu0 %v996
      %1234 = vmatprep.subr.mxu0 %v1001
      %1235 = vmatpush1.msra.mxu0 %v1000
      %1236 = vmatprep.subr.mxu0 %v1005
      %1237 = vmatpush1.msra.mxu0 %v1004
      %1238 = vmatprep.subr.mxu0 %v1009
      %1239 = vmatpush1.msra.mxu0 %v1008
      %1240 = vmatprep.subr.mxu0 %v1013
      %1241 = vmatpush1.msra.mxu0 %v1012
      %1242 = vmatprep.subr.mxu0 %v1017
      %1243 = vmatpush1.msra.mxu0 %v1016
      %1244 = vmatprep.subr.mxu0 %v1021
      %1245 = vmatpush1.msra.mxu0 %v1020
      %1246 = vmatprep.subr.mxu0 %v1025
      %1247 = vmatpush1.msra.mxu0 %v1024
      %1248 = vmatprep.subr.mxu0 %v1029
      %1249 = vmatpush1.msra.mxu0 %v1028
      %1250 = vmatprep.subr.mxu0 %v1033
      %1251 = vmatpush1.msra.mxu0 %v1032
      %1252 = vmatprep.subr.mxu0 %v1037
      %1253 = vmatpush1.msra.mxu0 %v1036
      %1254 = vmatprep.mubr.f32.mxu0 %v839
      %1255 = vmatmul.mubr.f32.gmra.mrb[0].mxu0 %v837
      %v1256 = vpop.f32.mrb[0].mxu0
      %v1257 = vadd.f32 %v1173, %v1256
      %v1258 = vpop.f32.mrb[0].mxu0
      %v1259 = vadd.f32 %v1177, %v1258
      %1260 = vdwg.mxu0
      %1261 = vmatprep.subr.mxu0 %v1041
      %1262 = vmatpush1.msra.mxu0 %v1040
      %1263 = vmatprep.subr.mxu0 %v1045
      %1264 = vmatpush1.msra.mxu0 %v1044
      %1265 = vmatprep.subr.mxu0 %v1049
      %1266 = vmatpush1.msra.mxu0 %v1048
      %1267 = vmatprep.subr.mxu0 %v1053
      %1268 = vmatpush1.msra.mxu0 %v1052
      %1269 = vmatprep.subr.mxu0 %v1057
      %1270 = vmatpush1.msra.mxu0 %v1056
      %1271 = vmatprep.subr.mxu0 %v1061
      %1272 = vmatpush1.msra.mxu0 %v1060
      %1273 = vmatprep.subr.mxu0 %v1065
      %1274 = vmatpush1.msra.mxu0 %v1064
      %1275 = vmatprep.subr.mxu0 %v1069
      %1276 = vmatpush1.msra.mxu0 %v1068
      %1277 = vmatprep.subr.mxu0 %v1073
      %1278 = vmatpush1.msra.mxu0 %v1072
      %1279 = vmatprep.subr.mxu0 %v1077
      %1280 = vmatpush1.msra.mxu0 %v1076
      %1281 = vmatprep.subr.mxu0 %v1081
      %1282 = vmatpush1.msra.mxu0 %v1080
      %1283 = vmatprep.subr.mxu0 %v1085
      %1284 = vmatpush1.msra.mxu0 %v1084
      %1285 = vmatprep.subr.mxu0 %v1089
      %1286 = vmatpush1.msra.mxu0 %v1088
      %1287 = vmatprep.subr.mxu0 %v1093
      %1288 = vmatpush1.msra.mxu0 %v1092
      %1289 = vmatprep.subr.mxu0 %v1097
      %1290 = vmatpush1.msra.mxu0 %v1096
      %1291 = vmatprep.subr.mxu0 %v1101
      %1292 = vmatpush1.msra.mxu0 %v1100
      %1293 = vmatprep.subr.mxu0 %v1105
      %1294 = vmatpush1.msra.mxu0 %v1104
      %1295 = vmatprep.subr.mxu0 %v1109
      %1296 = vmatpush1.msra.mxu0 %v1108
      %1297 = vmatprep.subr.mxu0 %v1113
      %1298 = vmatpush1.msra.mxu0 %v1112
      %1299 = vmatprep.subr.mxu0 %v1117
      %1300 = vmatpush1.msra.mxu0 %v1116
      %1301 = vmatprep.subr.mxu0 %v1121
      %1302 = vmatpush1.msra.mxu0 %v1120
      %1303 = vmatprep.subr.mxu0 %v1125
      %1304 = vmatpush1.msra.mxu0 %v1124
      %1305 = vmatprep.subr.mxu0 %v1129
      %1306 = vmatpush1.msra.mxu0 %v1128
      %1307 = vmatprep.subr.mxu0 %v1133
      %1308 = vmatpush1.msra.mxu0 %v1132
      %1309 = vmatprep.subr.mxu0 %v1137
      %1310 = vmatpush1.msra.mxu0 %v1136
      %1311 = vmatprep.subr.mxu0 %v1141
      %1312 = vmatpush1.msra.mxu0 %v1140
      %1313 = vmatprep.subr.mxu0 %v1145
      %1314 = vmatpush1.msra.mxu0 %v1144
      %1315 = vmatprep.subr.mxu0 %v1149
      %1316 = vmatpush1.msra.mxu0 %v1148
      %1317 = vmatprep.subr.mxu0 %v1153
      %1318 = vmatpush1.msra.mxu0 %v1152
      %1319 = vmatprep.subr.mxu0 %v1157
      %1320 = vmatpush1.msra.mxu0 %v1156
      %1321 = vmatprep.subr.mxu0 %v1161
      %1322 = vmatpush1.msra.mxu0 %v1160
      %1323 = vmatprep.subr.mxu0 %v1165
      %1324 = vmatpush1.msra.mxu0 %v1164
      %1325 = vmatprep.mubr.f32.mxu0 %v910
      %1326 = vmatmul.mubr.f32.gmra.mrb[0].mxu0 %v908
      %v1327 = vpop.f32.mrb[0].mxu0
      %v1328 = vadd.f32 %v1257, %v1327
      %v1329 = vpop.f32.mrb[0].mxu0
      %v1330 = vadd.f32 %v1259, %v1329
      %1331 = vdwg.mxu0
      %1332 = vmatprep.subr.mxu0 %v915
      %1333 = vmatpush1.msra.mxu0 %v914
      %1334 = vmatprep.subr.mxu0 %v919
      %1335 = vmatpush1.msra.mxu0 %v918
      %1336 = vmatprep.subr.mxu0 %v923
      %1337 = vmatpush1.msra.mxu0 %v922
      %1338 = vmatprep.subr.mxu0 %v927
      %1339 = vmatpush1.msra.mxu0 %v926
      %1340 = vmatprep.subr.mxu0 %v931
      %1341 = vmatpush1.msra.mxu0 %v930
      %1342 = vmatprep.subr.mxu0 %v935
      %1343 = vmatpush1.msra.mxu0 %v934
      %1344 = vmatprep.subr.mxu0 %v939
      %1345 = vmatpush1.msra.mxu0 %v938
      %1346 = vmatprep.subr.mxu0 %v943
      %1347 = vmatpush1.msra.mxu0 %v942
      %1348 = vmatprep.subr.mxu0 %v947
      %1349 = vmatpush1.msra.mxu0 %v946
      %1350 = vmatprep.subr.mxu0 %v951
      %1351 = vmatpush1.msra.mxu0 %v950
      %1352 = vmatprep.subr.mxu0 %v955
      %1353 = vmatpush1.msra.mxu0 %v954
      %1354 = vmatprep.subr.mxu0 %v959
      %1355 = vmatpush1.msra.mxu0 %v958
      %1356 = vmatprep.subr.mxu0 %v963
      %1357 = vmatpush1.msra.mxu0 %v962
      %1358 = vmatprep.subr.mxu0 %v967
      %1359 = vmatpush1.msra.mxu0 %v966
      %1360 = vmatprep.subr.mxu0 %v971
      %1361 = vmatpush1.msra.mxu0 %v970
      %1362 = vmatprep.subr.mxu0 %v975
      %1363 = vmatpush1.msra.mxu0 %v974
      %1364 = vmatprep.subr.mxu0 %v979
      %1365 = vmatpush1.msra.mxu0 %v978
      %1366 = vmatprep.subr.mxu0 %v983
      %1367 = vmatpush1.msra.mxu0 %v982
      %1368 = vmatprep.subr.mxu0 %v987
      %1369 = vmatpush1.msra.mxu0 %v986
      %1370 = vmatprep.subr.mxu0 %v991
      %1371 = vmatpush1.msra.mxu0 %v990
      %1372 = vmatprep.subr.mxu0 %v995
      %1373 = vmatpush1.msra.mxu0 %v994
      %1374 = vmatprep.subr.mxu0 %v999
      %1375 = vmatpush1.msra.mxu0 %v998
      %1376 = vmatprep.subr.mxu0 %v1003
      %1377 = vmatpush1.msra.mxu0 %v1002
      %1378 = vmatprep.subr.mxu0 %v1007
      %1379 = vmatpush1.msra.mxu0 %v1006
      %1380 = vmatprep.subr.mxu0 %v1011
      %1381 = vmatpush1.msra.mxu0 %v1010
      %1382 = vmatprep.subr.mxu0 %v1015
      %1383 = vmatpush1.msra.mxu0 %v1014
      %1384 = vmatprep.subr.mxu0 %v1019
      %1385 = vmatpush1.msra.mxu0 %v1018
      %1386 = vmatprep.subr.mxu0 %v1023
      %1387 = vmatpush1.msra.mxu0 %v1022
      %1388 = vmatprep.subr.mxu0 %v1027
      %1389 = vmatpush1.msra.mxu0 %v1026
      %1390 = vmatprep.subr.mxu0 %v1031
      %1391 = vmatpush1.msra.mxu0 %v1030
      %1392 = vmatprep.subr.mxu0 %v1035
      %1393 = vmatpush1.msra.mxu0 %v1034
      %1394 = vmatprep.subr.mxu0 %v1039
      %1395 = vmatpush1.msra.mxu0 %v1038
      %1396 = vmatprep.mubr.f32.mxu0 %v839
      %1397 = vmatmul.mubr.f32.gmra.mrb[0].mxu0 %v837
      %v1398 = vpop.f32.mrb[0].mxu0
      %v1399 = vadd.f32 %v1181, %v1398
      %v1400 = vpop.f32.mrb[0].mxu0
      %v1401 = vadd.f32 %v1185, %v1400
      %1402 = vdwg.mxu0
      %1403 = vmatprep.subr.mxu0 %v1043
      %1404 = vmatpush1.msra.mxu0 %v1042
      %1405 = vmatprep.subr.mxu0 %v1047
      %1406 = vmatpush1.msra.mxu0 %v1046
      %1407 = vmatprep.subr.mxu0 %v1051
      %1408 = vmatpush1.msra.mxu0 %v1050
      %1409 = vmatprep.subr.mxu0 %v1055
      %1410 = vmatpush1.msra.mxu0 %v1054
      %1411 = vmatprep.subr.mxu0 %v1059
      %1412 = vmatpush1.msra.mxu0 %v1058
      %1413 = vmatprep.subr.mxu0 %v1063
      %1414 = vmatpush1.msra.mxu0 %v1062
      %1415 = vmatprep.subr.mxu0 %v1067
      %1416 = vmatpush1.msra.mxu0 %v1066
      %1417 = vmatprep.subr.mxu0 %v1071
      %1418 = vmatpush1.msra.mxu0 %v1070
      %1419 = vmatprep.subr.mxu0 %v1075
      %1420 = vmatpush1.msra.mxu0 %v1074
      %1421 = vmatprep.subr.mxu0 %v1079
      %1422 = vmatpush1.msra.mxu0 %v1078
      %1423 = vmatprep.subr.mxu0 %v1083
      %1424 = vmatpush1.msra.mxu0 %v1082
      %1425 = vmatprep.subr.mxu0 %v1087
      %1426 = vmatpush1.msra.mxu0 %v1086
      %1427 = vmatprep.subr.mxu0 %v1091
      %1428 = vmatpush1.msra.mxu0 %v1090
      %1429 = vmatprep.subr.mxu0 %v1095
      %1430 = vmatpush1.msra.mxu0 %v1094
      %1431 = vmatprep.subr.mxu0 %v1099
      %1432 = vmatpush1.msra.mxu0 %v1098
      %1433 = vmatprep.subr.mxu0 %v1103
      %1434 = vmatpush1.msra.mxu0 %v1102
      %1435 = vmatprep.subr.mxu0 %v1107
      %1436 = vmatpush1.msra.mxu0 %v1106
      %1437 = vmatprep.subr.mxu0 %v1111
      %1438 = vmatpush1.msra.mxu0 %v1110
      %1439 = vmatprep.subr.mxu0 %v1115
      %1440 = vmatpush1.msra.mxu0 %v1114
      %1441 = vmatprep.subr.mxu0 %v1119
      %1442 = vmatpush1.msra.mxu0 %v1118
      %1443 = vmatprep.subr.mxu0 %v1123
      %1444 = vmatpush1.msra.mxu0 %v1122
      %1445 = vmatprep.subr.mxu0 %v1127
      %1446 = vmatpush1.msra.mxu0 %v1126
      %1447 = vmatprep.subr.mxu0 %v1131
      %1448 = vmatpush1.msra.mxu0 %v1130
      %1449 = vmatprep.subr.mxu0 %v1135
      %1450 = vmatpush1.msra.mxu0 %v1134
      %1451 = vmatprep.subr.mxu0 %v1139
      %1452 = vmatpush1.msra.mxu0 %v1138
      %1453 = vmatprep.subr.mxu0 %v1143
      %1454 = vmatpush1.msra.mxu0 %v1142
      %1455 = vmatprep.subr.mxu0 %v1147
      %1456 = vmatpush1.msra.mxu0 %v1146
      %1457 = vmatprep.subr.mxu0 %v1151
      %1458 = vmatpush1.msra.mxu0 %v1150
      %1459 = vmatprep.subr.mxu0 %v1155
      %1460 = vmatpush1.msra.mxu0 %v1154
      %1461 = vmatprep.subr.mxu0 %v1159
      %1462 = vmatpush1.msra.mxu0 %v1158
      %1463 = vmatprep.subr.mxu0 %v1163
      %1464 = vmatpush1.msra.mxu0 %v1162
      %1465 = vmatprep.subr.mxu0 %v1167
      %1466 = vmatpush1.msra.mxu0 %v1166
      %1467 = vmatprep.mubr.f32.mxu0 %v910
      %1468 = vmatmul.mubr.f32.gmra.mrb[0].mxu0 %v908
      %v1469 = vpop.f32.mrb[0].mxu0
      %v1470 = vadd.f32 %v1399, %v1469
      %v1471 = vpop.f32.mrb[0].mxu0
      %v1472 = vadd.f32 %v1401, %v1471
      %1473 = vdwg.mxu0
      %v1474 = vld [vmem:[%s5] sm:$0xff]
      %v1475 = vld [vmem:[%s5 + $0x8] sm:$0xff]
      %vm1476 = vcmask 7168
      %v1478 = vsel %vm1476, %v1474, 0
      %v1481 = vsel %vm1476, %v1475, 0
      %vm1483 = vcmask 1040384
      %v1485 = vsel %vm1483, %v1328, 0
      %v1488 = vsel %vm1483, %v1330, 0
      %v1491 = vsel %vm1483, %v1470, 0
      %v1494 = vsel %vm1483, %v1472, 0
      %1496 = vmatprep.subr.mxu0 %v1488
      %1497 = vmatpush1.msra.mxu0 %v1485
      %1498 = vmatprep.subr.mxu0 0.0
      %1499 = vmatpush1.msra.mxu0 0.0
      %1500 = vmatprep.subr.mxu0 0.0
      %1501 = vmatpush1.msra.mxu0 0.0
      %1502 = vmatprep.subr.mxu0 0.0
      %1503 = vmatpush1.msra.mxu0 0.0
      %1504 = vmatprep.subr.mxu0 0.0
      %1505 = vmatpush1.msra.mxu0 0.0
      %1506 = vmatprep.subr.mxu0 0.0
      %1507 = vmatpush1.msra.mxu0 0.0
      %1508 = vmatprep.subr.mxu0 0.0
      %1509 = vmatpush1.msra.mxu0 0.0
      %1510 = vmatprep.subr.mxu0 0.0
      %1511 = vmatpush1.msra.mxu0 0.0
      %1512 = vmatprep.subr.mxu0 0.0
      %1513 = vmatpush1.msra.mxu0 0.0
      %1514 = vmatprep.subr.mxu0 0.0
      %1515 = vmatpush1.msra.mxu0 0.0
      %1516 = vmatprep.subr.mxu0 0.0
      %1517 = vmatpush1.msra.mxu0 0.0
      %1518 = vmatprep.subr.mxu0 0.0
      %1519 = vmatpush1.msra.mxu0 0.0
      %1520 = vmatprep.subr.mxu0 0.0
      %1521 = vmatpush1.msra.mxu0 0.0
      %1522 = vmatprep.subr.mxu0 0.0
      %1523 = vmatpush1.msra.mxu0 0.0
      %1524 = vmatprep.subr.mxu0 0.0
      %1525 = vmatpush1.msra.mxu0 0.0
      %1526 = vmatprep.subr.mxu0 0.0
      %1527 = vmatpush1.msra.mxu0 0.0
      %1528 = vmatprep.subr.mxu0 0.0
      %1529 = vmatpush1.msra.mxu0 0.0
      %1530 = vmatprep.subr.mxu0 0.0
      %1531 = vmatpush1.msra.mxu0 0.0
      %1532 = vmatprep.subr.mxu0 0.0
      %1533 = vmatpush1.msra.mxu0 0.0
      %1534 = vmatprep.subr.mxu0 0.0
      %1535 = vmatpush1.msra.mxu0 0.0
      %1536 = vmatprep.subr.mxu0 0.0
      %1537 = vmatpush1.msra.mxu0 0.0
      %1538 = vmatprep.subr.mxu0 0.0
      %1539 = vmatpush1.msra.mxu0 0.0
      %1540 = vmatprep.subr.mxu0 0.0
      %1541 = vmatpush1.msra.mxu0 0.0
      %1542 = vmatprep.subr.mxu0 0.0
      %1543 = vmatpush1.msra.mxu0 0.0
      %1544 = vmatprep.subr.mxu0 0.0
      %1545 = vmatpush1.msra.mxu0 0.0
      %1546 = vmatprep.subr.mxu0 0.0
      %1547 = vmatpush1.msra.mxu0 0.0
      %1548 = vmatprep.subr.mxu0 0.0
      %1549 = vmatpush1.msra.mxu0 0.0
      %1550 = vmatprep.subr.mxu0 0.0
      %1551 = vmatpush1.msra.mxu0 0.0
      %1552 = vmatprep.subr.mxu0 0.0
      %1553 = vmatpush1.msra.mxu0 0.0
      %1554 = vmatprep.subr.mxu0 0.0
      %1555 = vmatpush1.msra.mxu0 0.0
      %1556 = vmatprep.subr.mxu0 0.0
      %1557 = vmatpush1.msra.mxu0 0.0
      %1558 = vmatprep.subr.mxu0 0.0
      %1559 = vmatpush1.msra.mxu0 0.0
      %1560 = vmatprep.mubr.f32.mxu0 0.0
      %1561 = vmatmul.mubr.f32.gmra.mrb[0].mxu0 %v1478
      %v1562 = vpop.f32.mrb[0].mxu0
      %v1563 = vadd.f32 0.0, %v1562
      %v1564 = vpop.f32.mrb[0].mxu0
      %v1565 = vadd.f32 0.0, %v1564
      %1566 = vmatprep.mubr.f32.mxu0 0.0
      %1567 = vmatmul.mubr.f32.gmra.mrb[0].mxu0 %v1481
      %v1568 = vpop.f32.mrb[0].mxu0
      %v1569 = vadd.f32 0.0, %v1568
      %v1570 = vpop.f32.mrb[0].mxu0
      %v1571 = vadd.f32 0.0, %v1570
      %1572 = vdwg.mxu0
      %1573 = vmatprep.subr.mxu0 %v1494
      %1574 = vmatpush1.msra.mxu0 %v1491
      %1575 = vmatprep.subr.mxu0 0.0
      %1576 = vmatpush1.msra.mxu0 0.0
      %1577 = vmatprep.subr.mxu0 0.0
      %1578 = vmatpush1.msra.mxu0 0.0
      %1579 = vmatprep.subr.mxu0 0.0
      %1580 = vmatpush1.msra.mxu0 0.0
      %1581 = vmatprep.subr.mxu0 0.0
      %1582 = vmatpush1.msra.mxu0 0.0
      %1583 = vmatprep.subr.mxu0 0.0
      %1584 = vmatpush1.msra.mxu0 0.0
      %1585 = vmatprep.subr.mxu0 0.0
      %1586 = vmatpush1.msra.mxu0 0.0
      %1587 = vmatprep.subr.mxu0 0.0
      %1588 = vmatpush1.msra.mxu0 0.0
      %1589 = vmatprep.subr.mxu0 0.0
      %1590 = vmatpush1.msra.mxu0 0.0
      %1591 = vmatprep.subr.mxu0 0.0
      %1592 = vmatpush1.msra.mxu0 0.0
      %1593 = vmatprep.subr.mxu0 0.0
      %1594 = vmatpush1.msra.mxu0 0.0
      %1595 = vmatprep.subr.mxu0 0.0
      %1596 = vmatpush1.msra.mxu0 0.0
      %1597 = vmatprep.subr.mxu0 0.0
      %1598 = vmatpush1.msra.mxu0 0.0
      %1599 = vmatprep.subr.mxu0 0.0
      %1600 = vmatpush1.msra.mxu0 0.0
      %1601 = vmatprep.subr.mxu0 0.0
      %1602 = vmatpush1.msra.mxu0 0.0
      %1603 = vmatprep.subr.mxu0 0.0
      %1604 = vmatpush1.msra.mxu0 0.0
      %1605 = vmatprep.subr.mxu0 0.0
      %1606 = vmatpush1.msra.mxu0 0.0
      %1607 = vmatprep.subr.mxu0 0.0
      %1608 = vmatpush1.msra.mxu0 0.0
      %1609 = vmatprep.subr.mxu0 0.0
      %1610 = vmatpush1.msra.mxu0 0.0
      %1611 = vmatprep.subr.mxu0 0.0
      %1612 = vmatpush1.msra.mxu0 0.0
      %1613 = vmatprep.subr.mxu0 0.0
      %1614 = vmatpush1.msra.mxu0 0.0
      %1615 = vmatprep.subr.mxu0 0.0
      %1616 = vmatpush1.msra.mxu0 0.0
      %1617 = vmatprep.subr.mxu0 0.0
      %1618 = vmatpush1.msra.mxu0 0.0
      %1619 = vmatprep.subr.mxu0 0.0
      %1620 = vmatpush1.msra.mxu0 0.0
      %1621 = vmatprep.subr.mxu0 0.0
      %1622 = vmatpush1.msra.mxu0 0.0
      %1623 = vmatprep.subr.mxu0 0.0
      %1624 = vmatpush1.msra.mxu0 0.0
      %1625 = vmatprep.subr.mxu0 0.0
      %1626 = vmatpush1.msra.mxu0 0.0
      %1627 = vmatprep.subr.mxu0 0.0
      %1628 = vmatpush1.msra.mxu0 0.0
      %1629 = vmatprep.subr.mxu0 0.0
      %1630 = vmatpush1.msra.mxu0 0.0
      %1631 = vmatprep.subr.mxu0 0.0
      %1632 = vmatpush1.msra.mxu0 0.0
      %1633 = vmatprep.subr.mxu0 0.0
      %1634 = vmatpush1.msra.mxu0 0.0
      %1635 = vmatprep.subr.mxu0 0.0
      %1636 = vmatpush1.msra.mxu0 0.0
      %1637 = vmatprep.mubr.f32.mxu0 0.0
      %1638 = vmatmul.mubr.f32.gmra.mrb[0].mxu0 %v1478
      %v1639 = vpop.f32.mrb[0].mxu0
      %v1640 = vadd.f32 0.0, %v1639
      %v1641 = vpop.f32.mrb[0].mxu0
      %v1642 = vadd.f32 0.0, %v1641
      %1643 = vmatprep.mubr.f32.mxu0 0.0
      %1644 = vmatmul.mubr.f32.gmra.mrb[0].mxu0 %v1481
      %v1645 = vpop.f32.mrb[0].mxu0
      %v1646 = vadd.f32 0.0, %v1645
      %v1647 = vpop.f32.mrb[0].mxu0
      %v1648 = vadd.f32 0.0, %v1647
      %1649 = vdwg.mxu0
      %v1650 = vmul.f32 %v1563, %v749
      %v1651 = vmul.f32 %v1565, %v750
      %v1652 = vmul.f32 %v1640, %v751
      %v1653 = vmul.f32 %v1642, %v752
      %v1654 = vmul.f32 %v1569, %v753
      %v1655 = vmul.f32 %v1571, %v754
      %v1656 = vmul.f32 %v1646, %v755
      %v1657 = vmul.f32 %v1648, %v756
      %v1658 = vld [vmem:[%s7] sm:$0xff]
      %v1659 = vld [vmem:[%s7 + $0x8] sm:$0xff]
      %v1660 = vld [vmem:[%s7 + $0x10] sm:$0xff]
      %v1661 = vld [vmem:[%s7 + $0x18] sm:$0xff]
      %v1662 = vld [vmem:[%s7 + $0x20] sm:$0xff]
      %v1663 = vld [vmem:[%s7 + $0x28] sm:$0xff]
      %v1664 = vld [vmem:[%s7 + $0x30] sm:$0xff]
      %v1665 = vld [vmem:[%s7 + $0x38] sm:$0xff]
      %v1666 = vld [vmem:[%s7 + $0x40] sm:$0xff]
      %v1667 = vld [vmem:[%s7 + $0x48] sm:$0xff]
      %v1668 = vld [vmem:[%s7 + $0x50] sm:$0xff]
      %v1669 = vld [vmem:[%s7 + $0x58] sm:$0xff]
      %v1670 = vld [vmem:[%s7 + $0x60] sm:$0xff]
      %v1671 = vld [vmem:[%s7 + $0x68] sm:$0xff]
      %v1672 = vld [vmem:[%s7 + $0x70] sm:$0xff]
      %v1673 = vld [vmem:[%s7 + $0x78] sm:$0xff]
      %v1674 = vld [vmem:[%s7 + $0x80] sm:$0xff]
      %v1675 = vld [vmem:[%s7 + $0x88] sm:$0xff]
      %v1676 = vld [vmem:[%s7 + $0x90] sm:$0xff]
      %v1677 = vld [vmem:[%s7 + $0x98] sm:$0xff]
      %v1678 = vld [vmem:[%s7 + $0xa0] sm:$0xff]
      %v1679 = vld [vmem:[%s7 + $0xa8] sm:$0xff]
      %v1680 = vld [vmem:[%s7 + $0xb0] sm:$0xff]
      %v1681 = vld [vmem:[%s7 + $0xb8] sm:$0xff]
      %v1682 = vld [vmem:[%s7 + $0xc0] sm:$0xff]
      %v1683 = vld [vmem:[%s7 + $0xc8] sm:$0xff]
      %v1684 = vld [vmem:[%s7 + $0xd0] sm:$0xff]
      %v1685 = vld [vmem:[%s7 + $0xd8] sm:$0xff]
      %v1686 = vld [vmem:[%s7 + $0xe0] sm:$0xff]
      %v1687 = vld [vmem:[%s7 + $0xe8] sm:$0xff]
      %v1688 = vld [vmem:[%s7 + $0xf0] sm:$0xff]
      %v1689 = vld [vmem:[%s7 + $0xf8] sm:$0xff]
      %v1690 = vld [vmem:[%s7 + $0x100] sm:$0xff]
      %v1691 = vld [vmem:[%s7 + $0x108] sm:$0xff]
      %v1692 = vld [vmem:[%s7 + $0x110] sm:$0xff]
      %v1693 = vld [vmem:[%s7 + $0x118] sm:$0xff]
      %v1694 = vld [vmem:[%s7 + $0x120] sm:$0xff]
      %v1695 = vld [vmem:[%s7 + $0x128] sm:$0xff]
      %v1696 = vld [vmem:[%s7 + $0x130] sm:$0xff]
      %v1697 = vld [vmem:[%s7 + $0x138] sm:$0xff]
      %v1698 = vld [vmem:[%s7 + $0x140] sm:$0xff]
      %v1699 = vld [vmem:[%s7 + $0x148] sm:$0xff]
      %v1700 = vld [vmem:[%s7 + $0x150] sm:$0xff]
      %v1701 = vld [vmem:[%s7 + $0x158] sm:$0xff]
      %v1702 = vld [vmem:[%s7 + $0x160] sm:$0xff]
      %v1703 = vld [vmem:[%s7 + $0x168] sm:$0xff]
      %v1704 = vld [vmem:[%s7 + $0x170] sm:$0xff]
      %v1705 = vld [vmem:[%s7 + $0x178] sm:$0xff]
      %v1706 = vld [vmem:[%s7 + $0x180] sm:$0xff]
      %v1707 = vld [vmem:[%s7 + $0x188] sm:$0xff]
      %v1708 = vld [vmem:[%s7 + $0x190] sm:$0xff]
      %v1709 = vld [vmem:[%s7 + $0x198] sm:$0xff]
      %v1710 = vld [vmem:[%s7 + $0x1a0] sm:$0xff]
      %v1711 = vld [vmem:[%s7 + $0x1a8] sm:$0xff]
      %v1712 = vld [vmem:[%s7 + $0x1b0] sm:$0xff]
      %v1713 = vld [vmem:[%s7 + $0x1b8] sm:$0xff]
      %v1714 = vld [vmem:[%s7 + $0x1c0] sm:$0xff]
      %v1715 = vld [vmem:[%s7 + $0x1c8] sm:$0xff]
      %v1716 = vld [vmem:[%s7 + $0x1d0] sm:$0xff]
      %v1717 = vld [vmem:[%s7 + $0x1d8] sm:$0xff]
      %v1718 = vld [vmem:[%s7 + $0x1e0] sm:$0xff]
      %v1719 = vld [vmem:[%s7 + $0x1e8] sm:$0xff]
      %v1720 = vld [vmem:[%s7 + $0x1f0] sm:$0xff]
      %v1721 = vld [vmem:[%s7 + $0x1f8] sm:$0xff]
      %1722 = vmatprep.subr.mxu0 0.0
      %1723 = vmatpush1.msra.mxu0 %v1658
      %1724 = vmatprep.subr.mxu0 0.0
      %1725 = vmatpush1.msra.mxu0 %v1659
      %1726 = vmatprep.subr.mxu0 0.0
      %1727 = vmatpush1.msra.mxu0 %v1660
      %1728 = vmatprep.subr.mxu0 0.0
      %1729 = vmatpush1.msra.mxu0 %v1661
      %1730 = vmatprep.subr.mxu0 0.0
      %1731 = vmatpush1.msra.mxu0 %v1662
      %1732 = vmatprep.subr.mxu0 0.0
      %1733 = vmatpush1.msra.mxu0 %v1663
      %1734 = vmatprep.subr.mxu0 0.0
      %1735 = vmatpush1.msra.mxu0 %v1664
      %1736 = vmatprep.subr.mxu0 0.0
      %1737 = vmatpush1.msra.mxu0 %v1665
      %1738 = vmatprep.subr.mxu0 0.0
      %1739 = vmatpush1.msra.mxu0 %v1666
      %1740 = vmatprep.subr.mxu0 0.0
      %1741 = vmatpush1.msra.mxu0 %v1667
      %1742 = vmatprep.subr.mxu0 0.0
      %1743 = vmatpush1.msra.mxu0 %v1668
      %1744 = vmatprep.subr.mxu0 0.0
      %1745 = vmatpush1.msra.mxu0 %v1669
      %1746 = vmatprep.subr.mxu0 0.0
      %1747 = vmatpush1.msra.mxu0 %v1670
      %1748 = vmatprep.subr.mxu0 0.0
      %1749 = vmatpush1.msra.mxu0 %v1671
      %1750 = vmatprep.subr.mxu0 0.0
      %1751 = vmatpush1.msra.mxu0 %v1672
      %1752 = vmatprep.subr.mxu0 0.0
      %1753 = vmatpush1.msra.mxu0 %v1673
      %1754 = vmatprep.subr.mxu0 0.0
      %1755 = vmatpush1.msra.mxu0 %v1674
      %1756 = vmatprep.subr.mxu0 0.0
      %1757 = vmatpush1.msra.mxu0 %v1675
      %1758 = vmatprep.subr.mxu0 0.0
      %1759 = vmatpush1.msra.mxu0 %v1676
      %1760 = vmatprep.subr.mxu0 0.0
      %1761 = vmatpush1.msra.mxu0 %v1677
      %1762 = vmatprep.subr.mxu0 0.0
      %1763 = vmatpush1.msra.mxu0 %v1678
      %1764 = vmatprep.subr.mxu0 0.0
      %1765 = vmatpush1.msra.mxu0 %v1679
      %1766 = vmatprep.subr.mxu0 0.0
      %1767 = vmatpush1.msra.mxu0 %v1680
      %1768 = vmatprep.subr.mxu0 0.0
      %1769 = vmatpush1.msra.mxu0 %v1681
      %1770 = vmatprep.subr.mxu0 0.0
      %1771 = vmatpush1.msra.mxu0 %v1682
      %1772 = vmatprep.subr.mxu0 0.0
      %1773 = vmatpush1.msra.mxu0 %v1683
      %1774 = vmatprep.subr.mxu0 0.0
      %1775 = vmatpush1.msra.mxu0 %v1684
      %1776 = vmatprep.subr.mxu0 0.0
      %1777 = vmatpush1.msra.mxu0 %v1685
      %1778 = vmatprep.subr.mxu0 0.0
      %1779 = vmatpush1.msra.mxu0 %v1686
      %1780 = vmatprep.subr.mxu0 0.0
      %1781 = vmatpush1.msra.mxu0 %v1687
      %1782 = vmatprep.subr.mxu0 0.0
      %1783 = vmatpush1.msra.mxu0 %v1688
      %1784 = vmatprep.subr.mxu0 0.0
      %1785 = vmatpush1.msra.mxu0 %v1689
      %1786 = vmatprep.mubr.f32.mxu0 %v1651
      %1787 = vmatmul.mubr.f32.gmra.mrb[0].mxu0 %v1650
      %v1788 = vpop.f32.mrb[0].mxu0
      %v1789 = vadd.f32 0.0, %v1788
      %v1790 = vpop.f32.mrb[0].mxu0
      %1791 = vmatprep.mubr.f32.mxu0 %v1655
      %1792 = vmatmul.mubr.f32.gmra.mrb[0].mxu0 %v1654
      %v1793 = vpop.f32.mrb[0].mxu0
      %v1794 = vadd.f32 0.0, %v1793
      %v1795 = vpop.f32.mrb[0].mxu0
      %1796 = vdwg.mxu0
      %1797 = vmatprep.subr.mxu0 0.0
      %1798 = vmatpush1.msra.mxu0 %v1690
      %1799 = vmatprep.subr.mxu0 0.0
      %1800 = vmatpush1.msra.mxu0 %v1691
      %1801 = vmatprep.subr.mxu0 0.0
      %1802 = vmatpush1.msra.mxu0 %v1692
      %1803 = vmatprep.subr.mxu0 0.0
      %1804 = vmatpush1.msra.mxu0 %v1693
      %1805 = vmatprep.subr.mxu0 0.0
      %1806 = vmatpush1.msra.mxu0 %v1694
      %1807 = vmatprep.subr.mxu0 0.0
      %1808 = vmatpush1.msra.mxu0 %v1695
      %1809 = vmatprep.subr.mxu0 0.0
      %1810 = vmatpush1.msra.mxu0 %v1696
      %1811 = vmatprep.subr.mxu0 0.0
      %1812 = vmatpush1.msra.mxu0 %v1697
      %1813 = vmatprep.subr.mxu0 0.0
      %1814 = vmatpush1.msra.mxu0 %v1698
      %1815 = vmatprep.subr.mxu0 0.0
      %1816 = vmatpush1.msra.mxu0 %v1699
      %1817 = vmatprep.subr.mxu0 0.0
      %1818 = vmatpush1.msra.mxu0 %v1700
      %1819 = vmatprep.subr.mxu0 0.0
      %1820 = vmatpush1.msra.mxu0 %v1701
      %1821 = vmatprep.subr.mxu0 0.0
      %1822 = vmatpush1.msra.mxu0 %v1702
      %1823 = vmatprep.subr.mxu0 0.0
      %1824 = vmatpush1.msra.mxu0 %v1703
      %1825 = vmatprep.subr.mxu0 0.0
      %1826 = vmatpush1.msra.mxu0 %v1704
      %1827 = vmatprep.subr.mxu0 0.0
      %1828 = vmatpush1.msra.mxu0 %v1705
      %1829 = vmatprep.subr.mxu0 0.0
      %1830 = vmatpush1.msra.mxu0 %v1706
      %1831 = vmatprep.subr.mxu0 0.0
      %1832 = vmatpush1.msra.mxu0 %v1707
      %1833 = vmatprep.subr.mxu0 0.0
      %1834 = vmatpush1.msra.mxu0 %v1708
      %1835 = vmatprep.subr.mxu0 0.0
      %1836 = vmatpush1.msra.mxu0 %v1709
      %1837 = vmatprep.subr.mxu0 0.0
      %1838 = vmatpush1.msra.mxu0 %v1710
      %1839 = vmatprep.subr.mxu0 0.0
      %1840 = vmatpush1.msra.mxu0 %v1711
      %1841 = vmatprep.subr.mxu0 0.0
      %1842 = vmatpush1.msra.mxu0 %v1712
      %1843 = vmatprep.subr.mxu0 0.0
      %1844 = vmatpush1.msra.mxu0 %v1713
      %1845 = vmatprep.subr.mxu0 0.0
      %1846 = vmatpush1.msra.mxu0 %v1714
      %1847 = vmatprep.subr.mxu0 0.0
      %1848 = vmatpush1.msra.mxu0 %v1715
      %1849 = vmatprep.subr.mxu0 0.0
      %1850 = vmatpush1.msra.mxu0 %v1716
      %1851 = vmatprep.subr.mxu0 0.0
      %1852 = vmatpush1.msra.mxu0 %v1717
      %1853 = vmatprep.subr.mxu0 0.0
      %1854 = vmatpush1.msra.mxu0 %v1718
      %1855 = vmatprep.subr.mxu0 0.0
      %1856 = vmatpush1.msra.mxu0 %v1719
      %1857 = vmatprep.subr.mxu0 0.0
      %1858 = vmatpush1.msra.mxu0 %v1720
      %1859 = vmatprep.subr.mxu0 0.0
      %1860 = vmatpush1.msra.mxu0 %v1721
      %1861 = vmatprep.mubr.f32.mxu0 %v1653
      %1862 = vmatmul.mubr.f32.gmra.mrb[0].mxu0 %v1652
      %v1863 = vpop.f32.mrb[0].mxu0
      %v1864 = vadd.f32 %v1789, %v1863
      %v1865 = vpop.f32.mrb[0].mxu0
      %1866 = vmatprep.mubr.f32.mxu0 %v1657
      %1867 = vmatmul.mubr.f32.gmra.mrb[0].mxu0 %v1656
      %v1868 = vpop.f32.mrb[0].mxu0
      %v1869 = vadd.f32 %v1794, %v1868
      %v1870 = vpop.f32.mrb[0].mxu0
      %1871 = vdwg.mxu0
      %v1872 = vadd.f32 %v525, %v1864
      %v1873 = vadd.f32 %v526, %v1869
      %v1874 = vld [vmem:[%s10] sm:$0x1]
      %v1875 = vld [vmem:[%s11] sm:$0x1]
      %v1876 = vsel %vm529, %v1872, 0.0
      %1877 = vadd.xlane.f32.xlu0 %v1876
      %v1878 = vpop.xlane.xlu0 %1877
      %v1879 = vsel %vm529, %v1873, 0.0
      %1880 = vadd.xlane.f32.xlu0 %v1879
      %v1881 = vpop.xlane.xlu0 %1880
      %v1882 = vmul.f32 %v1878, %v536
      %v1883 = vmul.f32 %v1881, %v536
      %v1884 = vsub.f32 %v1872, %v1882
      %v1885 = vsub.f32 %v1873, %v1883
      %v1886 = vmul.f32 %v1884, %v1884
      %v1887 = vmul.f32 %v1885, %v1885
      %v1888 = vsel %vm529, %v1886, 0.0
      %1889 = vadd.xlane.f32.xlu0 %v1888
      %v1890 = vpop.xlane.xlu0 %1889
      %v1891 = vsel %vm529, %v1887, 0.0
      %1892 = vadd.xlane.f32.xlu0 %v1891
      %v1893 = vpop.xlane.xlu0 %1892
      %v1894 = vmul.f32 %v1890, %v536
      %v1895 = vmul.f32 %v1893, %v536
      %v1896 = vadd.f32 %v1894, 1e-05
      %v1897 = vadd.f32 %v1895, 1e-05
      %v1898 = vrsqrt.pop %v1896
      %v1899 = vrsqrt.pop %v1897
      %v1900 = vmul.f32 %v1884, %v1898
      %v1901 = vmul.f32 %v1885, %v1899
      %v1903 = vlaneseq
      %v1904 = vshrl.u32 %v1903, 7
      %v1905 = vsub.s32 0, %v1904
      %v1906 = vrot.slane %v1874, %v1905
      %v1908 = vmul.f32 %v1900, %v1906
      %v1909 = vmul.f32 %v1901, %v1906
      %v1911 = vlaneseq
      %v1912 = vshrl.u32 %v1911, 7
      %v1913 = vsub.s32 0, %v1912
      %v1914 = vrot.slane %v1875, %v1913
      %v1916 = vadd.f32 %v1908, %v1914
      %v1917 = vadd.f32 %v1909, %v1914
      %v1918 = vld [vmem:[%s12] sm:$0xff]
      %v1919 = vld [vmem:[%s12 + $0x8] sm:$0xff]
      %v1920 = vld [vmem:[%s12 + $0x10] sm:$0xff]
      %v1921 = vld [vmem:[%s12 + $0x18] sm:$0xff]
      %v1922 = vld [vmem:[%s13] sm:$0x1]
      %v1924 = vlaneseq
      %v1925 = vshrl.u32 %v1924, 7
      %v1926 = vsub.s32 0, %v1925
      %v1927 = vrot.slane %v1922, %v1926
      %v1930 = vsel %vm529, %v1916, 0
      %v1933 = vsel %vm529, %v1917, 0
      %1935 = vmatprep.subr.mxu0 0.0
      %1936 = vmatpush1.msra.mxu0 %v1918
      %1937 = vmatprep.subr.mxu0 0.0
      %1938 = vmatpush1.msra.mxu0 %v1919
      %1939 = vmatprep.subr.mxu0 0.0
      %1940 = vmatpush1.msra.mxu0 %v1920
      %1941 = vmatprep.subr.mxu0 0.0
      %1942 = vmatpush1.msra.mxu0 %v1921
      %1943 = vmatprep.subr.mxu0 0.0
      %1944 = vmatpush1.msra.mxu0 0.0
      %1945 = vmatprep.subr.mxu0 0.0
      %1946 = vmatpush1.msra.mxu0 0.0
      %1947 = vmatprep.subr.mxu0 0.0
      %1948 = vmatpush1.msra.mxu0 0.0
      %1949 = vmatprep.subr.mxu0 0.0
      %1950 = vmatpush1.msra.mxu0 0.0
      %1951 = vmatprep.subr.mxu0 0.0
      %1952 = vmatpush1.msra.mxu0 0.0
      %1953 = vmatprep.subr.mxu0 0.0
      %1954 = vmatpush1.msra.mxu0 0.0
      %1955 = vmatprep.subr.mxu0 0.0
      %1956 = vmatpush1.msra.mxu0 0.0
      %1957 = vmatprep.subr.mxu0 0.0
      %1958 = vmatpush1.msra.mxu0 0.0
      %1959 = vmatprep.subr.mxu0 0.0
      %1960 = vmatpush1.msra.mxu0 0.0
      %1961 = vmatprep.subr.mxu0 0.0
      %1962 = vmatpush1.msra.mxu0 0.0
      %1963 = vmatprep.subr.mxu0 0.0
      %1964 = vmatpush1.msra.mxu0 0.0
      %1965 = vmatprep.subr.mxu0 0.0
      %1966 = vmatpush1.msra.mxu0 0.0
      %1967 = vmatprep.subr.mxu0 0.0
      %1968 = vmatpush1.msra.mxu0 0.0
      %1969 = vmatprep.subr.mxu0 0.0
      %1970 = vmatpush1.msra.mxu0 0.0
      %1971 = vmatprep.subr.mxu0 0.0
      %1972 = vmatpush1.msra.mxu0 0.0
      %1973 = vmatprep.subr.mxu0 0.0
      %1974 = vmatpush1.msra.mxu0 0.0
      %1975 = vmatprep.subr.mxu0 0.0
      %1976 = vmatpush1.msra.mxu0 0.0
      %1977 = vmatprep.subr.mxu0 0.0
      %1978 = vmatpush1.msra.mxu0 0.0
      %1979 = vmatprep.subr.mxu0 0.0
      %1980 = vmatpush1.msra.mxu0 0.0
      %1981 = vmatprep.subr.mxu0 0.0
      %1982 = vmatpush1.msra.mxu0 0.0
      %1983 = vmatprep.subr.mxu0 0.0
      %1984 = vmatpush1.msra.mxu0 0.0
      %1985 = vmatprep.subr.mxu0 0.0
      %1986 = vmatpush1.msra.mxu0 0.0
      %1987 = vmatprep.subr.mxu0 0.0
      %1988 = vmatpush1.msra.mxu0 0.0
      %1989 = vmatprep.subr.mxu0 0.0
      %1990 = vmatpush1.msra.mxu0 0.0
      %1991 = vmatprep.subr.mxu0 0.0
      %1992 = vmatpush1.msra.mxu0 0.0
      %1993 = vmatprep.subr.mxu0 0.0
      %1994 = vmatpush1.msra.mxu0 0.0
      %1995 = vmatprep.subr.mxu0 0.0
      %1996 = vmatpush1.msra.mxu0 0.0
      %1997 = vmatprep.subr.mxu0 0.0
      %1998 = vmatpush1.msra.mxu0 0.0
      %1999 = vmatprep.mubr.f32.mxu0 0.0
      %2000 = vmatmul.mubr.f32.gmra.mrb[0].mxu0 %v1930
      %v2001 = vpop.f32.mrb[0].mxu0
      %v2002 = vadd.f32 %v1927, %v2001
      %v2003 = vpop.f32.mrb[0].mxu0
      %2004 = vmatprep.mubr.f32.mxu0 0.0
      %2005 = vmatmul.mubr.f32.gmra.mrb[0].mxu0 %v1933
      %v2006 = vpop.f32.mrb[0].mxu0
      %v2007 = vadd.f32 %v1927, %v2006
      %v2008 = vpop.f32.mrb[0].mxu0
      %2009 = vdwg.mxu0
      %v2010 = vmul.f32 %v2002, 0.5
      %v2011 = vmul.f32 %v2007, 0.5
      %v2012 = vmul.f32 %v2002, 0.044715
      %v2013 = vmul.f32 %v2007, 0.044715
      %v2014 = vmul.f32 %v2012, %v2002
      %v2015 = vmul.f32 %v2013, %v2007
      %v2016 = vmul.f32 %v2014, %v2002
      %v2017 = vmul.f32 %v2015, %v2007
      %v2018 = vadd.f32 %v2002, %v2016
      %v2019 = vadd.f32 %v2007, %v2017
      %v2020 = vmul.f32 %v2018, 0.7978846
      %v2021 = vmul.f32 %v2019, 0.7978846
      %v2022 = vtanh.pop %v2020
      %v2023 = vtanh.pop %v2021
      %v2024 = vadd.f32 %v2022, 1.0
      %v2025 = vadd.f32 %v2023, 1.0
      %v2026 = vmul.f32 %v2010, %v2024
      %v2027 = vmul.f32 %v2011, %v2025
      %v2028 = vld [vmem:[%s14] sm:$0xff]
      %v2029 = vld [vmem:[%s14 + $0x8] sm:$0xff]
      %v2030 = vld [vmem:[%s14 + $0x10] sm:$0xff]
      %v2031 = vld [vmem:[%s14 + $0x18] sm:$0xff]
      %v2032 = vld [vmem:[%s14 + $0x20] sm:$0xff]
      %v2033 = vld [vmem:[%s14 + $0x28] sm:$0xff]
      %v2034 = vld [vmem:[%s14 + $0x30] sm:$0xff]
      %v2035 = vld [vmem:[%s14 + $0x38] sm:$0xff]
      %v2036 = vld [vmem:[%s14 + $0x40] sm:$0xff]
      %v2037 = vld [vmem:[%s14 + $0x48] sm:$0xff]
      %v2038 = vld [vmem:[%s14 + $0x50] sm:$0xff]
      %v2039 = vld [vmem:[%s14 + $0x58] sm:$0xff]
      %v2040 = vld [vmem:[%s14 + $0x60] sm:$0xff]
      %v2041 = vld [vmem:[%s14 + $0x68] sm:$0xff]
      %v2042 = vld [vmem:[%s14 + $0x70] sm:$0xff]
      %v2043 = vld [vmem:[%s14 + $0x78] sm:$0xff]
      %2044 = vmatprep.subr.mxu0 0.0
      %2045 = vmatpush1.msra.mxu0 %v2028
      %2046 = vmatprep.subr.mxu0 0.0
      %2047 = vmatpush1.msra.mxu0 %v2029
      %2048 = vmatprep.subr.mxu0 0.0
      %2049 = vmatpush1.msra.mxu0 %v2030
      %2050 = vmatprep.subr.mxu0 0.0
      %2051 = vmatpush1.msra.mxu0 %v2031
      %2052 = vmatprep.subr.mxu0 0.0
      %2053 = vmatpush1.msra.mxu0 %v2032
      %2054 = vmatprep.subr.mxu0 0.0
      %2055 = vmatpush1.msra.mxu0 %v2033
      %2056 = vmatprep.subr.mxu0 0.0
      %2057 = vmatpush1.msra.mxu0 %v2034
      %2058 = vmatprep.subr.mxu0 0.0
      %2059 = vmatpush1.msra.mxu0 %v2035
      %2060 = vmatprep.subr.mxu0 0.0
      %2061 = vmatpush1.msra.mxu0 %v2036
      %2062 = vmatprep.subr.mxu0 0.0
      %2063 = vmatpush1.msra.mxu0 %v2037
      %2064 = vmatprep.subr.mxu0 0.0
      %2065 = vmatpush1.msra.mxu0 %v2038
      %2066 = vmatprep.subr.mxu0 0.0
      %2067 = vmatpush1.msra.mxu0 %v2039
      %2068 = vmatprep.subr.mxu0 0.0
      %2069 = vmatpush1.msra.mxu0 %v2040
      %2070 = vmatprep.subr.mxu0 0.0
      %2071 = vmatpush1.msra.mxu0 %v2041
      %2072 = vmatprep.subr.mxu0 0.0
      %2073 = vmatpush1.msra.mxu0 %v2042
      %2074 = vmatprep.subr.mxu0 0.0
      %2075 = vmatpush1.msra.mxu0 %v2043
      %2076 = vmatprep.subr.mxu0 0.0
      %2077 = vmatpush1.msra.mxu0 0.0
      %2078 = vmatprep.subr.mxu0 0.0
      %2079 = vmatpush1.msra.mxu0 0.0
      %2080 = vmatprep.subr.mxu0 0.0
      %2081 = vmatpush1.msra.mxu0 0.0
      %2082 = vmatprep.subr.mxu0 0.0
      %2083 = vmatpush1.msra.mxu0 0.0
      %2084 = vmatprep.subr.mxu0 0.0
      %2085 = vmatpush1.msra.mxu0 0.0
      %2086 = vmatprep.subr.mxu0 0.0
      %2087 = vmatpush1.msra.mxu0 0.0
      %2088 = vmatprep.subr.mxu0 0.0
      %2089 = vmatpush1.msra.mxu0 0.0
      %2090 = vmatprep.subr.mxu0 0.0
      %2091 = vmatpush1.msra.mxu0 0.0
      %2092 = vmatprep.subr.mxu0 0.0
      %2093 = vmatpush1.msra.mxu0 0.0
      %2094 = vmatprep.subr.mxu0 0.0
      %2095 = vmatpush1.msra.mxu0 0.0
      %2096 = vmatprep.subr.mxu0 0.0
      %2097 = vmatpush1.msra.mxu0 0.0
      %2098 = vmatprep.subr.mxu0 0.0
      %2099 = vmatpush1.msra.mxu0 0.0
      %2100 = vmatprep.subr.mxu0 0.0
      %2101 = vmatpush1.msra.mxu0 0.0
      %2102 = vmatprep.subr.mxu0 0.0
      %2103 = vmatpush1.msra.mxu0 0.0
      %2104 = vmatprep.subr.mxu0 0.0
      %2105 = vmatpush1.msra.mxu0 0.0
      %2106 = vmatprep.subr.mxu0 0.0
      %2107 = vmatpush1.msra.mxu0 0.0
      %2108 = vmatprep.mubr.f32.mxu0 0.0
      %2109 = vmatmul.mubr.f32.gmra.mrb[0].mxu0 %v2026
      %v2110 = vpop.f32.mrb[0].mxu0
      %v2111 = vadd.f32 0.0, %v2110
      %v2112 = vpop.f32.mrb[0].mxu0
      %2113 = vmatprep.mubr.f32.mxu0 0.0
      %2114 = vmatmul.mubr.f32.gmra.mrb[0].mxu0 %v2027
      %v2115 = vpop.f32.mrb[0].mxu0
      %v2116 = vadd.f32 0.0, %v2115
      %v2117 = vpop.f32.mrb[0].mxu0
      %2118 = vdwg.mxu0
      %v2119 = vadd.f32 %v1872, %v2111
      %v2120 = vadd.f32 %v1873, %v2116
      %v2121 = vld [vmem:[%s15] sm:$0x1]
      %v2123 = vlaneseq
      %v2124 = vshrl.u32 %v2123, 7
      %v2125 = vsub.s32 0, %v2124
      %v2126 = vrot.slane %v2121, %v2125
      %v2128 = vadd.f32 %v2119, %v2126
      %v2129 = vadd.f32 %v2120, %v2126
      %2130 = vst.msk [vmem:[%s523] sm:$0xff] %vm529, %v2128
      %2131 = vst.msk [vmem:[%s523 + $0x8] sm:$0xff] %vm529, %v2129
      %s2132 = smul.u32 2, %s27
      %p2133 = scmp.lt.s32.totalorder %s2132, 3
      %s2134 = scalar_select %p2133, %s2132, 3
      %s2135 = smul.addr %s2134, 8
      %s2136 = scalar_lea.vmem %s16, %s2135
      // Predicated region
      $region85: #{vip_forward.5} parent=83 // pred_check
        %p2137 = pneg %p386
      $region86: #{vip_forward.5} parent=83 // pred_check_branch
        %2139 = sbr.rel (%p2137) target = $region88
      $region87: #{vip_forward.5} parent=83 // pred_region
        %s2140 = smul.u32 2, %s27
      $region88: #{vip_forward.5} parent=83 // pred_fallthru
        _
    $region84: #{vip_forward.5} parent=5 // pred_fallthru
      _
    %p2141 = scmp.le.s32.totalorder 2, %s22
    // Predicated region
    $region89: #{vip_forward.5} parent=5 // pred_check
      %p2142 = pneg %p2141
    $region90: #{vip_forward.5} parent=5 // pred_check_branch
      %2144 = sbr.rel (%p2142) target = $region92
    $region91: #{vip_forward.5} parent=5 // pred_region
      %s2145 = ssub.s32 %s22, 2
      // Predicated region
      $region93: #{vip_forward.5} parent=91 // pred_check
        %p2146 = pneg %p392
      $region94: #{vip_forward.5} parent=91 // pred_check_branch
        %2148 = sbr.rel (%p2146) target = $region96
      $region95: #{vip_forward.5} parent=91 // pred_region
        %s2149 = smul.u32 2, %s28
        %p2150 = scmp.lt.s32.totalorder %s2149, 3
        %s2151 = scalar_select %p2150, %s2149, 3
        %s2152 = smul.addr %s2151, 8
        %s2153 = scalar_lea.vmem %s16, %s2152
      $region96: #{vip_forward.5} parent=91 // pred_fallthru
        _
    $region92: #{vip_forward.5} parent=5 // pred_fallthru
      _
  $region6: #{vip_forward.5} parent=0 // loop_footer
    %s26 = sadd.s32 1, %s22
  $region7: #{vip_forward.5} parent=0 // loop_footer_branch
    %21 = sbr.rel target = $region3
  $region8: #{vip_forward.5} parent=0 // loop_exit
    _

</llo_original>
